<compile_context>
chip_gen: v7x
topology: tpu7x:2x2x1
jax: 0.10.0
libtpu: 0.0.40
codegen_flags: <defaults>
</compile_context>

<pallas_src>
import functools

import jax
import jax.numpy as jnp
from jax import lax
from jax.experimental import pallas as pl
from jax.experimental.pallas import tpu as pltpu

EPS = 1e-5


def _silu(x):
    # exp -> EUP, approx reciprocal -> EUP; keeps the VALU slot free.
    return x * pl.reciprocal(1.0 + jnp.exp(-x), approx=True)


def _gn_silu(v, gamma, beta, G, inv_n):
    """GroupNorm (channels on sublanes, flattened spatial on lanes) followed by SiLU.

    Any halo/guard lanes of `v` are already zero, so they drop out of the sums; `inv_n`
    is 1 / (true interior positions * channels-per-group).  Group statistics use one
    fused (C, 2) [sum, sum_sq] cross-sublane reduce per group (G is tiny & static).
    """
    C = v.shape[0]
    pc = C // G
    s12 = jnp.concatenate([jnp.sum(v, axis=1, keepdims=True),
                           jnp.sum(v * v, axis=1, keepdims=True)], axis=1)   # (C, 2)
    ch = lax.broadcasted_iota(jnp.int32, (C, 1), 0)
    mean_c = jnp.zeros((C, 1), jnp.float32)
    inv_c = jnp.zeros((C, 1), jnp.float32)
    for g in range(G):                                      # unrolled, G is tiny
        sel = jnp.logical_and(ch >= g * pc, ch < (g + 1) * pc)
        gs = jnp.sum(jnp.where(sel, s12, 0.0), axis=0, keepdims=True)        # (1, 2)
        mu = gs[0, 0] * inv_n
        var = gs[0, 1] * inv_n - mu * mu
        iv = lax.rsqrt(var + EPS)
        mean_c = jnp.where(sel, mu, mean_c)
        inv_c = jnp.where(sel, iv, inv_c)
    return _silu((v - mean_c) * inv_c * gamma + beta)


def _rb_kernel(x_ref, emb_ref, imask_ref, p1_ref, p2_ref, w1_ref, w2_ref,
               out_ref, a1_ref, a2_ref, *, H, W, G1, G2, TB):
    Wp = W + 2
    L = H * Wp                     # contiguous "computable" window of the padded domain
    win0 = Wp + 1                  # window start == centre-tap offset in the padded buffer
    Cin = a1_ref.shape[1]
    Cout = a2_ref.shape[1]
    P2n = a1_ref.shape[2]
    inv_n1 = 1.0 / float(H * W * (Cin // G1))
    inv_n2 = 1.0 / float(H * W * (Cout // G2))

    imask = imask_ref[...]                     # (1, P2n) interior mask
    wmask = imask[:, win0:win0 + L]            # (1, L)

    g1w, b1w = p1_ref[:, 0:1], p1_ref[:, 1:2]
    g2w, b2w = p2_ref[:, 0:1], p2_ref[:, 1:2]
    bias_o = p2_ref[:, 2:3]                    # conv2 bias + shortcut bias

    zhalo_l = jnp.zeros((Cout, win0), jnp.bfloat16)
    zhalo_r = jnp.zeros((Cout, P2n - win0 - L), jnp.bfloat16)

    def conv3x3(w_ref, buf_ref, ti, Cc, per_row):
        """3x3 conv as K-chunked accumulated MXU dots over im2col tap slices."""
        acc = None
        for ky in range(3):
            if per_row:          # one chunk = one tap row (3 taps); needs Cc % 16 == 0
                rhs = jnp.concatenate(
                    [buf_ref[ti, :, ky * Wp + kx: ky * Wp + kx + L] for kx in range(3)],
                    axis=0)                                       # (3*Cc, L) bf16
                pieces = [(w_ref[:, ky * 3 * Cc:(ky + 1) * 3 * Cc], rhs)]
            else:                # one chunk = one tap (keeps bf16 sublane concat aligned)
                pieces = [(w_ref[:, (ky * 3 + kx) * Cc:(ky * 3 + kx + 1) * Cc],
                           buf_ref[ti, :, ky * Wp + kx: ky * Wp + kx + L])
                          for kx in range(3)]
            for lhs, rhs in pieces:
                d = jnp.dot(lhs, rhs, preferred_element_type=jnp.float32)
                acc = d if acc is None else acc + d
        return acc                                                # (Cout, L) f32

    for ti in range(TB):          # static unroll: TB independent per-image pipelines
        # ---- conv1 branch: GroupNorm -> SiLU (mask keeps the conv halo at exactly zero) ----
        a1 = _gn_silu(x_ref[ti], g1w, b1w, G1, inv_n1) * imask
        a1_ref[ti] = a1.astype(jnp.bfloat16)

        # ---- conv1 (bias folded into emb) + folded time/class embeddings ----
        h = conv3x3(w1_ref, a1_ref, ti, Cin, per_row=(Cin % 16 == 0))
        h = h + emb_ref[ti]                                       # b1 + emb_t + emb_c*mask

        # ---- conv2 branch: GroupNorm -> SiLU -> Dropout(eval = identity) ----
        hm = h * wmask                     # zero non-interior columns for the stats
        a2 = _gn_silu(hm, g2w, b2w, G2, inv_n2) * wmask
        a2_ref[ti, :, 0:win0] = zhalo_l                           # top halo row
        a2_ref[ti, :, win0 + L:] = zhalo_r                        # bottom halo rows
        a2_ref[ti, :, win0:win0 + L] = a2.astype(jnp.bfloat16)

        # ---- conv2 + fused 1x1 shortcut (raw x centre tap as an extra accumulated dot) ----
        out = conv3x3(w2_ref, a2_ref, ti, Cout, per_row=(Cout % 16 == 0))
        xc = x_ref[ti, :, win0:win0 + L].astype(jnp.bfloat16)     # (Cin, L)
        out = out + jnp.dot(w2_ref[:, 9 * Cout:], xc, preferred_element_type=jnp.float32)
        out_ref[ti] = out + bias_o


def residual_block(x_nchw, t, c, mask, params, G1=4, G2=4, TB=None):
    """Fused Residual_block forward.  NCHW in, NCHW out (matches the PyTorch module)."""
    B, Cin, H, W = x_nchw.shape
    Cout = params["w1"].shape[-1]
    Wp = W + 2
    P2n = (H + 3) * Wp            # H padded by (1, 2): extra bottom row = flat-axis guard
    L = H * Wp

    if TB is None:
        TB = 2 if (B % 2 == 0 and B >= 4) else 1   # keep >= 2 grid steps (v7x megacore)
    assert B % TB == 0, "batch must be divisible by TB"

    xf = x_nchw.astype(jnp.float32)
    # single fused pad + flatten of the spatial axes (halo + guard in one XLA op)
    xpad = jnp.pad(xf, ((0, 0), (0, 0), (1, 2), (1, 1))).reshape(B, Cin, P2n)

    yy, xx = jnp.meshgrid(jnp.arange(H + 3), jnp.arange(Wp), indexing="ij")
    inner = ((yy >= 1) & (yy <= H) & (xx >= 1) & (xx <= W)).astype(jnp.float32)
    imask = inner.reshape(1, P2n)

    # fold the tiny SiLU+Linear time/class embeddings (+ conv1 bias) wrapper-side: (B, Cout, 1)
    e_t = jnp.dot(jax.nn.silu(t.astype(jnp.float32)), params["wt"]) + params["bt"]
    e_c = (jnp.dot(jax.nn.silu(c.astype(jnp.float32)), params["wc"]) + params["bc"]) \
        * mask.astype(jnp.float32)[:, None]
    emb = (e_t + e_c + params["b1"]).astype(jnp.float32).reshape(B, Cout, 1)

    # K-stacked bf16 MXU weights: conv1 (Cout, 9*Cin); conv2 with the 1x1 shortcut fused.
    w1m = params["w1"].reshape(9 * Cin, Cout).T.astype(jnp.bfloat16)
    w2m = jnp.concatenate([params["w2"].reshape(9 * Cout, Cout).T, params["ws"].T],
                          axis=1).astype(jnp.bfloat16)            # (Cout, 9*Cout + Cin)

    # packed per-channel params
    p1 = jnp.stack([params["gn1_g"], params["gn1_b"]], axis=1).astype(jnp.float32)
    p2 = jnp.stack([params["gn2_g"], params["gn2_b"],
                    params["b2"] + params["bs"]], axis=1).astype(jnp.float32)

    kernel = functools.partial(_rb_kernel, H=H, W=W, G1=G1, G2=G2, TB=TB)
    out_flat = pl.pallas_call(
        kernel,
        out_shape=jax.ShapeDtypeStruct((B, Cout, L), jnp.float32),
        grid=(B // TB,),
        in_specs=[
            pl.BlockSpec((TB, Cin, P2n), lambda b: (b, 0, 0)),
            pl.BlockSpec((TB, Cout, 1), lambda b: (b, 0, 0)),
            pl.BlockSpec((1, P2n), lambda b: (0, 0)),
            pl.BlockSpec((Cin, 2), lambda b: (0, 0)),
            pl.BlockSpec((Cout, 3), lambda b: (0, 0)),
            pl.BlockSpec((Cout, 9 * Cin), lambda b: (0, 0)),
            pl.BlockSpec((Cout, 9 * Cout + Cin), lambda b: (0, 0)),
        ],
        out_specs=pl.BlockSpec((TB, Cout, L), lambda b: (b, 0, 0)),
        scratch_shapes=[
            pltpu.VMEM((TB, Cin, P2n), jnp.bfloat16),    # SiLU(GN1(x)), padded domain
            pltpu.VMEM((TB, Cout, P2n), jnp.bfloat16),   # SiLU(GN2(h)), padded domain
        ],
        compiler_params=pltpu.CompilerParams(
            dimension_semantics=("parallel",),            # megacore batch sharding (v7x)
            vmem_limit_bytes=32 * 1024 * 1024,
        ),
    )(xpad, emb, imask, p1, p2, w1m, w2m)

    # drop the width-padding columns; already NCHW-ordered, so no transpose needed
    return out_flat.reshape(B, Cout, H, Wp)[:, :, :, 0:W]


# ------------------------- pure-JAX reference (for checking) -------------------------
def reference_forward(x, t, c, mask, params, G1, G2):
    def gn(v, gamma, beta, G):
        Bv, C, Hh, Ww = v.shape
        vg = v.reshape(Bv, G, (C // G) * Hh * Ww)
        m = vg.mean(axis=2, keepdims=True)
        var = vg.var(axis=2, keepdims=True)
        vn = ((vg - m) / jnp.sqrt(var + EPS)).reshape(Bv, C, Hh, Ww)
        return vn * gamma.reshape(1, -1, 1, 1) + beta.reshape(1, -1, 1, 1)

    def silu(v):
        return v * jax.nn.sigmoid(v)

    def conv3(v, w_hwio, b):
        y = lax.conv_general_dilated(v, w_hwio, (1, 1), "SAME",
                                     dimension_numbers=("NCHW", "HWIO", "NCHW"))
        return y + b.reshape(1, -1, 1, 1)

    h = conv3(silu(gn(x, params["gn1_g"], params["gn1_b"], G1)), params["w1"], params["b1"])
    e_t = jnp.dot(silu(t), params["wt"]) + params["bt"]
    e_c = (jnp.dot(silu(c), params["wc"]) + params["bc"]) * mask[:, None]
    h = h + (e_t + e_c)[:, :, None, None]
    h = conv3(silu(gn(h, params["gn2_g"], params["gn2_b"], G2)), params["w2"], params["b2"])
    sc = jnp.einsum("bihw,io->bohw", x, params["ws"]) + params["bs"].reshape(1, -1, 1, 1)
    return h + sc


if __name__ == "__main__":
    B, Cin, Cout, H, W = 4, 8, 16, 16, 16
    Tch, Cch = 32, 12
    G1 = G2 = 4   # norm_layer assumed = GroupNorm(4, ch)

    key = jax.random.PRNGKey(0)
    ks = jax.random.split(key, 20)

    def rnd(k, shape, scale=0.1):
        return jax.random.normal(k, shape, jnp.float32) * scale

    params = {
        "gn1_g": 1.0 + rnd(ks[0], (Cin,)),
        "gn1_b": rnd(ks[1], (Cin,)),
        "w1":    rnd(ks[2], (3, 3, Cin, Cout)),        # HWIO
        "b1":    rnd(ks[3], (Cout,)),
        "wt":    rnd(ks[4], (Tch, Cout)),
        "bt":    rnd(ks[5], (Cout,)),
        "wc":    rnd(ks[6], (Cch, Cout)),
        "bc":    rnd(ks[7], (Cout,)),
        "gn2_g": 1.0 + rnd(ks[8], (Cout,)),
        "gn2_b": rnd(ks[9], (Cout,)),
        "w2":    rnd(ks[10], (3, 3, Cout, Cout)),      # HWIO
        "b2":    rnd(ks[11], (Cout,)),
        "ws":    rnd(ks[12], (Cin, Cout)),             # 1x1 shortcut conv
        "bs":    rnd(ks[13], (Cout,)),
    }

    x = jax.random.normal(ks[14], (B, Cin, H, W), jnp.float32)   # NCHW like PyTorch
    t = jax.random.normal(ks[15], (B, Tch), jnp.float32)
    c = jax.random.normal(ks[16], (B, Cch), jnp.float32)
    mask = jnp.array([1.0, 0.0, 1.0, 0.0], jnp.float32)

    out = jax.block_until_ready(residual_block(x, t, c, mask, params, G1, G2))
    assert out.shape == (B, Cout, H, W), out.shape

    ref = reference_forward(x, t, c, mask, params, G1, G2)
    err = jnp.abs(out - ref)
    tol = 4e-2 + 4e-2 * jnp.abs(ref)     # bf16 MXU operands vs f32 reference
    if not bool(jnp.all(err <= tol)):
        raise AssertionError(
            f"kernel/reference mismatch: max abs err = {float(jnp.max(err)):.4f}")

    print("KERNEL_OK")
</pallas_src>

<mosaic_0001>
module attributes {stable_mosaic.version = 11 : i64} {
  func.func @_rb_kernel(%arg0: i32, %arg1: memref<2x8x342xf32, #tpu.memory_space<vmem>>, %arg2: memref<2x16x1xf32, #tpu.memory_space<vmem>>, %arg3: memref<1x342xf32, #tpu.memory_space<vmem>>, %arg4: memref<8x2xf32, #tpu.memory_space<vmem>>, %arg5: memref<16x3xf32, #tpu.memory_space<vmem>>, %arg6: memref<16x72xbf16, #tpu.memory_space<vmem>>, %arg7: memref<16x152xbf16, #tpu.memory_space<vmem>>, %arg8: memref<2x16x288xf32, #tpu.memory_space<vmem>>, %arg9: memref<2x8x342xbf16, #tpu.memory_space<vmem>>, %arg10: memref<2x16x342xbf16, #tpu.memory_space<vmem>>) attributes {dimension_semantics = [#tpu.dimension_semantics<parallel>], iteration_bounds = array<i64: 2>, scalar_prefetch = 0 : i64, scratch_operands = 2 : i64, tpu.core_type = #tpu.core_type<tc>, window_params = [{transform_indices = @transform_0, window_bounds = array<i64: 2, 8, 342>}, {transform_indices = @transform_1, window_bounds = array<i64: 2, 16, 1>}, {pipeline_mode = #tpu.pipeline_mode<synchronous>, transform_indices = @transform_2, window_bounds = array<i64: 1, 342>}, {pipeline_mode = #tpu.pipeline_mode<synchronous>, transform_indices = @transform_3, window_bounds = array<i64: 8, 2>}, {pipeline_mode = #tpu.pipeline_mode<synchronous>, transform_indices = @transform_4, window_bounds = array<i64: 16, 3>}, {pipeline_mode = #tpu.pipeline_mode<synchronous>, transform_indices = @transform_5, window_bounds = array<i64: 16, 72>}, {pipeline_mode = #tpu.pipeline_mode<synchronous>, transform_indices = @transform_6, window_bounds = array<i64: 16, 152>}, {transform_indices = @transform_7, window_bounds = array<i64: 2, 16, 288>}]} {
    %c0 = arith.constant 0 : index
    %c0_0 = arith.constant 0 : index
    %0 = vector.load %arg3[%c0, %c0_0] : memref<1x342xf32, #tpu.memory_space<vmem>>, vector<1x342xf32>
    %1 = vector.extract_strided_slice %0 {offsets = [0, 19], sizes = [1, 288], strides = [1, 1]} : vector<1x342xf32> to vector<1x288xf32>
    %c0_1 = arith.constant 0 : index
    %c0_2 = arith.constant 0 : index
    %2 = vector.load %arg4[%c0_1, %c0_2] : memref<8x2xf32, #tpu.memory_space<vmem>>, vector<8x1xf32>
    %c0_3 = arith.constant 0 : index
    %c1 = arith.constant 1 : index
    %3 = vector.load %arg4[%c0_3, %c1] : memref<8x2xf32, #tpu.memory_space<vmem>>, vector<8x1xf32>
    %c0_4 = arith.constant 0 : index
    %c0_5 = arith.constant 0 : index
    %4 = vector.load %arg5[%c0_4, %c0_5] : memref<16x3xf32, #tpu.memory_space<vmem>>, vector<16x1xf32>
    %c0_6 = arith.constant 0 : index
    %c1_7 = arith.constant 1 : index
    %5 = vector.load %arg5[%c0_6, %c1_7] : memref<16x3xf32, #tpu.memory_space<vmem>>, vector<16x1xf32>
    %c0_8 = arith.constant 0 : index
    %c2 = arith.constant 2 : index
    %6 = vector.load %arg5[%c0_8, %c2] : memref<16x3xf32, #tpu.memory_space<vmem>>, vector<16x1xf32>
    %cst = arith.constant 0.000000e+00 : bf16
    %7 = vector.broadcast %cst : bf16 to vector<16x19xbf16>
    %cst_9 = arith.constant 0.000000e+00 : bf16
    %8 = vector.broadcast %cst_9 : bf16 to vector<16x35xbf16>
    %c0_10 = arith.constant 0 : index
    %c0_11 = arith.constant 0 : index
    %c0_12 = arith.constant 0 : index
    %9 = vector.load %arg1[%c0_10, %c0_11, %c0_12] : memref<2x8x342xf32, #tpu.memory_space<vmem>>, vector<1x8x342xf32>
    %10 = vector.shape_cast %9 : vector<1x8x342xf32> to vector<8x342xf32>
    %cst_13 = arith.constant dense<0.000000e+00> : vector<8xf32>
    %11 = vector.multi_reduction <add>, %10, %cst_13 [1] : vector<8x342xf32> to vector<8xf32>
    %12 = vector.shape_cast %11 : vector<8xf32> to vector<8x1xf32>
    %13 = arith.mulf %10, %10 : vector<8x342xf32>
    %cst_14 = arith.constant dense<0.000000e+00> : vector<8xf32>
    %14 = vector.multi_reduction <add>, %13, %cst_14 [1] : vector<8x342xf32> to vector<8xf32>
    %15 = vector.shape_cast %14 : vector<8xf32> to vector<8x1xf32>
    %16 = tpu.concatenate %12, %15 in 1 : vector<8x1xf32>, vector<8x1xf32> -> vector<8x2xf32>
    %17 = tpu.iota {dimensions = array<i32: 0>} : vector<8x1xi32>
    %cst_15 = arith.constant 0.000000e+00 : f32
    %18 = vector.broadcast %cst_15 : f32 to vector<8x1xf32>
    %cst_16 = arith.constant 0.000000e+00 : f32
    %19 = vector.broadcast %cst_16 : f32 to vector<8x1xf32>
    %c0_i32 = arith.constant 0 : i32
    %20 = vector.broadcast %c0_i32 : i32 to vector<8x1xi32>
    %21 = arith.cmpi sge, %17, %20 : vector<8x1xi32>
    %c2_i32 = arith.constant 2 : i32
    %22 = vector.broadcast %c2_i32 : i32 to vector<8x1xi32>
    %23 = arith.cmpi slt, %17, %22 : vector<8x1xi32>
    %24 = arith.andi %21, %23 : vector<8x1xi1>
    %cst_17 = arith.constant 0.000000e+00 : f32
    %25 = vector.shape_cast %24 : vector<8x1xi1> to vector<8x1xi1>
    %26 = vector.broadcast %25 : vector<8x1xi1> to vector<8x2xi1>
    %27 = vector.broadcast %cst_17 : f32 to vector<8x2xf32>
    %28 = arith.select %26, %16, %27 : vector<8x2xi1>, vector<8x2xf32>
    %cst_18 = arith.constant dense<0.000000e+00> : vector<2xf32>
    %29 = vector.multi_reduction <add>, %28, %cst_18 [0] : vector<8x2xf32> to vector<2xf32>
    %30 = vector.shape_cast %29 : vector<2xf32> to vector<1x2xf32>
    %31 = vector.extract_strided_slice %30 {offsets = [0, 0], sizes = [1, 1], strides = [1, 1]} : vector<1x2xf32> to vector<1x1xf32>
    %32 = vector.extract %31[0, 0] : f32 from vector<1x1xf32>
    %cst_19 = arith.constant 0.001953125 : f32
    %33 = arith.mulf %32, %cst_19 : f32
    %34 = vector.extract_strided_slice %30 {offsets = [0, 1], sizes = [1, 1], strides = [1, 1]} : vector<1x2xf32> to vector<1x1xf32>
    %35 = vector.extract %34[0, 0] : f32 from vector<1x1xf32>
    %cst_20 = arith.constant 0.001953125 : f32
    %36 = arith.mulf %35, %cst_20 : f32
    %37 = arith.mulf %33, %33 : f32
    %38 = arith.subf %36, %37 : f32
    %cst_21 = arith.constant 9.99999974E-6 : f32
    %39 = arith.addf %38, %cst_21 : f32
    %40 = math.rsqrt %39 : f32
    %41 = vector.broadcast %33 : f32 to vector<8x1xf32>
    %42 = arith.select %24, %41, %18 : vector<8x1xi1>, vector<8x1xf32>
    %43 = vector.broadcast %40 : f32 to vector<8x1xf32>
    %44 = arith.select %24, %43, %19 : vector<8x1xi1>, vector<8x1xf32>
    %c2_i32_22 = arith.constant 2 : i32
    %45 = vector.broadcast %c2_i32_22 : i32 to vector<8x1xi32>
    %46 = arith.cmpi sge, %17, %45 : vector<8x1xi32>
    %c4_i32 = arith.constant 4 : i32
    %47 = vector.broadcast %c4_i32 : i32 to vector<8x1xi32>
    %48 = arith.cmpi slt, %17, %47 : vector<8x1xi32>
    %49 = arith.andi %46, %48 : vector<8x1xi1>
    %cst_23 = arith.constant 0.000000e+00 : f32
    %50 = vector.shape_cast %49 : vector<8x1xi1> to vector<8x1xi1>
    %51 = vector.broadcast %50 : vector<8x1xi1> to vector<8x2xi1>
    %52 = vector.broadcast %cst_23 : f32 to vector<8x2xf32>
    %53 = arith.select %51, %16, %52 : vector<8x2xi1>, vector<8x2xf32>
    %cst_24 = arith.constant dense<0.000000e+00> : vector<2xf32>
    %54 = vector.multi_reduction <add>, %53, %cst_24 [0] : vector<8x2xf32> to vector<2xf32>
    %55 = vector.shape_cast %54 : vector<2xf32> to vector<1x2xf32>
    %56 = vector.extract_strided_slice %55 {offsets = [0, 0], sizes = [1, 1], strides = [1, 1]} : vector<1x2xf32> to vector<1x1xf32>
    %57 = vector.extract %56[0, 0] : f32 from vector<1x1xf32>
    %cst_25 = arith.constant 0.001953125 : f32
    %58 = arith.mulf %57, %cst_25 : f32
    %59 = vector.extract_strided_slice %55 {offsets = [0, 1], sizes = [1, 1], strides = [1, 1]} : vector<1x2xf32> to vector<1x1xf32>
    %60 = vector.extract %59[0, 0] : f32 from vector<1x1xf32>
    %cst_26 = arith.constant 0.001953125 : f32
    %61 = arith.mulf %60, %cst_26 : f32
    %62 = arith.mulf %58, %58 : f32
    %63 = arith.subf %61, %62 : f32
    %cst_27 = arith.constant 9.99999974E-6 : f32
    %64 = arith.addf %63, %cst_27 : f32
    %65 = math.rsqrt %64 : f32
    %66 = vector.broadcast %58 : f32 to vector<8x1xf32>
    %67 = arith.select %49, %66, %42 : vector<8x1xi1>, vector<8x1xf32>
    %68 = vector.broadcast %65 : f32 to vector<8x1xf32>
    %69 = arith.select %49, %68, %44 : vector<8x1xi1>, vector<8x1xf32>
    %c4_i32_28 = arith.constant 4 : i32
    %70 = vector.broadcast %c4_i32_28 : i32 to vector<8x1xi32>
    %71 = arith.cmpi sge, %17, %70 : vector<8x1xi32>
    %c6_i32 = arith.constant 6 : i32
    %72 = vector.broadcast %c6_i32 : i32 to vector<8x1xi32>
    %73 = arith.cmpi slt, %17, %72 : vector<8x1xi32>
    %74 = arith.andi %71, %73 : vector<8x1xi1>
    %cst_29 = arith.constant 0.000000e+00 : f32
    %75 = vector.shape_cast %74 : vector<8x1xi1> to vector<8x1xi1>
    %76 = vector.broadcast %75 : vector<8x1xi1> to vector<8x2xi1>
    %77 = vector.broadcast %cst_29 : f32 to vector<8x2xf32>
    %78 = arith.select %76, %16, %77 : vector<8x2xi1>, vector<8x2xf32>
    %cst_30 = arith.constant dense<0.000000e+00> : vector<2xf32>
    %79 = vector.multi_reduction <add>, %78, %cst_30 [0] : vector<8x2xf32> to vector<2xf32>
    %80 = vector.shape_cast %79 : vector<2xf32> to vector<1x2xf32>
    %81 = vector.extract_strided_slice %80 {offsets = [0, 0], sizes = [1, 1], strides = [1, 1]} : vector<1x2xf32> to vector<1x1xf32>
    %82 = vector.extract %81[0, 0] : f32 from vector<1x1xf32>
    %cst_31 = arith.constant 0.001953125 : f32
    %83 = arith.mulf %82, %cst_31 : f32
    %84 = vector.extract_strided_slice %80 {offsets = [0, 1], sizes = [1, 1], strides = [1, 1]} : vector<1x2xf32> to vector<1x1xf32>
    %85 = vector.extract %84[0, 0] : f32 from vector<1x1xf32>
    %cst_32 = arith.constant 0.001953125 : f32
    %86 = arith.mulf %85, %cst_32 : f32
    %87 = arith.mulf %83, %83 : f32
    %88 = arith.subf %86, %87 : f32
    %cst_33 = arith.constant 9.99999974E-6 : f32
    %89 = arith.addf %88, %cst_33 : f32
    %90 = math.rsqrt %89 : f32
    %91 = vector.broadcast %83 : f32 to vector<8x1xf32>
    %92 = arith.select %74, %91, %67 : vector<8x1xi1>, vector<8x1xf32>
    %93 = vector.broadcast %90 : f32 to vector<8x1xf32>
    %94 = arith.select %74, %93, %69 : vector<8x1xi1>, vector<8x1xf32>
    %c6_i32_34 = arith.constant 6 : i32
    %95 = vector.broadcast %c6_i32_34 : i32 to vector<8x1xi32>
    %96 = arith.cmpi sge, %17, %95 : vector<8x1xi32>
    %c8_i32 = arith.constant 8 : i32
    %97 = vector.broadcast %c8_i32 : i32 to vector<8x1xi32>
    %98 = arith.cmpi slt, %17, %97 : vector<8x1xi32>
    %99 = arith.andi %96, %98 : vector<8x1xi1>
    %cst_35 = arith.constant 0.000000e+00 : f32
    %100 = vector.shape_cast %99 : vector<8x1xi1> to vector<8x1xi1>
    %101 = vector.broadcast %100 : vector<8x1xi1> to vector<8x2xi1>
    %102 = vector.broadcast %cst_35 : f32 to vector<8x2xf32>
    %103 = arith.select %101, %16, %102 : vector<8x2xi1>, vector<8x2xf32>
    %cst_36 = arith.constant dense<0.000000e+00> : vector<2xf32>
    %104 = vector.multi_reduction <add>, %103, %cst_36 [0] : vector<8x2xf32> to vector<2xf32>
    %105 = vector.shape_cast %104 : vector<2xf32> to vector<1x2xf32>
    %106 = vector.extract_strided_slice %105 {offsets = [0, 0], sizes = [1, 1], strides = [1, 1]} : vector<1x2xf32> to vector<1x1xf32>
    %107 = vector.extract %106[0, 0] : f32 from vector<1x1xf32>
    %cst_37 = arith.constant 0.001953125 : f32
    %108 = arith.mulf %107, %cst_37 : f32
    %109 = vector.extract_strided_slice %105 {offsets = [0, 1], sizes = [1, 1], strides = [1, 1]} : vector<1x2xf32> to vector<1x1xf32>
    %110 = vector.extract %109[0, 0] : f32 from vector<1x1xf32>
    %cst_38 = arith.constant 0.001953125 : f32
    %111 = arith.mulf %110, %cst_38 : f32
    %112 = arith.mulf %108, %108 : f32
    %113 = arith.subf %111, %112 : f32
    %cst_39 = arith.constant 9.99999974E-6 : f32
    %114 = arith.addf %113, %cst_39 : f32
    %115 = math.rsqrt %114 : f32
    %116 = vector.broadcast %108 : f32 to vector<8x1xf32>
    %117 = arith.select %99, %116, %92 : vector<8x1xi1>, vector<8x1xf32>
    %118 = vector.broadcast %115 : f32 to vector<8x1xf32>
    %119 = arith.select %99, %118, %94 : vector<8x1xi1>, vector<8x1xf32>
    %120 = vector.broadcast %117 : vector<8x1xf32> to vector<8x342xf32>
    %121 = arith.subf %10, %120 : vector<8x342xf32>
    %122 = vector.broadcast %119 : vector<8x1xf32> to vector<8x342xf32>
    %123 = arith.mulf %121, %122 : vector<8x342xf32>
    %124 = vector.broadcast %2 : vector<8x1xf32> to vector<8x342xf32>
    %125 = arith.mulf %123, %124 : vector<8x342xf32>
    %126 = vector.broadcast %3 : vector<8x1xf32> to vector<8x342xf32>
    %127 = arith.addf %125, %126 : vector<8x342xf32>
    %cst_40 = arith.constant 0.000000e+00 : f32
    %128 = vector.broadcast %cst_40 : f32 to vector<8x342xf32>
    %129 = arith.subf %128, %127 : vector<8x342xf32>
    %130 = math.exp %129 : vector<8x342xf32>
    %cst_41 = arith.constant 1.000000e+00 : f32
    %131 = vector.broadcast %cst_41 : f32 to vector<8x342xf32>
    %132 = arith.addf %131, %130 : vector<8x342xf32>
    %133 = tpu.reciprocal %132 {approx = true} : vector<8x342xf32> -> vector<8x342xf32>
    %134 = arith.mulf %127, %133 : vector<8x342xf32>
    %135 = vector.broadcast %0 : vector<1x342xf32> to vector<8x342xf32>
    %136 = arith.mulf %134, %135 : vector<8x342xf32>
    %137 = arith.truncf %136 : vector<8x342xf32> to vector<8x342xbf16>
    %c0_42 = arith.constant 0 : index
    %c0_43 = arith.constant 0 : index
    %c0_44 = arith.constant 0 : index
    %138 = vector.load %arg9[%c0_42, %c0_43, %c0_44] : memref<2x8x342xbf16, #tpu.memory_space<vmem>>, vector<1x8x342xbf16>
    %139 = vector.shape_cast %138 : vector<1x8x342xbf16> to vector<8x342xbf16>
    %140 = vector.shape_cast %137 : vector<8x342xbf16> to vector<1x8x342xbf16>
    tpu.vector_store %arg9[%c0_42, %c0_43, %c0_44], %140 {strides = array<i32>} : memref<2x8x342xbf16, #tpu.memory_space<vmem>>, vector<1x8x342xbf16>,
    %c0_45 = arith.constant 0 : index
    %c0_46 = arith.constant 0 : index
    %141 = vector.load %arg6[%c0_45, %c0_46] : memref<16x72xbf16, #tpu.memory_space<vmem>>, vector<16x8xbf16>
    %c0_47 = arith.constant 0 : index
    %c0_48 = arith.constant 0 : index
    %c0_49 = arith.constant 0 : index
    %142 = vector.load %arg9[%c0_47, %c0_48, %c0_49] : memref<2x8x342xbf16, #tpu.memory_space<vmem>>, vector<1x8x288xbf16>
    %143 = vector.shape_cast %142 : vector<1x8x288xbf16> to vector<8x288xbf16>
    %c0_50 = arith.constant 0 : index
    %c8 = arith.constant 8 : index
    %144 = vector.load %arg6[%c0_50, %c8] : memref<16x72xbf16, #tpu.memory_space<vmem>>, vector<16x8xbf16>
    %c0_51 = arith.constant 0 : index
    %c0_52 = arith.constant 0 : index
    %c1_53 = arith.constant 1 : index
    %145 = vector.load %arg9[%c0_51, %c0_52, %c1_53] : memref<2x8x342xbf16, #tpu.memory_space<vmem>>, vector<1x8x288xbf16>
    %146 = vector.shape_cast %145 : vector<1x8x288xbf16> to vector<8x288xbf16>
    %c0_54 = arith.constant 0 : index
    %c16 = arith.constant 16 : index
    %147 = vector.load %arg6[%c0_54, %c16] : memref<16x72xbf16, #tpu.memory_space<vmem>>, vector<16x8xbf16>
    %c0_55 = arith.constant 0 : index
    %c0_56 = arith.constant 0 : index
    %c2_57 = arith.constant 2 : index
    %148 = vector.load %arg9[%c0_55, %c0_56, %c2_57] : memref<2x8x342xbf16, #tpu.memory_space<vmem>>, vector<1x8x288xbf16>
    %149 = vector.shape_cast %148 : vector<1x8x288xbf16> to vector<8x288xbf16>
    %cst_58 = arith.constant dense<0.000000e+00> : vector<16x288xf32>
    %150 = tpu.matmul %141, %143, %cst_58 {dimension_numbers = #tpu.dot_dimension_numbers<[1], [0], [0], [1], [0, 0, 1, 1], [], []>} : vector<16x8xbf16>, vector<8x288xbf16>, vector<16x288xf32> -> vector<16x288xf32>
    %cst_59 = arith.constant dense<0.000000e+00> : vector<16x288xf32>
    %151 = tpu.matmul %144, %146, %cst_59 {dimension_numbers = #tpu.dot_dimension_numbers<[1], [0], [0], [1], [0, 0, 1, 1], [], []>} : vector<16x8xbf16>, vector<8x288xbf16>, vector<16x288xf32> -> vector<16x288xf32>
    %152 = arith.addf %150, %151 : vector<16x288xf32>
    %cst_60 = arith.constant dense<0.000000e+00> : vector<16x288xf32>
    %153 = tpu.matmul %147, %149, %cst_60 {dimension_numbers = #tpu.dot_dimension_numbers<[1], [0], [0], [1], [0, 0, 1, 1], [], []>} : vector<16x8xbf16>, vector<8x288xbf16>, vector<16x288xf32> -> vector<16x288xf32>
    %154 = arith.addf %152, %153 : vector<16x288xf32>
    %c0_61 = arith.constant 0 : index
    %c24 = arith.constant 24 : index
    %155 = vector.load %arg6[%c0_61, %c24] : memref<16x72xbf16, #tpu.memory_space<vmem>>, vector<16x8xbf16>
    %c0_62 = arith.constant 0 : index
    %c0_63 = arith.constant 0 : index
    %c18 = arith.constant 18 : index
    %156 = vector.load %arg9[%c0_62, %c0_63, %c18] : memref<2x8x342xbf16, #tpu.memory_space<vmem>>, vector<1x8x288xbf16>
    %157 = vector.shape_cast %156 : vector<1x8x288xbf16> to vector<8x288xbf16>
    %c0_64 = arith.constant 0 : index
    %c32 = arith.constant 32 : index
    %158 = vector.load %arg6[%c0_64, %c32] : memref<16x72xbf16, #tpu.memory_space<vmem>>, vector<16x8xbf16>
    %c0_65 = arith.constant 0 : index
    %c0_66 = arith.constant 0 : index
    %c19 = arith.constant 19 : index
    %159 = vector.load %arg9[%c0_65, %c0_66, %c19] : memref<2x8x342xbf16, #tpu.memory_space<vmem>>, vector<1x8x288xbf16>
    %160 = vector.shape_cast %159 : vector<1x8x288xbf16> to vector<8x288xbf16>
    %c0_67 = arith.constant 0 : index
    %c40 = arith.constant 40 : index
    %161 = vector.load %arg6[%c0_67, %c40] : memref<16x72xbf16, #tpu.memory_space<vmem>>, vector<16x8xbf16>
    %c0_68 = arith.constant 0 : index
    %c0_69 = arith.constant 0 : index
    %c20 = arith.constant 20 : index
    %162 = vector.load %arg9[%c0_68, %c0_69, %c20] : memref<2x8x342xbf16, #tpu.memory_space<vmem>>, vector<1x8x288xbf16>
    %163 = vector.shape_cast %162 : vector<1x8x288xbf16> to vector<8x288xbf16>
    %cst_70 = arith.constant dense<0.000000e+00> : vector<16x288xf32>
    %164 = tpu.matmul %155, %157, %cst_70 {dimension_numbers = #tpu.dot_dimension_numbers<[1], [0], [0], [1], [0, 0, 1, 1], [], []>} : vector<16x8xbf16>, vector<8x288xbf16>, vector<16x288xf32> -> vector<16x288xf32>
    %165 = arith.addf %154, %164 : vector<16x288xf32>
    %cst_71 = arith.constant dense<0.000000e+00> : vector<16x288xf32>
    %166 = tpu.matmul %158, %160, %cst_71 {dimension_numbers = #tpu.dot_dimension_numbers<[1], [0], [0], [1], [0, 0, 1, 1], [], []>} : vector<16x8xbf16>, vector<8x288xbf16>, vector<16x288xf32> -> vector<16x288xf32>
    %167 = arith.addf %165, %166 : vector<16x288xf32>
    %cst_72 = arith.constant dense<0.000000e+00> : vector<16x288xf32>
    %168 = tpu.matmul %161, %163, %cst_72 {dimension_numbers = #tpu.dot_dimension_numbers<[1], [0], [0], [1], [0, 0, 1, 1], [], []>} : vector<16x8xbf16>, vector<8x288xbf16>, vector<16x288xf32> -> vector<16x288xf32>
    %169 = arith.addf %167, %168 : vector<16x288xf32>
    %c0_73 = arith.constant 0 : index
    %c48 = arith.constant 48 : index
    %170 = vector.load %arg6[%c0_73, %c48] : memref<16x72xbf16, #tpu.memory_space<vmem>>, vector<16x8xbf16>
    %c0_74 = arith.constant 0 : index
    %c0_75 = arith.constant 0 : index
    %c36 = arith.constant 36 : index
    %171 = vector.load %arg9[%c0_74, %c0_75, %c36] : memref<2x8x342xbf16, #tpu.memory_space<vmem>>, vector<1x8x288xbf16>
    %172 = vector.shape_cast %171 : vector<1x8x288xbf16> to vector<8x288xbf16>
    %c0_76 = arith.constant 0 : index
    %c56 = arith.constant 56 : index
    %173 = vector.load %arg6[%c0_76, %c56] : memref<16x72xbf16, #tpu.memory_space<vmem>>, vector<16x8xbf16>
    %c0_77 = arith.constant 0 : index
    %c0_78 = arith.constant 0 : index
    %c37 = arith.constant 37 : index
    %174 = vector.load %arg9[%c0_77, %c0_78, %c37] : memref<2x8x342xbf16, #tpu.memory_space<vmem>>, vector<1x8x288xbf16>
    %175 = vector.shape_cast %174 : vector<1x8x288xbf16> to vector<8x288xbf16>
    %c0_79 = arith.constant 0 : index
    %c64 = arith.constant 64 : index
    %176 = vector.load %arg6[%c0_79, %c64] : memref<16x72xbf16, #tpu.memory_space<vmem>>, vector<16x8xbf16>
    %c0_80 = arith.constant 0 : index
    %c0_81 = arith.constant 0 : index
    %c38 = arith.constant 38 : index
    %177 = vector.load %arg9[%c0_80, %c0_81, %c38] : memref<2x8x342xbf16, #tpu.memory_space<vmem>>, vector<1x8x288xbf16>
    %178 = vector.shape_cast %177 : vector<1x8x288xbf16> to vector<8x288xbf16>
    %cst_82 = arith.constant dense<0.000000e+00> : vector<16x288xf32>
    %179 = tpu.matmul %170, %172, %cst_82 {dimension_numbers = #tpu.dot_dimension_numbers<[1], [0], [0], [1], [0, 0, 1, 1], [], []>} : vector<16x8xbf16>, vector<8x288xbf16>, vector<16x288xf32> -> vector<16x288xf32>
    %180 = arith.addf %169, %179 : vector<16x288xf32>
    %cst_83 = arith.constant dense<0.000000e+00> : vector<16x288xf32>
    %181 = tpu.matmul %173, %175, %cst_83 {dimension_numbers = #tpu.dot_dimension_numbers<[1], [0], [0], [1], [0, 0, 1, 1], [], []>} : vector<16x8xbf16>, vector<8x288xbf16>, vector<16x288xf32> -> vector<16x288xf32>
    %182 = arith.addf %180, %181 : vector<16x288xf32>
    %cst_84 = arith.constant dense<0.000000e+00> : vector<16x288xf32>
    %183 = tpu.matmul %176, %178, %cst_84 {dimension_numbers = #tpu.dot_dimension_numbers<[1], [0], [0], [1], [0, 0, 1, 1], [], []>} : vector<16x8xbf16>, vector<8x288xbf16>, vector<16x288xf32> -> vector<16x288xf32>
    %184 = arith.addf %182, %183 : vector<16x288xf32>
    %c0_85 = arith.constant 0 : index
    %c0_86 = arith.constant 0 : index
    %c0_87 = arith.constant 0 : index
    %185 = vector.load %arg2[%c0_85, %c0_86, %c0_87] : memref<2x16x1xf32, #tpu.memory_space<vmem>>, vector<1x16x1xf32>
    %186 = vector.shape_cast %185 : vector<1x16x1xf32> to vector<16x1xf32>
    %187 = vector.broadcast %186 : vector<16x1xf32> to vector<16x288xf32>
    %188 = arith.addf %184, %187 : vector<16x288xf32>
    %189 = vector.broadcast %1 : vector<1x288xf32> to vector<16x288xf32>
    %190 = arith.mulf %188, %189 : vector<16x288xf32>
    %cst_88 = arith.constant dense<0.000000e+00> : vector<16xf32>
    %191 = vector.multi_reduction <add>, %190, %cst_88 [1] : vector<16x288xf32> to vector<16xf32>
    %192 = vector.shape_cast %191 : vector<16xf32> to vector<16x1xf32>
    %193 = arith.mulf %190, %190 : vector<16x288xf32>
    %cst_89 = arith.constant dense<0.000000e+00> : vector<16xf32>
    %194 = vector.multi_reduction <add>, %193, %cst_89 [1] : vector<16x288xf32> to vector<16xf32>
    %195 = vector.shape_cast %194 : vector<16xf32> to vector<16x1xf32>
    %196 = tpu.concatenate %192, %195 in 1 : vector<16x1xf32>, vector<16x1xf32> -> vector<16x2xf32>
    %197 = tpu.iota {dimensions = array<i32: 0>} : vector<16x1xi32>
    %cst_90 = arith.constant 0.000000e+00 : f32
    %198 = vector.broadcast %cst_90 : f32 to vector<16x1xf32>
    %cst_91 = arith.constant 0.000000e+00 : f32
    %199 = vector.broadcast %cst_91 : f32 to vector<16x1xf32>
    %c0_i32_92 = arith.constant 0 : i32
    %200 = vector.broadcast %c0_i32_92 : i32 to vector<16x1xi32>
    %201 = arith.cmpi sge, %197, %200 : vector<16x1xi32>
    %c4_i32_93 = arith.constant 4 : i32
    %202 = vector.broadcast %c4_i32_93 : i32 to vector<16x1xi32>
    %203 = arith.cmpi slt, %197, %202 : vector<16x1xi32>
    %204 = arith.andi %201, %203 : vector<16x1xi1>
    %cst_94 = arith.constant 0.000000e+00 : f32
    %205 = vector.shape_cast %204 : vector<16x1xi1> to vector<16x1xi1>
    %206 = vector.broadcast %205 : vector<16x1xi1> to vector<16x2xi1>
    %207 = vector.broadcast %cst_94 : f32 to vector<16x2xf32>
    %208 = arith.select %206, %196, %207 : vector<16x2xi1>, vector<16x2xf32>
    %cst_95 = arith.constant dense<0.000000e+00> : vector<2xf32>
    %209 = vector.multi_reduction <add>, %208, %cst_95 [0] : vector<16x2xf32> to vector<2xf32>
    %210 = vector.shape_cast %209 : vector<2xf32> to vector<1x2xf32>
    %211 = vector.extract_strided_slice %210 {offsets = [0, 0], sizes = [1, 1], strides = [1, 1]} : vector<1x2xf32> to vector<1x1xf32>
    %212 = vector.extract %211[0, 0] : f32 from vector<1x1xf32>
    %cst_96 = arith.constant 9.765625E-4 : f32
    %213 = arith.mulf %212, %cst_96 : f32
    %214 = vector.extract_strided_slice %210 {offsets = [0, 1], sizes = [1, 1], strides = [1, 1]} : vector<1x2xf32> to vector<1x1xf32>
    %215 = vector.extract %214[0, 0] : f32 from vector<1x1xf32>
    %cst_97 = arith.constant 9.765625E-4 : f32
    %216 = arith.mulf %215, %cst_97 : f32
    %217 = arith.mulf %213, %213 : f32
    %218 = arith.subf %216, %217 : f32
    %cst_98 = arith.constant 9.99999974E-6 : f32
    %219 = arith.addf %218, %cst_98 : f32
    %220 = math.rsqrt %219 : f32
    %221 = vector.broadcast %213 : f32 to vector<16x1xf32>
    %222 = arith.select %204, %221, %198 : vector<16x1xi1>, vector<16x1xf32>
    %223 = vector.broadcast %220 : f32 to vector<16x1xf32>
    %224 = arith.select %204, %223, %199 : vector<16x1xi1>, vector<16x1xf32>
    %c4_i32_99 = arith.constant 4 : i32
    %225 = vector.broadcast %c4_i32_99 : i32 to vector<16x1xi32>
    %226 = arith.cmpi sge, %197, %225 : vector<16x1xi32>
    %c8_i32_100 = arith.constant 8 : i32
    %227 = vector.broadcast %c8_i32_100 : i32 to vector<16x1xi32>
    %228 = arith.cmpi slt, %197, %227 : vector<16x1xi32>
    %229 = arith.andi %226, %228 : vector<16x1xi1>
    %cst_101 = arith.constant 0.000000e+00 : f32
    %230 = vector.shape_cast %229 : vector<16x1xi1> to vector<16x1xi1>
    %231 = vector.broadcast %230 : vector<16x1xi1> to vector<16x2xi1>
    %232 = vector.broadcast %cst_101 : f32 to vector<16x2xf32>
    %233 = arith.select %231, %196, %232 : vector<16x2xi1>, vector<16x2xf32>
    %cst_102 = arith.constant dense<0.000000e+00> : vector<2xf32>
    %234 = vector.multi_reduction <add>, %233, %cst_102 [0] : vector<16x2xf32> to vector<2xf32>
    %235 = vector.shape_cast %234 : vector<2xf32> to vector<1x2xf32>
    %236 = vector.extract_strided_slice %235 {offsets = [0, 0], sizes = [1, 1], strides = [1, 1]} : vector<1x2xf32> to vector<1x1xf32>
    %237 = vector.extract %236[0, 0] : f32 from vector<1x1xf32>
    %cst_103 = arith.constant 9.765625E-4 : f32
    %238 = arith.mulf %237, %cst_103 : f32
    %239 = vector.extract_strided_slice %235 {offsets = [0, 1], sizes = [1, 1], strides = [1, 1]} : vector<1x2xf32> to vector<1x1xf32>
    %240 = vector.extract %239[0, 0] : f32 from vector<1x1xf32>
    %cst_104 = arith.constant 9.765625E-4 : f32
    %241 = arith.mulf %240, %cst_104 : f32
    %242 = arith.mulf %238, %238 : f32
    %243 = arith.subf %241, %242 : f32
    %cst_105 = arith.constant 9.99999974E-6 : f32
    %244 = arith.addf %243, %cst_105 : f32
    %245 = math.rsqrt %244 : f32
    %246 = vector.broadcast %238 : f32 to vector<16x1xf32>
    %247 = arith.select %229, %246, %222 : vector<16x1xi1>, vector<16x1xf32>
    %248 = vector.broadcast %245 : f32 to vector<16x1xf32>
    %249 = arith.select %229, %248, %224 : vector<16x1xi1>, vector<16x1xf32>
    %c8_i32_106 = arith.constant 8 : i32
    %250 = vector.broadcast %c8_i32_106 : i32 to vector<16x1xi32>
    %251 = arith.cmpi sge, %197, %250 : vector<16x1xi32>
    %c12_i32 = arith.constant 12 : i32
    %252 = vector.broadcast %c12_i32 : i32 to vector<16x1xi32>
    %253 = arith.cmpi slt, %197, %252 : vector<16x1xi32>
    %254 = arith.andi %251, %253 : vector<16x1xi1>
    %cst_107 = arith.constant 0.000000e+00 : f32
    %255 = vector.shape_cast %254 : vector<16x1xi1> to vector<16x1xi1>
    %256 = vector.broadcast %255 : vector<16x1xi1> to vector<16x2xi1>
    %257 = vector.broadcast %cst_107 : f32 to vector<16x2xf32>
    %258 = arith.select %256, %196, %257 : vector<16x2xi1>, vector<16x2xf32>
    %cst_108 = arith.constant dense<0.000000e+00> : vector<2xf32>
    %259 = vector.multi_reduction <add>, %258, %cst_108 [0] : vector<16x2xf32> to vector<2xf32>
    %260 = vector.shape_cast %259 : vector<2xf32> to vector<1x2xf32>
    %261 = vector.extract_strided_slice %260 {offsets = [0, 0], sizes = [1, 1], strides = [1, 1]} : vector<1x2xf32> to vector<1x1xf32>
    %262 = vector.extract %261[0, 0] : f32 from vector<1x1xf32>
    %cst_109 = arith.constant 9.765625E-4 : f32
    %263 = arith.mulf %262, %cst_109 : f32
    %264 = vector.extract_strided_slice %260 {offsets = [0, 1], sizes = [1, 1], strides = [1, 1]} : vector<1x2xf32> to vector<1x1xf32>
    %265 = vector.extract %264[0, 0] : f32 from vector<1x1xf32>
    %cst_110 = arith.constant 9.765625E-4 : f32
    %266 = arith.mulf %265, %cst_110 : f32
    %267 = arith.mulf %263, %263 : f32
    %268 = arith.subf %266, %267 : f32
    %cst_111 = arith.constant 9.99999974E-6 : f32
    %269 = arith.addf %268, %cst_111 : f32
    %270 = math.rsqrt %269 : f32
    %271 = vector.broadcast %263 : f32 to vector<16x1xf32>
    %272 = arith.select %254, %271, %247 : vector<16x1xi1>, vector<16x1xf32>
    %273 = vector.broadcast %270 : f32 to vector<16x1xf32>
    %274 = arith.select %254, %273, %249 : vector<16x1xi1>, vector<16x1xf32>
    %c12_i32_112 = arith.constant 12 : i32
    %275 = vector.broadcast %c12_i32_112 : i32 to vector<16x1xi32>
    %276 = arith.cmpi sge, %197, %275 : vector<16x1xi32>
    %c16_i32 = arith.constant 16 : i32
    %277 = vector.broadcast %c16_i32 : i32 to vector<16x1xi32>
    %278 = arith.cmpi slt, %197, %277 : vector<16x1xi32>
    %279 = arith.andi %276, %278 : vector<16x1xi1>
    %cst_113 = arith.constant 0.000000e+00 : f32
    %280 = vector.shape_cast %279 : vector<16x1xi1> to vector<16x1xi1>
    %281 = vector.broadcast %280 : vector<16x1xi1> to vector<16x2xi1>
    %282 = vector.broadcast %cst_113 : f32 to vector<16x2xf32>
    %283 = arith.select %281, %196, %282 : vector<16x2xi1>, vector<16x2xf32>
    %cst_114 = arith.constant dense<0.000000e+00> : vector<2xf32>
    %284 = vector.multi_reduction <add>, %283, %cst_114 [0] : vector<16x2xf32> to vector<2xf32>
    %285 = vector.shape_cast %284 : vector<2xf32> to vector<1x2xf32>
    %286 = vector.extract_strided_slice %285 {offsets = [0, 0], sizes = [1, 1], strides = [1, 1]} : vector<1x2xf32> to vector<1x1xf32>
    %287 = vector.extract %286[0, 0] : f32 from vector<1x1xf32>
    %cst_115 = arith.constant 9.765625E-4 : f32
    %288 = arith.mulf %287, %cst_115 : f32
    %289 = vector.extract_strided_slice %285 {offsets = [0, 1], sizes = [1, 1], strides = [1, 1]} : vector<1x2xf32> to vector<1x1xf32>
    %290 = vector.extract %289[0, 0] : f32 from vector<1x1xf32>
    %cst_116 = arith.constant 9.765625E-4 : f32
    %291 = arith.mulf %290, %cst_116 : f32
    %292 = arith.mulf %288, %288 : f32
    %293 = arith.subf %291, %292 : f32
    %cst_117 = arith.constant 9.99999974E-6 : f32
    %294 = arith.addf %293, %cst_117 : f32
    %295 = math.rsqrt %294 : f32
    %296 = vector.broadcast %288 : f32 to vector<16x1xf32>
    %297 = arith.select %279, %296, %272 : vector<16x1xi1>, vector<16x1xf32>
    %298 = vector.broadcast %295 : f32 to vector<16x1xf32>
    %299 = arith.select %279, %298, %274 : vector<16x1xi1>, vector<16x1xf32>
    %300 = vector.broadcast %297 : vector<16x1xf32> to vector<16x288xf32>
    %301 = arith.subf %190, %300 : vector<16x288xf32>
    %302 = vector.broadcast %299 : vector<16x1xf32> to vector<16x288xf32>
    %303 = arith.mulf %301, %302 : vector<16x288xf32>
    %304 = vector.broadcast %4 : vector<16x1xf32> to vector<16x288xf32>
    %305 = arith.mulf %303, %304 : vector<16x288xf32>
    %306 = vector.broadcast %5 : vector<16x1xf32> to vector<16x288xf32>
    %307 = arith.addf %305, %306 : vector<16x288xf32>
    %cst_118 = arith.constant 0.000000e+00 : f32
    %308 = vector.broadcast %cst_118 : f32 to vector<16x288xf32>
    %309 = arith.subf %308, %307 : vector<16x288xf32>
    %310 = math.exp %309 : vector<16x288xf32>
    %cst_119 = arith.constant 1.000000e+00 : f32
    %311 = vector.broadcast %cst_119 : f32 to vector<16x288xf32>
    %312 = arith.addf %311, %310 : vector<16x288xf32>
    %313 = tpu.reciprocal %312 {approx = true} : vector<16x288xf32> -> vector<16x288xf32>
    %314 = arith.mulf %307, %313 : vector<16x288xf32>
    %315 = vector.broadcast %1 : vector<1x288xf32> to vector<16x288xf32>
    %316 = arith.mulf %314, %315 : vector<16x288xf32>
    %c0_120 = arith.constant 0 : index
    %c0_121 = arith.constant 0 : index
    %c0_122 = arith.constant 0 : index
    %317 = vector.load %arg10[%c0_120, %c0_121, %c0_122] : memref<2x16x342xbf16, #tpu.memory_space<vmem>>, vector<1x16x19xbf16>
    %318 = vector.shape_cast %317 : vector<1x16x19xbf16> to vector<16x19xbf16>
    %319 = vector.shape_cast %7 : vector<16x19xbf16> to vector<1x16x19xbf16>
    tpu.vector_store %arg10[%c0_120, %c0_121, %c0_122], %319 {strides = array<i32>} : memref<2x16x342xbf16, #tpu.memory_space<vmem>>, vector<1x16x19xbf16>,
    %c0_123 = arith.constant 0 : index
    %c0_124 = arith.constant 0 : index
    %c307 = arith.constant 307 : index
    %320 = vector.load %arg10[%c0_123, %c0_124, %c307] : memref<2x16x342xbf16, #tpu.memory_space<vmem>>, vector<1x16x35xbf16>
    %321 = vector.shape_cast %320 : vector<1x16x35xbf16> to vector<16x35xbf16>
    %322 = vector.shape_cast %8 : vector<16x35xbf16> to vector<1x16x35xbf16>
    tpu.vector_store %arg10[%c0_123, %c0_124, %c307], %322 {strides = array<i32>} : memref<2x16x342xbf16, #tpu.memory_space<vmem>>, vector<1x16x35xbf16>,
    %323 = arith.truncf %316 : vector<16x288xf32> to vector<16x288xbf16>
    %c0_125 = arith.constant 0 : index
    %c0_126 = arith.constant 0 : index
    %c19_127 = arith.constant 19 : index
    %324 = vector.load %arg10[%c0_125, %c0_126, %c19_127] : memref<2x16x342xbf16, #tpu.memory_space<vmem>>, vector<1x16x288xbf16>
    %325 = vector.shape_cast %324 : vector<1x16x288xbf16> to vector<16x288xbf16>
    %326 = vector.shape_cast %323 : vector<16x288xbf16> to vector<1x16x288xbf16>
    tpu.vector_store %arg10[%c0_125, %c0_126, %c19_127], %326 {strides = array<i32>} : memref<2x16x342xbf16, #tpu.memory_space<vmem>>, vector<1x16x288xbf16>,
    %c0_128 = arith.constant 0 : index
    %c0_129 = arith.constant 0 : index
    %c0_130 = arith.constant 0 : index
    %327 = vector.load %arg10[%c0_128, %c0_129, %c0_130] : memref<2x16x342xbf16, #tpu.memory_space<vmem>>, vector<1x16x288xbf16>
    %328 = vector.shape_cast %327 : vector<1x16x288xbf16> to vector<16x288xbf16>
    %c0_131 = arith.constant 0 : index
    %c0_132 = arith.constant 0 : index
    %c1_133 = arith.constant 1 : index
    %329 = vector.load %arg10[%c0_131, %c0_132, %c1_133] : memref<2x16x342xbf16, #tpu.memory_space<vmem>>, vector<1x16x288xbf16>
    %330 = vector.shape_cast %329 : vector<1x16x288xbf16> to vector<16x288xbf16>
    %c0_134 = arith.constant 0 : index
    %c0_135 = arith.constant 0 : index
    %c2_136 = arith.constant 2 : index
    %331 = vector.load %arg10[%c0_134, %c0_135, %c2_136] : memref<2x16x342xbf16, #tpu.memory_space<vmem>>, vector<1x16x288xbf16>
    %332 = vector.shape_cast %331 : vector<1x16x288xbf16> to vector<16x288xbf16>
    %333 = tpu.concatenate %328, %330, %332 in 0 : vector<16x288xbf16>, vector<16x288xbf16>, vector<16x288xbf16> -> vector<48x288xbf16>
    %c0_137 = arith.constant 0 : index
    %c0_138 = arith.constant 0 : index
    %334 = vector.load %arg7[%c0_137, %c0_138] : memref<16x152xbf16, #tpu.memory_space<vmem>>, vector<16x48xbf16>
    %cst_139 = arith.constant dense<0.000000e+00> : vector<16x288xf32>
    %335 = tpu.matmul %334, %333, %cst_139 {dimension_numbers = #tpu.dot_dimension_numbers<[1], [0], [0], [1], [0, 0, 1, 1], [], []>} : vector<16x48xbf16>, vector<48x288xbf16>, vector<16x288xf32> -> vector<16x288xf32>
    %c0_140 = arith.constant 0 : index
    %c0_141 = arith.constant 0 : index
    %c18_142 = arith.constant 18 : index
    %336 = vector.load %arg10[%c0_140, %c0_141, %c18_142] : memref<2x16x342xbf16, #tpu.memory_space<vmem>>, vector<1x16x288xbf16>
    %337 = vector.shape_cast %336 : vector<1x16x288xbf16> to vector<16x288xbf16>
    %c0_143 = arith.constant 0 : index
    %c0_144 = arith.constant 0 : index
    %c19_145 = arith.constant 19 : index
    %338 = vector.load %arg10[%c0_143, %c0_144, %c19_145] : memref<2x16x342xbf16, #tpu.memory_space<vmem>>, vector<1x16x288xbf16>
    %339 = vector.shape_cast %338 : vector<1x16x288xbf16> to vector<16x288xbf16>
    %c0_146 = arith.constant 0 : index
    %c0_147 = arith.constant 0 : index
    %c20_148 = arith.constant 20 : index
    %340 = vector.load %arg10[%c0_146, %c0_147, %c20_148] : memref<2x16x342xbf16, #tpu.memory_space<vmem>>, vector<1x16x288xbf16>
    %341 = vector.shape_cast %340 : vector<1x16x288xbf16> to vector<16x288xbf16>
    %342 = tpu.concatenate %337, %339, %341 in 0 : vector<16x288xbf16>, vector<16x288xbf16>, vector<16x288xbf16> -> vector<48x288xbf16>
    %c0_149 = arith.constant 0 : index
    %c48_150 = arith.constant 48 : index
    %343 = vector.load %arg7[%c0_149, %c48_150] : memref<16x152xbf16, #tpu.memory_space<vmem>>, vector<16x48xbf16>
    %cst_151 = arith.constant dense<0.000000e+00> : vector<16x288xf32>
    %344 = tpu.matmul %343, %342, %cst_151 {dimension_numbers = #tpu.dot_dimension_numbers<[1], [0], [0], [1], [0, 0, 1, 1], [], []>} : vector<16x48xbf16>, vector<48x288xbf16>, vector<16x288xf32> -> vector<16x288xf32>
    %345 = arith.addf %335, %344 : vector<16x288xf32>
    %c0_152 = arith.constant 0 : index
    %c0_153 = arith.constant 0 : index
    %c36_154 = arith.constant 36 : index
    %346 = vector.load %arg10[%c0_152, %c0_153, %c36_154] : memref<2x16x342xbf16, #tpu.memory_space<vmem>>, vector<1x16x288xbf16>
    %347 = vector.shape_cast %346 : vector<1x16x288xbf16> to vector<16x288xbf16>
    %c0_155 = arith.constant 0 : index
    %c0_156 = arith.constant 0 : index
    %c37_157 = arith.constant 37 : index
    %348 = vector.load %arg10[%c0_155, %c0_156, %c37_157] : memref<2x16x342xbf16, #tpu.memory_space<vmem>>, vector<1x16x288xbf16>
    %349 = vector.shape_cast %348 : vector<1x16x288xbf16> to vector<16x288xbf16>
    %c0_158 = arith.constant 0 : index
    %c0_159 = arith.constant 0 : index
    %c38_160 = arith.constant 38 : index
    %350 = vector.load %arg10[%c0_158, %c0_159, %c38_160] : memref<2x16x342xbf16, #tpu.memory_space<vmem>>, vector<1x16x288xbf16>
    %351 = vector.shape_cast %350 : vector<1x16x288xbf16> to vector<16x288xbf16>
    %352 = tpu.concatenate %347, %349, %351 in 0 : vector<16x288xbf16>, vector<16x288xbf16>, vector<16x288xbf16> -> vector<48x288xbf16>
    %c0_161 = arith.constant 0 : index
    %c96 = arith.constant 96 : index
    %353 = vector.load %arg7[%c0_161, %c96] : memref<16x152xbf16, #tpu.memory_space<vmem>>, vector<16x48xbf16>
    %cst_162 = arith.constant dense<0.000000e+00> : vector<16x288xf32>
    %354 = tpu.matmul %353, %352, %cst_162 {dimension_numbers = #tpu.dot_dimension_numbers<[1], [0], [0], [1], [0, 0, 1, 1], [], []>} : vector<16x48xbf16>, vector<48x288xbf16>, vector<16x288xf32> -> vector<16x288xf32>
    %355 = arith.addf %345, %354 : vector<16x288xf32>
    %c0_163 = arith.constant 0 : index
    %c0_164 = arith.constant 0 : index
    %c19_165 = arith.constant 19 : index
    %356 = vector.load %arg1[%c0_163, %c0_164, %c19_165] : memref<2x8x342xf32, #tpu.memory_space<vmem>>, vector<1x8x288xf32>
    %357 = vector.shape_cast %356 : vector<1x8x288xf32> to vector<8x288xf32>
    %358 = arith.truncf %357 : vector<8x288xf32> to vector<8x288xbf16>
    %c0_166 = arith.constant 0 : index
    %c144 = arith.constant 144 : index
    %359 = vector.load %arg7[%c0_166, %c144] : memref<16x152xbf16, #tpu.memory_space<vmem>>, vector<16x8xbf16>
    %cst_167 = arith.constant dense<0.000000e+00> : vector<16x288xf32>
    %360 = tpu.matmul %359, %358, %cst_167 {dimension_numbers = #tpu.dot_dimension_numbers<[1], [0], [0], [1], [0, 0, 1, 1], [], []>} : vector<16x8xbf16>, vector<8x288xbf16>, vector<16x288xf32> -> vector<16x288xf32>
    %361 = arith.addf %355, %360 : vector<16x288xf32>
    %362 = vector.broadcast %6 : vector<16x1xf32> to vector<16x288xf32>
    %363 = arith.addf %361, %362 : vector<16x288xf32>
    %c0_168 = arith.constant 0 : index
    %c0_169 = arith.constant 0 : index
    %c0_170 = arith.constant 0 : index
    %364 = vector.load %arg8[%c0_168, %c0_169, %c0_170] : memref<2x16x288xf32, #tpu.memory_space<vmem>>, vector<1x16x288xf32>
    %365 = vector.shape_cast %364 : vector<1x16x288xf32> to vector<16x288xf32>
    %366 = vector.shape_cast %363 : vector<16x288xf32> to vector<1x16x288xf32>
    tpu.vector_store %arg8[%c0_168, %c0_169, %c0_170], %366 {strides = array<i32>} : memref<2x16x288xf32, #tpu.memory_space<vmem>>, vector<1x16x288xf32>,
    %c1_171 = arith.constant 1 : index
    %c0_172 = arith.constant 0 : index
    %c0_173 = arith.constant 0 : index
    %367 = vector.load %arg1[%c1_171, %c0_172, %c0_173] : memref<2x8x342xf32, #tpu.memory_space<vmem>>, vector<1x8x342xf32>
    %368 = vector.shape_cast %367 : vector<1x8x342xf32> to vector<8x342xf32>
    %cst_174 = arith.constant dense<0.000000e+00> : vector<8xf32>
    %369 = vector.multi_reduction <add>, %368, %cst_174 [1] : vector<8x342xf32> to vector<8xf32>
    %370 = vector.shape_cast %369 : vector<8xf32> to vector<8x1xf32>
    %371 = arith.mulf %368, %368 : vector<8x342xf32>
    %cst_175 = arith.constant dense<0.000000e+00> : vector<8xf32>
    %372 = vector.multi_reduction <add>, %371, %cst_175 [1] : vector<8x342xf32> to vector<8xf32>
    %373 = vector.shape_cast %372 : vector<8xf32> to vector<8x1xf32>
    %374 = tpu.concatenate %370, %373 in 1 : vector<8x1xf32>, vector<8x1xf32> -> vector<8x2xf32>
    %375 = tpu.iota {dimensions = array<i32: 0>} : vector<8x1xi32>
    %cst_176 = arith.constant 0.000000e+00 : f32
    %376 = vector.broadcast %cst_176 : f32 to vector<8x1xf32>
    %cst_177 = arith.constant 0.000000e+00 : f32
    %377 = vector.broadcast %cst_177 : f32 to vector<8x1xf32>
    %c0_i32_178 = arith.constant 0 : i32
    %378 = vector.broadcast %c0_i32_178 : i32 to vector<8x1xi32>
    %379 = arith.cmpi sge, %375, %378 : vector<8x1xi32>
    %c2_i32_179 = arith.constant 2 : i32
    %380 = vector.broadcast %c2_i32_179 : i32 to vector<8x1xi32>
    %381 = arith.cmpi slt, %375, %380 : vector<8x1xi32>
    %382 = arith.andi %379, %381 : vector<8x1xi1>
    %cst_180 = arith.constant 0.000000e+00 : f32
    %383 = vector.shape_cast %382 : vector<8x1xi1> to vector<8x1xi1>
    %384 = vector.broadcast %383 : vector<8x1xi1> to vector<8x2xi1>
    %385 = vector.broadcast %cst_180 : f32 to vector<8x2xf32>
    %386 = arith.select %384, %374, %385 : vector<8x2xi1>, vector<8x2xf32>
    %cst_181 = arith.constant dense<0.000000e+00> : vector<2xf32>
    %387 = vector.multi_reduction <add>, %386, %cst_181 [0] : vector<8x2xf32> to vector<2xf32>
    %388 = vector.shape_cast %387 : vector<2xf32> to vector<1x2xf32>
    %389 = vector.extract_strided_slice %388 {offsets = [0, 0], sizes = [1, 1], strides = [1, 1]} : vector<1x2xf32> to vector<1x1xf32>
    %390 = vector.extract %389[0, 0] : f32 from vector<1x1xf32>
    %cst_182 = arith.constant 0.001953125 : f32
    %391 = arith.mulf %390, %cst_182 : f32
    %392 = vector.extract_strided_slice %388 {offsets = [0, 1], sizes = [1, 1], strides = [1, 1]} : vector<1x2xf32> to vector<1x1xf32>
    %393 = vector.extract %392[0, 0] : f32 from vector<1x1xf32>
    %cst_183 = arith.constant 0.001953125 : f32
    %394 = arith.mulf %393, %cst_183 : f32
    %395 = arith.mulf %391, %391 : f32
    %396 = arith.subf %394, %395 : f32
    %cst_184 = arith.constant 9.99999974E-6 : f32
    %397 = arith.addf %396, %cst_184 : f32
    %398 = math.rsqrt %397 : f32
    %399 = vector.broadcast %391 : f32 to vector<8x1xf32>
    %400 = arith.select %382, %399, %376 : vector<8x1xi1>, vector<8x1xf32>
    %401 = vector.broadcast %398 : f32 to vector<8x1xf32>
    %402 = arith.select %382, %401, %377 : vector<8x1xi1>, vector<8x1xf32>
    %c2_i32_185 = arith.constant 2 : i32
    %403 = vector.broadcast %c2_i32_185 : i32 to vector<8x1xi32>
    %404 = arith.cmpi sge, %375, %403 : vector<8x1xi32>
    %c4_i32_186 = arith.constant 4 : i32
    %405 = vector.broadcast %c4_i32_186 : i32 to vector<8x1xi32>
    %406 = arith.cmpi slt, %375, %405 : vector<8x1xi32>
    %407 = arith.andi %404, %406 : vector<8x1xi1>
    %cst_187 = arith.constant 0.000000e+00 : f32
    %408 = vector.shape_cast %407 : vector<8x1xi1> to vector<8x1xi1>
    %409 = vector.broadcast %408 : vector<8x1xi1> to vector<8x2xi1>
    %410 = vector.broadcast %cst_187 : f32 to vector<8x2xf32>
    %411 = arith.select %409, %374, %410 : vector<8x2xi1>, vector<8x2xf32>
    %cst_188 = arith.constant dense<0.000000e+00> : vector<2xf32>
    %412 = vector.multi_reduction <add>, %411, %cst_188 [0] : vector<8x2xf32> to vector<2xf32>
    %413 = vector.shape_cast %412 : vector<2xf32> to vector<1x2xf32>
    %414 = vector.extract_strided_slice %413 {offsets = [0, 0], sizes = [1, 1], strides = [1, 1]} : vector<1x2xf32> to vector<1x1xf32>
    %415 = vector.extract %414[0, 0] : f32 from vector<1x1xf32>
    %cst_189 = arith.constant 0.001953125 : f32
    %416 = arith.mulf %415, %cst_189 : f32
    %417 = vector.extract_strided_slice %413 {offsets = [0, 1], sizes = [1, 1], strides = [1, 1]} : vector<1x2xf32> to vector<1x1xf32>
    %418 = vector.extract %417[0, 0] : f32 from vector<1x1xf32>
    %cst_190 = arith.constant 0.001953125 : f32
    %419 = arith.mulf %418, %cst_190 : f32
    %420 = arith.mulf %416, %416 : f32
    %421 = arith.subf %419, %420 : f32
    %cst_191 = arith.constant 9.99999974E-6 : f32
    %422 = arith.addf %421, %cst_191 : f32
    %423 = math.rsqrt %422 : f32
    %424 = vector.broadcast %416 : f32 to vector<8x1xf32>
    %425 = arith.select %407, %424, %400 : vector<8x1xi1>, vector<8x1xf32>
    %426 = vector.broadcast %423 : f32 to vector<8x1xf32>
    %427 = arith.select %407, %426, %402 : vector<8x1xi1>, vector<8x1xf32>
    %c4_i32_192 = arith.constant 4 : i32
    %428 = vector.broadcast %c4_i32_192 : i32 to vector<8x1xi32>
    %429 = arith.cmpi sge, %375, %428 : vector<8x1xi32>
    %c6_i32_193 = arith.constant 6 : i32
    %430 = vector.broadcast %c6_i32_193 : i32 to vector<8x1xi32>
    %431 = arith.cmpi slt, %375, %430 : vector<8x1xi32>
    %432 = arith.andi %429, %431 : vector<8x1xi1>
    %cst_194 = arith.constant 0.000000e+00 : f32
    %433 = vector.shape_cast %432 : vector<8x1xi1> to vector<8x1xi1>
    %434 = vector.broadcast %433 : vector<8x1xi1> to vector<8x2xi1>
    %435 = vector.broadcast %cst_194 : f32 to vector<8x2xf32>
    %436 = arith.select %434, %374, %435 : vector<8x2xi1>, vector<8x2xf32>
    %cst_195 = arith.constant dense<0.000000e+00> : vector<2xf32>
    %437 = vector.multi_reduction <add>, %436, %cst_195 [0] : vector<8x2xf32> to vector<2xf32>
    %438 = vector.shape_cast %437 : vector<2xf32> to vector<1x2xf32>
    %439 = vector.extract_strided_slice %438 {offsets = [0, 0], sizes = [1, 1], strides = [1, 1]} : vector<1x2xf32> to vector<1x1xf32>
    %440 = vector.extract %439[0, 0] : f32 from vector<1x1xf32>
    %cst_196 = arith.constant 0.001953125 : f32
    %441 = arith.mulf %440, %cst_196 : f32
    %442 = vector.extract_strided_slice %438 {offsets = [0, 1], sizes = [1, 1], strides = [1, 1]} : vector<1x2xf32> to vector<1x1xf32>
    %443 = vector.extract %442[0, 0] : f32 from vector<1x1xf32>
    %cst_197 = arith.constant 0.001953125 : f32
    %444 = arith.mulf %443, %cst_197 : f32
    %445 = arith.mulf %441, %441 : f32
    %446 = arith.subf %444, %445 : f32
    %cst_198 = arith.constant 9.99999974E-6 : f32
    %447 = arith.addf %446, %cst_198 : f32
    %448 = math.rsqrt %447 : f32
    %449 = vector.broadcast %441 : f32 to vector<8x1xf32>
    %450 = arith.select %432, %449, %425 : vector<8x1xi1>, vector<8x1xf32>
    %451 = vector.broadcast %448 : f32 to vector<8x1xf32>
    %452 = arith.select %432, %451, %427 : vector<8x1xi1>, vector<8x1xf32>
    %c6_i32_199 = arith.constant 6 : i32
    %453 = vector.broadcast %c6_i32_199 : i32 to vector<8x1xi32>
    %454 = arith.cmpi sge, %375, %453 : vector<8x1xi32>
    %c8_i32_200 = arith.constant 8 : i32
    %455 = vector.broadcast %c8_i32_200 : i32 to vector<8x1xi32>
    %456 = arith.cmpi slt, %375, %455 : vector<8x1xi32>
    %457 = arith.andi %454, %456 : vector<8x1xi1>
    %cst_201 = arith.constant 0.000000e+00 : f32
    %458 = vector.shape_cast %457 : vector<8x1xi1> to vector<8x1xi1>
    %459 = vector.broadcast %458 : vector<8x1xi1> to vector<8x2xi1>
    %460 = vector.broadcast %cst_201 : f32 to vector<8x2xf32>
    %461 = arith.select %459, %374, %460 : vector<8x2xi1>, vector<8x2xf32>
    %cst_202 = arith.constant dense<0.000000e+00> : vector<2xf32>
    %462 = vector.multi_reduction <add>, %461, %cst_202 [0] : vector<8x2xf32> to vector<2xf32>
    %463 = vector.shape_cast %462 : vector<2xf32> to vector<1x2xf32>
    %464 = vector.extract_strided_slice %463 {offsets = [0, 0], sizes = [1, 1], strides = [1, 1]} : vector<1x2xf32> to vector<1x1xf32>
    %465 = vector.extract %464[0, 0] : f32 from vector<1x1xf32>
    %cst_203 = arith.constant 0.001953125 : f32
    %466 = arith.mulf %465, %cst_203 : f32
    %467 = vector.extract_strided_slice %463 {offsets = [0, 1], sizes = [1, 1], strides = [1, 1]} : vector<1x2xf32> to vector<1x1xf32>
    %468 = vector.extract %467[0, 0] : f32 from vector<1x1xf32>
    %cst_204 = arith.constant 0.001953125 : f32
    %469 = arith.mulf %468, %cst_204 : f32
    %470 = arith.mulf %466, %466 : f32
    %471 = arith.subf %469, %470 : f32
    %cst_205 = arith.constant 9.99999974E-6 : f32
    %472 = arith.addf %471, %cst_205 : f32
    %473 = math.rsqrt %472 : f32
    %474 = vector.broadcast %466 : f32 to vector<8x1xf32>
    %475 = arith.select %457, %474, %450 : vector<8x1xi1>, vector<8x1xf32>
    %476 = vector.broadcast %473 : f32 to vector<8x1xf32>
    %477 = arith.select %457, %476, %452 : vector<8x1xi1>, vector<8x1xf32>
    %478 = vector.broadcast %475 : vector<8x1xf32> to vector<8x342xf32>
    %479 = arith.subf %368, %478 : vector<8x342xf32>
    %480 = vector.broadcast %477 : vector<8x1xf32> to vector<8x342xf32>
    %481 = arith.mulf %479, %480 : vector<8x342xf32>
    %482 = vector.broadcast %2 : vector<8x1xf32> to vector<8x342xf32>
    %483 = arith.mulf %481, %482 : vector<8x342xf32>
    %484 = vector.broadcast %3 : vector<8x1xf32> to vector<8x342xf32>
    %485 = arith.addf %483, %484 : vector<8x342xf32>
    %cst_206 = arith.constant 0.000000e+00 : f32
    %486 = vector.broadcast %cst_206 : f32 to vector<8x342xf32>
    %487 = arith.subf %486, %485 : vector<8x342xf32>
    %488 = math.exp %487 : vector<8x342xf32>
    %cst_207 = arith.constant 1.000000e+00 : f32
    %489 = vector.broadcast %cst_207 : f32 to vector<8x342xf32>
    %490 = arith.addf %489, %488 : vector<8x342xf32>
    %491 = tpu.reciprocal %490 {approx = true} : vector<8x342xf32> -> vector<8x342xf32>
    %492 = arith.mulf %485, %491 : vector<8x342xf32>
    %493 = vector.broadcast %0 : vector<1x342xf32> to vector<8x342xf32>
    %494 = arith.mulf %492, %493 : vector<8x342xf32>
    %495 = arith.truncf %494 : vector<8x342xf32> to vector<8x342xbf16>
    %c1_208 = arith.constant 1 : index
    %c0_209 = arith.constant 0 : index
    %c0_210 = arith.constant 0 : index
    %496 = vector.load %arg9[%c1_208, %c0_209, %c0_210] : memref<2x8x342xbf16, #tpu.memory_space<vmem>>, vector<1x8x342xbf16>
    %497 = vector.shape_cast %496 : vector<1x8x342xbf16> to vector<8x342xbf16>
    %498 = vector.shape_cast %495 : vector<8x342xbf16> to vector<1x8x342xbf16>
    tpu.vector_store %arg9[%c1_208, %c0_209, %c0_210], %498 {strides = array<i32>} : memref<2x8x342xbf16, #tpu.memory_space<vmem>>, vector<1x8x342xbf16>,
    %c0_211 = arith.constant 0 : index
    %c0_212 = arith.constant 0 : index
    %499 = vector.load %arg6[%c0_211, %c0_212] : memref<16x72xbf16, #tpu.memory_space<vmem>>, vector<16x8xbf16>
    %c1_213 = arith.constant 1 : index
    %c0_214 = arith.constant 0 : index
    %c0_215 = arith.constant 0 : index
    %500 = vector.load %arg9[%c1_213, %c0_214, %c0_215] : memref<2x8x342xbf16, #tpu.memory_space<vmem>>, vector<1x8x288xbf16>
    %501 = vector.shape_cast %500 : vector<1x8x288xbf16> to vector<8x288xbf16>
    %c0_216 = arith.constant 0 : index
    %c8_217 = arith.constant 8 : index
    %502 = vector.load %arg6[%c0_216, %c8_217] : memref<16x72xbf16, #tpu.memory_space<vmem>>, vector<16x8xbf16>
    %c1_218 = arith.constant 1 : index
    %c0_219 = arith.constant 0 : index
    %c1_220 = arith.constant 1 : index
    %503 = vector.load %arg9[%c1_218, %c0_219, %c1_220] : memref<2x8x342xbf16, #tpu.memory_space<vmem>>, vector<1x8x288xbf16>
    %504 = vector.shape_cast %503 : vector<1x8x288xbf16> to vector<8x288xbf16>
    %c0_221 = arith.constant 0 : index
    %c16_222 = arith.constant 16 : index
    %505 = vector.load %arg6[%c0_221, %c16_222] : memref<16x72xbf16, #tpu.memory_space<vmem>>, vector<16x8xbf16>
    %c1_223 = arith.constant 1 : index
    %c0_224 = arith.constant 0 : index
    %c2_225 = arith.constant 2 : index
    %506 = vector.load %arg9[%c1_223, %c0_224, %c2_225] : memref<2x8x342xbf16, #tpu.memory_space<vmem>>, vector<1x8x288xbf16>
    %507 = vector.shape_cast %506 : vector<1x8x288xbf16> to vector<8x288xbf16>
    %cst_226 = arith.constant dense<0.000000e+00> : vector<16x288xf32>
    %508 = tpu.matmul %499, %501, %cst_226 {dimension_numbers = #tpu.dot_dimension_numbers<[1], [0], [0], [1], [0, 0, 1, 1], [], []>} : vector<16x8xbf16>, vector<8x288xbf16>, vector<16x288xf32> -> vector<16x288xf32>
    %cst_227 = arith.constant dense<0.000000e+00> : vector<16x288xf32>
    %509 = tpu.matmul %502, %504, %cst_227 {dimension_numbers = #tpu.dot_dimension_numbers<[1], [0], [0], [1], [0, 0, 1, 1], [], []>} : vector<16x8xbf16>, vector<8x288xbf16>, vector<16x288xf32> -> vector<16x288xf32>
    %510 = arith.addf %508, %509 : vector<16x288xf32>
    %cst_228 = arith.constant dense<0.000000e+00> : vector<16x288xf32>
    %511 = tpu.matmul %505, %507, %cst_228 {dimension_numbers = #tpu.dot_dimension_numbers<[1], [0], [0], [1], [0, 0, 1, 1], [], []>} : vector<16x8xbf16>, vector<8x288xbf16>, vector<16x288xf32> -> vector<16x288xf32>
    %512 = arith.addf %510, %511 : vector<16x288xf32>
    %c0_229 = arith.constant 0 : index
    %c24_230 = arith.constant 24 : index
    %513 = vector.load %arg6[%c0_229, %c24_230] : memref<16x72xbf16, #tpu.memory_space<vmem>>, vector<16x8xbf16>
    %c1_231 = arith.constant 1 : index
    %c0_232 = arith.constant 0 : index
    %c18_233 = arith.constant 18 : index
    %514 = vector.load %arg9[%c1_231, %c0_232, %c18_233] : memref<2x8x342xbf16, #tpu.memory_space<vmem>>, vector<1x8x288xbf16>
    %515 = vector.shape_cast %514 : vector<1x8x288xbf16> to vector<8x288xbf16>
    %c0_234 = arith.constant 0 : index
    %c32_235 = arith.constant 32 : index
    %516 = vector.load %arg6[%c0_234, %c32_235] : memref<16x72xbf16, #tpu.memory_space<vmem>>, vector<16x8xbf16>
    %c1_236 = arith.constant 1 : index
    %c0_237 = arith.constant 0 : index
    %c19_238 = arith.constant 19 : index
    %517 = vector.load %arg9[%c1_236, %c0_237, %c19_238] : memref<2x8x342xbf16, #tpu.memory_space<vmem>>, vector<1x8x288xbf16>
    %518 = vector.shape_cast %517 : vector<1x8x288xbf16> to vector<8x288xbf16>
    %c0_239 = arith.constant 0 : index
    %c40_240 = arith.constant 40 : index
    %519 = vector.load %arg6[%c0_239, %c40_240] : memref<16x72xbf16, #tpu.memory_space<vmem>>, vector<16x8xbf16>
    %c1_241 = arith.constant 1 : index
    %c0_242 = arith.constant 0 : index
    %c20_243 = arith.constant 20 : index
    %520 = vector.load %arg9[%c1_241, %c0_242, %c20_243] : memref<2x8x342xbf16, #tpu.memory_space<vmem>>, vector<1x8x288xbf16>
    %521 = vector.shape_cast %520 : vector<1x8x288xbf16> to vector<8x288xbf16>
    %cst_244 = arith.constant dense<0.000000e+00> : vector<16x288xf32>
    %522 = tpu.matmul %513, %515, %cst_244 {dimension_numbers = #tpu.dot_dimension_numbers<[1], [0], [0], [1], [0, 0, 1, 1], [], []>} : vector<16x8xbf16>, vector<8x288xbf16>, vector<16x288xf32> -> vector<16x288xf32>
    %523 = arith.addf %512, %522 : vector<16x288xf32>
    %cst_245 = arith.constant dense<0.000000e+00> : vector<16x288xf32>
    %524 = tpu.matmul %516, %518, %cst_245 {dimension_numbers = #tpu.dot_dimension_numbers<[1], [0], [0], [1], [0, 0, 1, 1], [], []>} : vector<16x8xbf16>, vector<8x288xbf16>, vector<16x288xf32> -> vector<16x288xf32>
    %525 = arith.addf %523, %524 : vector<16x288xf32>
    %cst_246 = arith.constant dense<0.000000e+00> : vector<16x288xf32>
    %526 = tpu.matmul %519, %521, %cst_246 {dimension_numbers = #tpu.dot_dimension_numbers<[1], [0], [0], [1], [0, 0, 1, 1], [], []>} : vector<16x8xbf16>, vector<8x288xbf16>, vector<16x288xf32> -> vector<16x288xf32>
    %527 = arith.addf %525, %526 : vector<16x288xf32>
    %c0_247 = arith.constant 0 : index
    %c48_248 = arith.constant 48 : index
    %528 = vector.load %arg6[%c0_247, %c48_248] : memref<16x72xbf16, #tpu.memory_space<vmem>>, vector<16x8xbf16>
    %c1_249 = arith.constant 1 : index
    %c0_250 = arith.constant 0 : index
    %c36_251 = arith.constant 36 : index
    %529 = vector.load %arg9[%c1_249, %c0_250, %c36_251] : memref<2x8x342xbf16, #tpu.memory_space<vmem>>, vector<1x8x288xbf16>
    %530 = vector.shape_cast %529 : vector<1x8x288xbf16> to vector<8x288xbf16>
    %c0_252 = arith.constant 0 : index
    %c56_253 = arith.constant 56 : index
    %531 = vector.load %arg6[%c0_252, %c56_253] : memref<16x72xbf16, #tpu.memory_space<vmem>>, vector<16x8xbf16>
    %c1_254 = arith.constant 1 : index
    %c0_255 = arith.constant 0 : index
    %c37_256 = arith.constant 37 : index
    %532 = vector.load %arg9[%c1_254, %c0_255, %c37_256] : memref<2x8x342xbf16, #tpu.memory_space<vmem>>, vector<1x8x288xbf16>
    %533 = vector.shape_cast %532 : vector<1x8x288xbf16> to vector<8x288xbf16>
    %c0_257 = arith.constant 0 : index
    %c64_258 = arith.constant 64 : index
    %534 = vector.load %arg6[%c0_257, %c64_258] : memref<16x72xbf16, #tpu.memory_space<vmem>>, vector<16x8xbf16>
    %c1_259 = arith.constant 1 : index
    %c0_260 = arith.constant 0 : index
    %c38_261 = arith.constant 38 : index
    %535 = vector.load %arg9[%c1_259, %c0_260, %c38_261] : memref<2x8x342xbf16, #tpu.memory_space<vmem>>, vector<1x8x288xbf16>
    %536 = vector.shape_cast %535 : vector<1x8x288xbf16> to vector<8x288xbf16>
    %cst_262 = arith.constant dense<0.000000e+00> : vector<16x288xf32>
    %537 = tpu.matmul %528, %530, %cst_262 {dimension_numbers = #tpu.dot_dimension_numbers<[1], [0], [0], [1], [0, 0, 1, 1], [], []>} : vector<16x8xbf16>, vector<8x288xbf16>, vector<16x288xf32> -> vector<16x288xf32>
    %538 = arith.addf %527, %537 : vector<16x288xf32>
    %cst_263 = arith.constant dense<0.000000e+00> : vector<16x288xf32>
    %539 = tpu.matmul %531, %533, %cst_263 {dimension_numbers = #tpu.dot_dimension_numbers<[1], [0], [0], [1], [0, 0, 1, 1], [], []>} : vector<16x8xbf16>, vector<8x288xbf16>, vector<16x288xf32> -> vector<16x288xf32>
    %540 = arith.addf %538, %539 : vector<16x288xf32>
    %cst_264 = arith.constant dense<0.000000e+00> : vector<16x288xf32>
    %541 = tpu.matmul %534, %536, %cst_264 {dimension_numbers = #tpu.dot_dimension_numbers<[1], [0], [0], [1], [0, 0, 1, 1], [], []>} : vector<16x8xbf16>, vector<8x288xbf16>, vector<16x288xf32> -> vector<16x288xf32>
    %542 = arith.addf %540, %541 : vector<16x288xf32>
    %c1_265 = arith.constant 1 : index
    %c0_266 = arith.constant 0 : index
    %c0_267 = arith.constant 0 : index
    %543 = vector.load %arg2[%c1_265, %c0_266, %c0_267] : memref<2x16x1xf32, #tpu.memory_space<vmem>>, vector<1x16x1xf32>
    %544 = vector.shape_cast %543 : vector<1x16x1xf32> to vector<16x1xf32>
    %545 = vector.broadcast %544 : vector<16x1xf32> to vector<16x288xf32>
    %546 = arith.addf %542, %545 : vector<16x288xf32>
    %547 = vector.broadcast %1 : vector<1x288xf32> to vector<16x288xf32>
    %548 = arith.mulf %546, %547 : vector<16x288xf32>
    %cst_268 = arith.constant dense<0.000000e+00> : vector<16xf32>
    %549 = vector.multi_reduction <add>, %548, %cst_268 [1] : vector<16x288xf32> to vector<16xf32>
    %550 = vector.shape_cast %549 : vector<16xf32> to vector<16x1xf32>
    %551 = arith.mulf %548, %548 : vector<16x288xf32>
    %cst_269 = arith.constant dense<0.000000e+00> : vector<16xf32>
    %552 = vector.multi_reduction <add>, %551, %cst_269 [1] : vector<16x288xf32> to vector<16xf32>
    %553 = vector.shape_cast %552 : vector<16xf32> to vector<16x1xf32>
    %554 = tpu.concatenate %550, %553 in 1 : vector<16x1xf32>, vector<16x1xf32> -> vector<16x2xf32>
    %555 = tpu.iota {dimensions = array<i32: 0>} : vector<16x1xi32>
    %cst_270 = arith.constant 0.000000e+00 : f32
    %556 = vector.broadcast %cst_270 : f32 to vector<16x1xf32>
    %cst_271 = arith.constant 0.000000e+00 : f32
    %557 = vector.broadcast %cst_271 : f32 to vector<16x1xf32>
    %c0_i32_272 = arith.constant 0 : i32
    %558 = vector.broadcast %c0_i32_272 : i32 to vector<16x1xi32>
    %559 = arith.cmpi sge, %555, %558 : vector<16x1xi32>
    %c4_i32_273 = arith.constant 4 : i32
    %560 = vector.broadcast %c4_i32_273 : i32 to vector<16x1xi32>
    %561 = arith.cmpi slt, %555, %560 : vector<16x1xi32>
    %562 = arith.andi %559, %561 : vector<16x1xi1>
    %cst_274 = arith.constant 0.000000e+00 : f32
    %563 = vector.shape_cast %562 : vector<16x1xi1> to vector<16x1xi1>
    %564 = vector.broadcast %563 : vector<16x1xi1> to vector<16x2xi1>
    %565 = vector.broadcast %cst_274 : f32 to vector<16x2xf32>
    %566 = arith.select %564, %554, %565 : vector<16x2xi1>, vector<16x2xf32>
    %cst_275 = arith.constant dense<0.000000e+00> : vector<2xf32>
    %567 = vector.multi_reduction <add>, %566, %cst_275 [0] : vector<16x2xf32> to vector<2xf32>
    %568 = vector.shape_cast %567 : vector<2xf32> to vector<1x2xf32>
    %569 = vector.extract_strided_slice %568 {offsets = [0, 0], sizes = [1, 1], strides = [1, 1]} : vector<1x2xf32> to vector<1x1xf32>
    %570 = vector.extract %569[0, 0] : f32 from vector<1x1xf32>
    %cst_276 = arith.constant 9.765625E-4 : f32
    %571 = arith.mulf %570, %cst_276 : f32
    %572 = vector.extract_strided_slice %568 {offsets = [0, 1], sizes = [1, 1], strides = [1, 1]} : vector<1x2xf32> to vector<1x1xf32>
    %573 = vector.extract %572[0, 0] : f32 from vector<1x1xf32>
    %cst_277 = arith.constant 9.765625E-4 : f32
    %574 = arith.mulf %573, %cst_277 : f32
    %575 = arith.mulf %571, %571 : f32
    %576 = arith.subf %574, %575 : f32
    %cst_278 = arith.constant 9.99999974E-6 : f32
    %577 = arith.addf %576, %cst_278 : f32
    %578 = math.rsqrt %577 : f32
    %579 = vector.broadcast %571 : f32 to vector<16x1xf32>
    %580 = arith.select %562, %579, %556 : vector<16x1xi1>, vector<16x1xf32>
    %581 = vector.broadcast %578 : f32 to vector<16x1xf32>
    %582 = arith.select %562, %581, %557 : vector<16x1xi1>, vector<16x1xf32>
    %c4_i32_279 = arith.constant 4 : i32
    %583 = vector.broadcast %c4_i32_279 : i32 to vector<16x1xi32>
    %584 = arith.cmpi sge, %555, %583 : vector<16x1xi32>
    %c8_i32_280 = arith.constant 8 : i32
    %585 = vector.broadcast %c8_i32_280 : i32 to vector<16x1xi32>
    %586 = arith.cmpi slt, %555, %585 : vector<16x1xi32>
    %587 = arith.andi %584, %586 : vector<16x1xi1>
    %cst_281 = arith.constant 0.000000e+00 : f32
    %588 = vector.shape_cast %587 : vector<16x1xi1> to vector<16x1xi1>
    %589 = vector.broadcast %588 : vector<16x1xi1> to vector<16x2xi1>
    %590 = vector.broadcast %cst_281 : f32 to vector<16x2xf32>
    %591 = arith.select %589, %554, %590 : vector<16x2xi1>, vector<16x2xf32>
    %cst_282 = arith.constant dense<0.000000e+00> : vector<2xf32>
    %592 = vector.multi_reduction <add>, %591, %cst_282 [0] : vector<16x2xf32> to vector<2xf32>
    %593 = vector.shape_cast %592 : vector<2xf32> to vector<1x2xf32>
    %594 = vector.extract_strided_slice %593 {offsets = [0, 0], sizes = [1, 1], strides = [1, 1]} : vector<1x2xf32> to vector<1x1xf32>
    %595 = vector.extract %594[0, 0] : f32 from vector<1x1xf32>
    %cst_283 = arith.constant 9.765625E-4 : f32
    %596 = arith.mulf %595, %cst_283 : f32
    %597 = vector.extract_strided_slice %593 {offsets = [0, 1], sizes = [1, 1], strides = [1, 1]} : vector<1x2xf32> to vector<1x1xf32>
    %598 = vector.extract %597[0, 0] : f32 from vector<1x1xf32>
    %cst_284 = arith.constant 9.765625E-4 : f32
    %599 = arith.mulf %598, %cst_284 : f32
    %600 = arith.mulf %596, %596 : f32
    %601 = arith.subf %599, %600 : f32
    %cst_285 = arith.constant 9.99999974E-6 : f32
    %602 = arith.addf %601, %cst_285 : f32
    %603 = math.rsqrt %602 : f32
    %604 = vector.broadcast %596 : f32 to vector<16x1xf32>
    %605 = arith.select %587, %604, %580 : vector<16x1xi1>, vector<16x1xf32>
    %606 = vector.broadcast %603 : f32 to vector<16x1xf32>
    %607 = arith.select %587, %606, %582 : vector<16x1xi1>, vector<16x1xf32>
    %c8_i32_286 = arith.constant 8 : i32
    %608 = vector.broadcast %c8_i32_286 : i32 to vector<16x1xi32>
    %609 = arith.cmpi sge, %555, %608 : vector<16x1xi32>
    %c12_i32_287 = arith.constant 12 : i32
    %610 = vector.broadcast %c12_i32_287 : i32 to vector<16x1xi32>
    %611 = arith.cmpi slt, %555, %610 : vector<16x1xi32>
    %612 = arith.andi %609, %611 : vector<16x1xi1>
    %cst_288 = arith.constant 0.000000e+00 : f32
    %613 = vector.shape_cast %612 : vector<16x1xi1> to vector<16x1xi1>
    %614 = vector.broadcast %613 : vector<16x1xi1> to vector<16x2xi1>
    %615 = vector.broadcast %cst_288 : f32 to vector<16x2xf32>
    %616 = arith.select %614, %554, %615 : vector<16x2xi1>, vector<16x2xf32>
    %cst_289 = arith.constant dense<0.000000e+00> : vector<2xf32>
    %617 = vector.multi_reduction <add>, %616, %cst_289 [0] : vector<16x2xf32> to vector<2xf32>
    %618 = vector.shape_cast %617 : vector<2xf32> to vector<1x2xf32>
    %619 = vector.extract_strided_slice %618 {offsets = [0, 0], sizes = [1, 1], strides = [1, 1]} : vector<1x2xf32> to vector<1x1xf32>
    %620 = vector.extract %619[0, 0] : f32 from vector<1x1xf32>
    %cst_290 = arith.constant 9.765625E-4 : f32
    %621 = arith.mulf %620, %cst_290 : f32
    %622 = vector.extract_strided_slice %618 {offsets = [0, 1], sizes = [1, 1], strides = [1, 1]} : vector<1x2xf32> to vector<1x1xf32>
    %623 = vector.extract %622[0, 0] : f32 from vector<1x1xf32>
    %cst_291 = arith.constant 9.765625E-4 : f32
    %624 = arith.mulf %623, %cst_291 : f32
    %625 = arith.mulf %621, %621 : f32
    %626 = arith.subf %624, %625 : f32
    %cst_292 = arith.constant 9.99999974E-6 : f32
    %627 = arith.addf %626, %cst_292 : f32
    %628 = math.rsqrt %627 : f32
    %629 = vector.broadcast %621 : f32 to vector<16x1xf32>
    %630 = arith.select %612, %629, %605 : vector<16x1xi1>, vector<16x1xf32>
    %631 = vector.broadcast %628 : f32 to vector<16x1xf32>
    %632 = arith.select %612, %631, %607 : vector<16x1xi1>, vector<16x1xf32>
    %c12_i32_293 = arith.constant 12 : i32
    %633 = vector.broadcast %c12_i32_293 : i32 to vector<16x1xi32>
    %634 = arith.cmpi sge, %555, %633 : vector<16x1xi32>
    %c16_i32_294 = arith.constant 16 : i32
    %635 = vector.broadcast %c16_i32_294 : i32 to vector<16x1xi32>
    %636 = arith.cmpi slt, %555, %635 : vector<16x1xi32>
    %637 = arith.andi %634, %636 : vector<16x1xi1>
    %cst_295 = arith.constant 0.000000e+00 : f32
    %638 = vector.shape_cast %637 : vector<16x1xi1> to vector<16x1xi1>
    %639 = vector.broadcast %638 : vector<16x1xi1> to vector<16x2xi1>
    %640 = vector.broadcast %cst_295 : f32 to vector<16x2xf32>
    %641 = arith.select %639, %554, %640 : vector<16x2xi1>, vector<16x2xf32>
    %cst_296 = arith.constant dense<0.000000e+00> : vector<2xf32>
    %642 = vector.multi_reduction <add>, %641, %cst_296 [0] : vector<16x2xf32> to vector<2xf32>
    %643 = vector.shape_cast %642 : vector<2xf32> to vector<1x2xf32>
    %644 = vector.extract_strided_slice %643 {offsets = [0, 0], sizes = [1, 1], strides = [1, 1]} : vector<1x2xf32> to vector<1x1xf32>
    %645 = vector.extract %644[0, 0] : f32 from vector<1x1xf32>
    %cst_297 = arith.constant 9.765625E-4 : f32
    %646 = arith.mulf %645, %cst_297 : f32
    %647 = vector.extract_strided_slice %643 {offsets = [0, 1], sizes = [1, 1], strides = [1, 1]} : vector<1x2xf32> to vector<1x1xf32>
    %648 = vector.extract %647[0, 0] : f32 from vector<1x1xf32>
    %cst_298 = arith.constant 9.765625E-4 : f32
    %649 = arith.mulf %648, %cst_298 : f32
    %650 = arith.mulf %646, %646 : f32
    %651 = arith.subf %649, %650 : f32
    %cst_299 = arith.constant 9.99999974E-6 : f32
    %652 = arith.addf %651, %cst_299 : f32
    %653 = math.rsqrt %652 : f32
    %654 = vector.broadcast %646 : f32 to vector<16x1xf32>
    %655 = arith.select %637, %654, %630 : vector<16x1xi1>, vector<16x1xf32>
    %656 = vector.broadcast %653 : f32 to vector<16x1xf32>
    %657 = arith.select %637, %656, %632 : vector<16x1xi1>, vector<16x1xf32>
    %658 = vector.broadcast %655 : vector<16x1xf32> to vector<16x288xf32>
    %659 = arith.subf %548, %658 : vector<16x288xf32>
    %660 = vector.broadcast %657 : vector<16x1xf32> to vector<16x288xf32>
    %661 = arith.mulf %659, %660 : vector<16x288xf32>
    %662 = vector.broadcast %4 : vector<16x1xf32> to vector<16x288xf32>
    %663 = arith.mulf %661, %662 : vector<16x288xf32>
    %664 = vector.broadcast %5 : vector<16x1xf32> to vector<16x288xf32>
    %665 = arith.addf %663, %664 : vector<16x288xf32>
    %cst_300 = arith.constant 0.000000e+00 : f32
    %666 = vector.broadcast %cst_300 : f32 to vector<16x288xf32>
    %667 = arith.subf %666, %665 : vector<16x288xf32>
    %668 = math.exp %667 : vector<16x288xf32>
    %cst_301 = arith.constant 1.000000e+00 : f32
    %669 = vector.broadcast %cst_301 : f32 to vector<16x288xf32>
    %670 = arith.addf %669, %668 : vector<16x288xf32>
    %671 = tpu.reciprocal %670 {approx = true} : vector<16x288xf32> -> vector<16x288xf32>
    %672 = arith.mulf %665, %671 : vector<16x288xf32>
    %673 = vector.broadcast %1 : vector<1x288xf32> to vector<16x288xf32>
    %674 = arith.mulf %672, %673 : vector<16x288xf32>
    %c1_302 = arith.constant 1 : index
    %c0_303 = arith.constant 0 : index
    %c0_304 = arith.constant 0 : index
    %675 = vector.load %arg10[%c1_302, %c0_303, %c0_304] : memref<2x16x342xbf16, #tpu.memory_space<vmem>>, vector<1x16x19xbf16>
    %676 = vector.shape_cast %675 : vector<1x16x19xbf16> to vector<16x19xbf16>
    %677 = vector.shape_cast %7 : vector<16x19xbf16> to vector<1x16x19xbf16>
    tpu.vector_store %arg10[%c1_302, %c0_303, %c0_304], %677 {strides = array<i32>} : memref<2x16x342xbf16, #tpu.memory_space<vmem>>, vector<1x16x19xbf16>,
    %c1_305 = arith.constant 1 : index
    %c0_306 = arith.constant 0 : index
    %c307_307 = arith.constant 307 : index
    %678 = vector.load %arg10[%c1_305, %c0_306, %c307_307] : memref<2x16x342xbf16, #tpu.memory_space<vmem>>, vector<1x16x35xbf16>
    %679 = vector.shape_cast %678 : vector<1x16x35xbf16> to vector<16x35xbf16>
    %680 = vector.shape_cast %8 : vector<16x35xbf16> to vector<1x16x35xbf16>
    tpu.vector_store %arg10[%c1_305, %c0_306, %c307_307], %680 {strides = array<i32>} : memref<2x16x342xbf16, #tpu.memory_space<vmem>>, vector<1x16x35xbf16>,
    %681 = arith.truncf %674 : vector<16x288xf32> to vector<16x288xbf16>
    %c1_308 = arith.constant 1 : index
    %c0_309 = arith.constant 0 : index
    %c19_310 = arith.constant 19 : index
    %682 = vector.load %arg10[%c1_308, %c0_309, %c19_310] : memref<2x16x342xbf16, #tpu.memory_space<vmem>>, vector<1x16x288xbf16>
    %683 = vector.shape_cast %682 : vector<1x16x288xbf16> to vector<16x288xbf16>
    %684 = vector.shape_cast %681 : vector<16x288xbf16> to vector<1x16x288xbf16>
    tpu.vector_store %arg10[%c1_308, %c0_309, %c19_310], %684 {strides = array<i32>} : memref<2x16x342xbf16, #tpu.memory_space<vmem>>, vector<1x16x288xbf16>,
    %c1_311 = arith.constant 1 : index
    %c0_312 = arith.constant 0 : index
    %c0_313 = arith.constant 0 : index
    %685 = vector.load %arg10[%c1_311, %c0_312, %c0_313] : memref<2x16x342xbf16, #tpu.memory_space<vmem>>, vector<1x16x288xbf16>
    %686 = vector.shape_cast %685 : vector<1x16x288xbf16> to vector<16x288xbf16>
    %c1_314 = arith.constant 1 : index
    %c0_315 = arith.constant 0 : index
    %c1_316 = arith.constant 1 : index
    %687 = vector.load %arg10[%c1_314, %c0_315, %c1_316] : memref<2x16x342xbf16, #tpu.memory_space<vmem>>, vector<1x16x288xbf16>
    %688 = vector.shape_cast %687 : vector<1x16x288xbf16> to vector<16x288xbf16>
    %c1_317 = arith.constant 1 : index
    %c0_318 = arith.constant 0 : index
    %c2_319 = arith.constant 2 : index
    %689 = vector.load %arg10[%c1_317, %c0_318, %c2_319] : memref<2x16x342xbf16, #tpu.memory_space<vmem>>, vector<1x16x288xbf16>
    %690 = vector.shape_cast %689 : vector<1x16x288xbf16> to vector<16x288xbf16>
    %691 = tpu.concatenate %686, %688, %690 in 0 : vector<16x288xbf16>, vector<16x288xbf16>, vector<16x288xbf16> -> vector<48x288xbf16>
    %c0_320 = arith.constant 0 : index
    %c0_321 = arith.constant 0 : index
    %692 = vector.load %arg7[%c0_320, %c0_321] : memref<16x152xbf16, #tpu.memory_space<vmem>>, vector<16x48xbf16>
    %cst_322 = arith.constant dense<0.000000e+00> : vector<16x288xf32>
    %693 = tpu.matmul %692, %691, %cst_322 {dimension_numbers = #tpu.dot_dimension_numbers<[1], [0], [0], [1], [0, 0, 1, 1], [], []>} : vector<16x48xbf16>, vector<48x288xbf16>, vector<16x288xf32> -> vector<16x288xf32>
    %c1_323 = arith.constant 1 : index
    %c0_324 = arith.constant 0 : index
    %c18_325 = arith.constant 18 : index
    %694 = vector.load %arg10[%c1_323, %c0_324, %c18_325] : memref<2x16x342xbf16, #tpu.memory_space<vmem>>, vector<1x16x288xbf16>
    %695 = vector.shape_cast %694 : vector<1x16x288xbf16> to vector<16x288xbf16>
    %c1_326 = arith.constant 1 : index
    %c0_327 = arith.constant 0 : index
    %c19_328 = arith.constant 19 : index
    %696 = vector.load %arg10[%c1_326, %c0_327, %c19_328] : memref<2x16x342xbf16, #tpu.memory_space<vmem>>, vector<1x16x288xbf16>
    %697 = vector.shape_cast %696 : vector<1x16x288xbf16> to vector<16x288xbf16>
    %c1_329 = arith.constant 1 : index
    %c0_330 = arith.constant 0 : index
    %c20_331 = arith.constant 20 : index
    %698 = vector.load %arg10[%c1_329, %c0_330, %c20_331] : memref<2x16x342xbf16, #tpu.memory_space<vmem>>, vector<1x16x288xbf16>
    %699 = vector.shape_cast %698 : vector<1x16x288xbf16> to vector<16x288xbf16>
    %700 = tpu.concatenate %695, %697, %699 in 0 : vector<16x288xbf16>, vector<16x288xbf16>, vector<16x288xbf16> -> vector<48x288xbf16>
    %c0_332 = arith.constant 0 : index
    %c48_333 = arith.constant 48 : index
    %701 = vector.load %arg7[%c0_332, %c48_333] : memref<16x152xbf16, #tpu.memory_space<vmem>>, vector<16x48xbf16>
    %cst_334 = arith.constant dense<0.000000e+00> : vector<16x288xf32>
    %702 = tpu.matmul %701, %700, %cst_334 {dimension_numbers = #tpu.dot_dimension_numbers<[1], [0], [0], [1], [0, 0, 1, 1], [], []>} : vector<16x48xbf16>, vector<48x288xbf16>, vector<16x288xf32> -> vector<16x288xf32>
    %703 = arith.addf %693, %702 : vector<16x288xf32>
    %c1_335 = arith.constant 1 : index
    %c0_336 = arith.constant 0 : index
    %c36_337 = arith.constant 36 : index
    %704 = vector.load %arg10[%c1_335, %c0_336, %c36_337] : memref<2x16x342xbf16, #tpu.memory_space<vmem>>, vector<1x16x288xbf16>
    %705 = vector.shape_cast %704 : vector<1x16x288xbf16> to vector<16x288xbf16>
    %c1_338 = arith.constant 1 : index
    %c0_339 = arith.constant 0 : index
    %c37_340 = arith.constant 37 : index
    %706 = vector.load %arg10[%c1_338, %c0_339, %c37_340] : memref<2x16x342xbf16, #tpu.memory_space<vmem>>, vector<1x16x288xbf16>
    %707 = vector.shape_cast %706 : vector<1x16x288xbf16> to vector<16x288xbf16>
    %c1_341 = arith.constant 1 : index
    %c0_342 = arith.constant 0 : index
    %c38_343 = arith.constant 38 : index
    %708 = vector.load %arg10[%c1_341, %c0_342, %c38_343] : memref<2x16x342xbf16, #tpu.memory_space<vmem>>, vector<1x16x288xbf16>
    %709 = vector.shape_cast %708 : vector<1x16x288xbf16> to vector<16x288xbf16>
    %710 = tpu.concatenate %705, %707, %709 in 0 : vector<16x288xbf16>, vector<16x288xbf16>, vector<16x288xbf16> -> vector<48x288xbf16>
    %c0_344 = arith.constant 0 : index
    %c96_345 = arith.constant 96 : index
    %711 = vector.load %arg7[%c0_344, %c96_345] : memref<16x152xbf16, #tpu.memory_space<vmem>>, vector<16x48xbf16>
    %cst_346 = arith.constant dense<0.000000e+00> : vector<16x288xf32>
    %712 = tpu.matmul %711, %710, %cst_346 {dimension_numbers = #tpu.dot_dimension_numbers<[1], [0], [0], [1], [0, 0, 1, 1], [], []>} : vector<16x48xbf16>, vector<48x288xbf16>, vector<16x288xf32> -> vector<16x288xf32>
    %713 = arith.addf %703, %712 : vector<16x288xf32>
    %c1_347 = arith.constant 1 : index
    %c0_348 = arith.constant 0 : index
    %c19_349 = arith.constant 19 : index
    %714 = vector.load %arg1[%c1_347, %c0_348, %c19_349] : memref<2x8x342xf32, #tpu.memory_space<vmem>>, vector<1x8x288xf32>
    %715 = vector.shape_cast %714 : vector<1x8x288xf32> to vector<8x288xf32>
    %716 = arith.truncf %715 : vector<8x288xf32> to vector<8x288xbf16>
    %c0_350 = arith.constant 0 : index
    %c144_351 = arith.constant 144 : index
    %717 = vector.load %arg7[%c0_350, %c144_351] : memref<16x152xbf16, #tpu.memory_space<vmem>>, vector<16x8xbf16>
    %cst_352 = arith.constant dense<0.000000e+00> : vector<16x288xf32>
    %718 = tpu.matmul %717, %716, %cst_352 {dimension_numbers = #tpu.dot_dimension_numbers<[1], [0], [0], [1], [0, 0, 1, 1], [], []>} : vector<16x8xbf16>, vector<8x288xbf16>, vector<16x288xf32> -> vector<16x288xf32>
    %719 = arith.addf %713, %718 : vector<16x288xf32>
    %720 = vector.broadcast %6 : vector<16x1xf32> to vector<16x288xf32>
    %721 = arith.addf %719, %720 : vector<16x288xf32>
    %c1_353 = arith.constant 1 : index
    %c0_354 = arith.constant 0 : index
    %c0_355 = arith.constant 0 : index
    %722 = vector.load %arg8[%c1_353, %c0_354, %c0_355] : memref<2x16x288xf32, #tpu.memory_space<vmem>>, vector<1x16x288xf32>
    %723 = vector.shape_cast %722 : vector<1x16x288xf32> to vector<16x288xf32>
    %724 = vector.shape_cast %721 : vector<16x288xf32> to vector<1x16x288xf32>
    tpu.vector_store %arg8[%c1_353, %c0_354, %c0_355], %724 {strides = array<i32>} : memref<2x16x288xf32, #tpu.memory_space<vmem>>, vector<1x16x288xf32>,
    return
  }
  func.func @transform_0(%arg0: i32) -> (i32, i32, i32) {
    %c0_i32 = arith.constant 0 : i32
    %c0_i32_0 = arith.constant 0 : i32
    %c0_i32_1 = arith.constant 0 : i32
    return %arg0, %c0_i32, %c0_i32_0 : i32, i32, i32
  }
  func.func @transform_1(%arg0: i32) -> (i32, i32, i32) {
    %c0_i32 = arith.constant 0 : i32
    %c0_i32_0 = arith.constant 0 : i32
    %c0_i32_1 = arith.constant 0 : i32
    return %arg0, %c0_i32, %c0_i32_0 : i32, i32, i32
  }
  func.func @transform_2(%arg0: i32) -> (i32, i32) {
    %c0_i32 = arith.constant 0 : i32
    %c0_i32_0 = arith.constant 0 : i32
    %c0_i32_1 = arith.constant 0 : i32
    return %c0_i32, %c0_i32_0 : i32, i32
  }
  func.func @transform_3(%arg0: i32) -> (i32, i32) {
    %c0_i32 = arith.constant 0 : i32
    %c0_i32_0 = arith.constant 0 : i32
    %c0_i32_1 = arith.constant 0 : i32
    return %c0_i32, %c0_i32_0 : i32, i32
  }
  func.func @transform_4(%arg0: i32) -> (i32, i32) {
    %c0_i32 = arith.constant 0 : i32
    %c0_i32_0 = arith.constant 0 : i32
    %c0_i32_1 = arith.constant 0 : i32
    return %c0_i32, %c0_i32_0 : i32, i32
  }
  func.func @transform_5(%arg0: i32) -> (i32, i32) {
    %c0_i32 = arith.constant 0 : i32
    %c0_i32_0 = arith.constant 0 : i32
    %c0_i32_1 = arith.constant 0 : i32
    return %c0_i32, %c0_i32_0 : i32, i32
  }
  func.func @transform_6(%arg0: i32) -> (i32, i32) {
    %c0_i32 = arith.constant 0 : i32
    %c0_i32_0 = arith.constant 0 : i32
    %c0_i32_1 = arith.constant 0 : i32
    return %c0_i32, %c0_i32_0 : i32, i32
  }
  func.func @transform_7(%arg0: i32) -> (i32, i32, i32) {
    %c0_i32 = arith.constant 0 : i32
    %c0_i32_0 = arith.constant 0 : i32
    %c0_i32_1 = arith.constant 0 : i32
    return %arg0, %c0_i32, %c0_i32_0 : i32, i32, i32
  }
}

</mosaic_0001>

<llo_original>
// kernel: tpu_custom_call.1
$region0: #{tpu_custom_call.1}
  #allocation0 [shape = 'u32[]', space=smem, size = 0x4, offset = 0x4, fixed_abs, tag = 'smem constant byte address 0x4 - core index']
  #allocation1 [shape = 'u32[144,128]{1,0:T(1,128)}', space=vmem, size = 0x12000, scoped, tag = 'internal scratch']
  #allocation2 [shape = 'bf16[2,8,342]{2,1,0:T(8,128)(2,1)}', space=vmem, size = 0x3000, scoped, tag = 'scratch operand']
  #allocation3 [shape = 'bf16[2,16,342]{2,1,0:T(16,128)(2,1)}', space=vmem, size = 0x6000, scoped, tag = 'scratch operand']
  %s0 = inlined_call_operand.vmem [shape: f32[4,8,342], index: 0, kind: input, shape index: {}]
  %s1 = inlined_call_operand.vmem [shape: f32[4,16,1], index: 1, kind: input, shape index: {}]
  %s2 = inlined_call_operand.hbm [shape: f32[1,342], index: 2, kind: input, shape index: {}]
  %s3 = inlined_call_operand.vmem [shape: f32[8,2], index: 3, kind: input, shape index: {}]
  %s4 = inlined_call_operand.vmem [shape: f32[16,3], index: 4, kind: input, shape index: {}]
  %s5 = inlined_call_operand.hbm [shape: bf16[16,72], index: 5, kind: input, shape index: {}]
  %s6 = inlined_call_operand.vmem [shape: bf16[16,152], index: 6, kind: input, shape index: {}]
  %s7 = inlined_call_operand.hbm [shape: f32[4,16,288], index: 7, kind: output, shape index: {}]
  %s8 = sld [smem:[#allocation0]]
  $region69: #{tpu_custom_call.1} parent=0
    _
  %s10 = ssub.s32 1, %s8
  %s11 = scalar_select 0, %s10, %s8
  $region1: #{tpu_custom_call.1} parent=0
    #allocation4 [shape = 'u8[1536]{0}', space=vmem, size = 0x800, scoped, tag = 'input window, operand 2, single buffered']
    #allocation5 [shape = 's32[2]{0}', space=sflag, size = 0x8, scoped, tag = 'scoped memory for tpu_custom_call.1']
    #allocation6 [shape = 's32[2]{0}', space=sflag, size = 0x8, scoped, tag = 'scoped memory for tpu_custom_call.1']
    #allocation7 [shape = 'u8[4096]{0}', space=vmem, size = 0x1000, scoped, tag = 'input window, operand 5, single buffered']
    #allocation8 [shape = 's32[1]{0}', space=sflag, size = 0x4, scoped, tag = 'scoped memory for tpu_custom_call.1']
    #allocation9 [shape = 'u8[98304]{0}', space=vmem, size = 0x18000, scoped, tag = 'output window, operand 0']
    %12 = vsyncpa [#allocation5], 0
    %13 = vsyncpa [#allocation8], 0
    %14 = vsyncpa [#allocation6], 0
    %s15 = scalar_lea.sflag [#allocation6], 1
    %16 = vsyncpa %s15, 0
    loop: start=0, step=1, limit=4
    $region2: #{tpu_custom_call.1} parent=1 // loop_pre_header
      _
    $region3: #{tpu_custom_call.1} parent=1 // loop_header
      %s18 = sphi 0, %s22
      %p19 = scmp.ge.s32.totalorder %s18, 4
      %s28 = sphi 0, %s30
      %s31 = sphi 0, %s28
      %s32 = sphi 0, %s31
      %s48 = sphi 0, %s32
      %s54 = sphi 0, %s56
      %s57 = sphi 0, %s54
      %s58 = sphi 0, %s57
      %s74 = sphi 0, %s58
      %s78 = sphi 0, %s78
      %s80 = sphi 0, %s78
      %s81 = sphi 0, %s80
      %s95 = sphi 0, %s81
      %s99 = sphi 0, %s99
      %s101 = sphi 0, %s99
      %s102 = sphi 0, %s101
      %s116 = sphi 0, %s102
      %s120 = sphi 0, %s120
      %s122 = sphi 0, %s120
      %s123 = sphi 0, %s122
      %s137 = sphi 0, %s123
      %s141 = sphi 0, %s141
      %s143 = sphi 0, %s141
      %s144 = sphi 0, %s143
      %s158 = sphi 0, %s144
      %s162 = sphi 0, %s162
      %s164 = sphi 0, %s162
      %s165 = sphi 0, %s164
      %s179 = sphi 0, %s165
      %s185 = sphi 0, %s187
      %s188 = sphi 0, %s185
      %s189 = sphi 0, %s188
      %s205 = sphi 0, %s189
    $region4: #{tpu_custom_call.1} parent=1 // loop_header_branch
      %21 = sbr.rel (%p19) target = $region8
    $region5: #{tpu_custom_call.1} parent=1 // loop_body
      %s23 = ssub.s32 %s18, 1
      %s24 = ssub.s32 %s18, 2
      %s25 = sadd.s32 %s18, 1
      %s26 = ssub.s32 %s18, %s25
      %p27 = scmp.eq.s32.totalorder %s26, 0
      %s29 = sadd.s32 %s28, 1
      %s30 = scalar_select %p27, %s28, %s29
      %p33 = pneg %p27
      %p34 = scmp.eq.s32.totalorder %s18, 1
      %p35 = por %p33, %p34
      %p36 = scmp.ne.s32.totalorder %s28, %s31
      %p37 = scmp.eq.s32.totalorder %s18, 0
      %p38 = por %p36, %p37
      %p39 = scmp.ne.s32.totalorder %s28, %s31
      %p40 = scmp.eq.s32.totalorder %s23, 1
      %p41 = por %p39, %p40
      %p42 = scmp.ne.s32.totalorder %s31, %s32
      %p43 = scmp.eq.s32.totalorder %s23, 0
      %p44 = por %p42, %p43
      %p45 = scmp.ne.s32.totalorder %s31, %s32
      %p46 = scmp.eq.s32.totalorder %s24, 1
      %p47 = por %p45, %p46
      %p49 = scmp.ne.s32.totalorder %s32, %s48
      %p50 = scmp.eq.s32.totalorder %s24, 0
      %p51 = por %p49, %p50
      %s52 = ssub.s32 %s18, %s25
      %p53 = scmp.eq.s32.totalorder %s52, 0
      %s55 = sadd.s32 %s54, 1
      %s56 = scalar_select %p53, %s54, %s55
      %p59 = pneg %p53
      %p60 = scmp.eq.s32.totalorder %s18, 1
      %p61 = por %p59, %p60
      %p62 = scmp.ne.s32.totalorder %s54, %s57
      %p63 = scmp.eq.s32.totalorder %s18, 0
      %p64 = por %p62, %p63
      %p65 = scmp.ne.s32.totalorder %s54, %s57
      %p66 = scmp.eq.s32.totalorder %s23, 1
      %p67 = por %p65, %p66
      %p68 = scmp.ne.s32.totalorder %s57, %s58
      %p69 = scmp.eq.s32.totalorder %s23, 0
      %p70 = por %p68, %p69
      %p71 = scmp.ne.s32.totalorder %s57, %s58
      %p72 = scmp.eq.s32.totalorder %s24, 1
      %p73 = por %p71, %p72
      %p75 = scmp.ne.s32.totalorder %s58, %s74
      %p76 = scmp.eq.s32.totalorder %s24, 0
      %p77 = por %p75, %p76
      %s79 = sadd.s32 %s78, 1
      %p82 = scmp.eq.s32.totalorder %s18, 1
      %p83 = scmp.ne.s32.totalorder %s78, %s80
      %p84 = scmp.eq.s32.totalorder %s18, 0
      %p85 = por %p83, %p84
      %p86 = scmp.ne.s32.totalorder %s78, %s80
      %p87 = scmp.eq.s32.totalorder %s23, 1
      %p88 = por %p86, %p87
      %p89 = scmp.ne.s32.totalorder %s80, %s81
      %p90 = scmp.eq.s32.totalorder %s23, 0
      %p91 = por %p89, %p90
      %p92 = scmp.ne.s32.totalorder %s80, %s81
      %p93 = scmp.eq.s32.totalorder %s24, 1
      %p94 = por %p92, %p93
      %p96 = scmp.ne.s32.totalorder %s81, %s95
      %p97 = scmp.eq.s32.totalorder %s24, 0
      %p98 = por %p96, %p97
      %s100 = sadd.s32 %s99, 1
      %p103 = scmp.eq.s32.totalorder %s18, 1
      %p104 = scmp.ne.s32.totalorder %s99, %s101
      %p105 = scmp.eq.s32.totalorder %s18, 0
      %p106 = por %p104, %p105
      %p107 = scmp.ne.s32.totalorder %s99, %s101
      %p108 = scmp.eq.s32.totalorder %s23, 1
      %p109 = por %p107, %p108
      %p110 = scmp.ne.s32.totalorder %s101, %s102
      %p111 = scmp.eq.s32.totalorder %s23, 0
      %p112 = por %p110, %p111
      %p113 = scmp.ne.s32.totalorder %s101, %s102
      %p114 = scmp.eq.s32.totalorder %s24, 1
      %p115 = por %p113, %p114
      %p117 = scmp.ne.s32.totalorder %s102, %s116
      %p118 = scmp.eq.s32.totalorder %s24, 0
      %p119 = por %p117, %p118
      %s121 = sadd.s32 %s120, 1
      %p124 = scmp.eq.s32.totalorder %s18, 1
      %p125 = scmp.ne.s32.totalorder %s120, %s122
      %p126 = scmp.eq.s32.totalorder %s18, 0
      %p127 = por %p125, %p126
      %p128 = scmp.ne.s32.totalorder %s120, %s122
      %p129 = scmp.eq.s32.totalorder %s23, 1
      %p130 = por %p128, %p129
      %p131 = scmp.ne.s32.totalorder %s122, %s123
      %p132 = scmp.eq.s32.totalorder %s23, 0
      %p133 = por %p131, %p132
      %p134 = scmp.ne.s32.totalorder %s122, %s123
      %p135 = scmp.eq.s32.totalorder %s24, 1
      %p136 = por %p134, %p135
      %p138 = scmp.ne.s32.totalorder %s123, %s137
      %p139 = scmp.eq.s32.totalorder %s24, 0
      %p140 = por %p138, %p139
      %s142 = sadd.s32 %s141, 1
      %p145 = scmp.eq.s32.totalorder %s18, 1
      %p146 = scmp.ne.s32.totalorder %s141, %s143
      %p147 = scmp.eq.s32.totalorder %s18, 0
      %p148 = por %p146, %p147
      %p149 = scmp.ne.s32.totalorder %s141, %s143
      %p150 = scmp.eq.s32.totalorder %s23, 1
      %p151 = por %p149, %p150
      %p152 = scmp.ne.s32.totalorder %s143, %s144
      %p153 = scmp.eq.s32.totalorder %s23, 0
      %p154 = por %p152, %p153
      %p155 = scmp.ne.s32.totalorder %s143, %s144
      %p156 = scmp.eq.s32.totalorder %s24, 1
      %p157 = por %p155, %p156
      %p159 = scmp.ne.s32.totalorder %s144, %s158
      %p160 = scmp.eq.s32.totalorder %s24, 0
      %p161 = por %p159, %p160
      %s163 = sadd.s32 %s162, 1
      %p166 = scmp.eq.s32.totalorder %s18, 1
      %p167 = scmp.ne.s32.totalorder %s162, %s164
      %p168 = scmp.eq.s32.totalorder %s18, 0
      %p169 = por %p167, %p168
      %p170 = scmp.ne.s32.totalorder %s162, %s164
      %p171 = scmp.eq.s32.totalorder %s23, 1
      %p172 = por %p170, %p171
      %p173 = scmp.ne.s32.totalorder %s164, %s165
      %p174 = scmp.eq.s32.totalorder %s23, 0
      %p175 = por %p173, %p174
      %p176 = scmp.ne.s32.totalorder %s164, %s165
      %p177 = scmp.eq.s32.totalorder %s24, 1
      %p178 = por %p176, %p177
      %p180 = scmp.ne.s32.totalorder %s165, %s179
      %p181 = scmp.eq.s32.totalorder %s24, 0
      %p182 = por %p180, %p181
      %s183 = ssub.s32 %s18, %s25
      %p184 = scmp.eq.s32.totalorder %s183, 0
      %s186 = sadd.s32 %s185, 1
      %s187 = scalar_select %p184, %s185, %s186
      %p190 = pneg %p184
      %p191 = scmp.eq.s32.totalorder %s18, 1
      %p192 = por %p190, %p191
      %p193 = scmp.ne.s32.totalorder %s185, %s188
      %p194 = scmp.eq.s32.totalorder %s18, 0
      %p195 = por %p193, %p194
      %p196 = scmp.ne.s32.totalorder %s185, %s188
      %p197 = scmp.eq.s32.totalorder %s23, 1
      %p198 = por %p196, %p197
      %p199 = scmp.ne.s32.totalorder %s188, %s189
      %p200 = scmp.eq.s32.totalorder %s23, 0
      %p201 = por %p199, %p200
      %p202 = scmp.ne.s32.totalorder %s188, %s189
      %p203 = scmp.eq.s32.totalorder %s24, 1
      %p204 = por %p202, %p203
      %p206 = scmp.ne.s32.totalorder %s189, %s205
      %p207 = scmp.eq.s32.totalorder %s24, 0
      %p208 = por %p206, %p207
      %p209 = scmp.le.s32.totalorder 1, %s18
      %p210 = scmp.lt.s32.totalorder %s18, 3
      %p211 = pnand %p209, %p210
      %p212 = pneg %p211
      // Predicated region
      $region9: #{tpu_custom_call.1} parent=5 // pred_check
        _
      $region10: #{tpu_custom_call.1} parent=5 // pred_check_branch
        %214 = sbr.rel (%p211) target = $region12
      $region11: #{tpu_custom_call.1} parent=5 // pred_region
        %s215 = ssub.s32 %s18, 1
        // Predicated region
        $region13: #{tpu_custom_call.1} parent=11 // pred_check
          %p216 = pneg %p91
        $region14: #{tpu_custom_call.1} parent=11 // pred_check_branch
          %218 = sbr.rel (%p216) target = $region16
        $region15: #{tpu_custom_call.1} parent=11 // pred_region
          %s220 = ssub.s32 48, 48
          %221 = vsyncadd [#allocation5], %s220
          %s223 = sshll.u32 [#allocation4], 4
          %s224 = int_to_ptr.vmem [resolvable:$true] %s223
          %226 = dma.hbm_to_vmem [thread:$0]  %s2, 48, %s224, [#allocation5]
        $region16: #{tpu_custom_call.1} parent=11 // pred_fallthru
          _
        // Predicated region
        $region17: #{tpu_custom_call.1} parent=11 // pred_check
          %p227 = pneg %p112
        $region18: #{tpu_custom_call.1} parent=11 // pred_check_branch
          %229 = sbr.rel (%p227) target = $region20
        $region19: #{tpu_custom_call.1} parent=11 // pred_region
          _
        $region20: #{tpu_custom_call.1} parent=11 // pred_fallthru
          _
        // Predicated region
        $region21: #{tpu_custom_call.1} parent=11 // pred_check
          %p230 = pneg %p133
        $region22: #{tpu_custom_call.1} parent=11 // pred_check_branch
          %232 = sbr.rel (%p230) target = $region24
        $region23: #{tpu_custom_call.1} parent=11 // pred_region
          _
        $region24: #{tpu_custom_call.1} parent=11 // pred_fallthru
          _
        // Predicated region
        $region25: #{tpu_custom_call.1} parent=11 // pred_check
          %p233 = pneg %p154
        $region26: #{tpu_custom_call.1} parent=11 // pred_check_branch
          %235 = sbr.rel (%p233) target = $region28
        $region27: #{tpu_custom_call.1} parent=11 // pred_region
          %s237 = ssub.s32 128, 128
          %238 = vsyncadd [#allocation8], %s237
          %s239 = sshll.u32 [#allocation7], 4
          %s240 = int_to_ptr.vmem [resolvable:$true] %s239
          %245 = dma.hbm_to_vmem [thread:$0]  %s5, 128, %s240, [#allocation8], 64, 64, 4
        $region28: #{tpu_custom_call.1} parent=11 // pred_fallthru
          _
        // Predicated region
        $region29: #{tpu_custom_call.1} parent=11 // pred_check
          %p246 = pneg %p175
        $region30: #{tpu_custom_call.1} parent=11 // pred_check_branch
          %248 = sbr.rel (%p246) target = $region32
        $region31: #{tpu_custom_call.1} parent=11 // pred_region
          _
        $region32: #{tpu_custom_call.1} parent=11 // pred_fallthru
          _
      $region12: #{tpu_custom_call.1} parent=5 // pred_fallthru
        _
      %p249 = scmp.lt.s32.totalorder %s18, 2
      // Predicated region
      $region33: #{tpu_custom_call.1} parent=5 // pred_check
        %p250 = pneg %p249
      $region34: #{tpu_custom_call.1} parent=5 // pred_check_branch
        %252 = sbr.rel (%p250) target = $region36
      $region35: #{tpu_custom_call.1} parent=5 // pred_region
        // Predicated region
        $region37: #{tpu_custom_call.1} parent=35 // pred_check
          %p253 = pneg %p38
        $region38: #{tpu_custom_call.1} parent=35 // pred_check_branch
          %255 = sbr.rel (%p253) target = $region40
        $region39: #{tpu_custom_call.1} parent=35 // pred_region
          %s256 = smul.u32 2, %s18
          %p257 = scmp.lt.s32.totalorder %s256, 3
          %s258 = scalar_select %p257, %s256, 3
          %s259 = smul.addr %s258, 3
          %s260 = smul.addr %s259, 8
          %s261 = scalar_lea.vmem %s0, %s260
          %s262 = smul.u32 2, %s18
        $region40: #{tpu_custom_call.1} parent=35 // pred_fallthru
          _
        // Predicated region
        $region41: #{tpu_custom_call.1} parent=35 // pred_check
          %p263 = pneg %p64
        $region42: #{tpu_custom_call.1} parent=35 // pred_check_branch
          %265 = sbr.rel (%p263) target = $region44
        $region43: #{tpu_custom_call.1} parent=35 // pred_region
          %s266 = smul.u32 2, %s18
          %p267 = scmp.lt.s32.totalorder %s266, 3
          %s268 = scalar_select %p267, %s266, 3
          %s269 = smul.addr %s268, 2
          %s270 = smul.addr %s269, 8
          %s271 = scalar_lea.vmem %s1, %s270
          %s272 = smul.u32 2, %s18
        $region44: #{tpu_custom_call.1} parent=35 // pred_fallthru
          _
      $region36: #{tpu_custom_call.1} parent=5 // pred_fallthru
        _
      %p273 = scmp.le.s32.totalorder 1, %s18
      %p274 = scmp.lt.s32.totalorder %s18, 3
      %p275 = pnand %p273, %p274
      %p276 = pneg %p275
      // Predicated region
      $region45: #{tpu_custom_call.1} parent=5 // pred_check
        _
      $region46: #{tpu_custom_call.1} parent=5 // pred_check_branch
        %278 = sbr.rel (%p275) target = $region48
      $region47: #{tpu_custom_call.1} parent=5 // pred_region
        %s279 = ssub.s32 %s18, 1
        // Predicated region
        $region49: #{tpu_custom_call.1} parent=47 // pred_check
          %p280 = pneg %p91
        $region50: #{tpu_custom_call.1} parent=47 // pred_check_branch
          %282 = sbr.rel (%p280) target = $region52
        $region51: #{tpu_custom_call.1} parent=47 // pred_region
          %283 = dma.done [#allocation5], 48
        $region52: #{tpu_custom_call.1} parent=47 // pred_fallthru
          _
        // Predicated region
        $region53: #{tpu_custom_call.1} parent=47 // pred_check
          %p284 = pneg %p154
        $region54: #{tpu_custom_call.1} parent=47 // pred_check_branch
          %286 = sbr.rel (%p284) target = $region56
        $region55: #{tpu_custom_call.1} parent=47 // pred_region
          %287 = dma.done [#allocation8], 128
        $region56: #{tpu_custom_call.1} parent=47 // pred_fallthru
          _
        %s288 = smul.u32 2, %s23
        %p289 = scmp.lt.s32.totalorder %s288, 3
        %s290 = scalar_select %p289, %s288, 3
        %s291 = smul.addr %s290, 3
        %s292 = smul.addr %s291, 8
        %s293 = scalar_lea.vmem %s0, %s292
        %p294 = pneg %p44
        %p295 = pneg %p41
        %s296 = smul.u32 2, %s23
        %p297 = scmp.lt.s32.totalorder %s296, 3
        %s298 = scalar_select %p297, %s296, 3
        %s299 = smul.addr %s298, 2
        %s300 = smul.addr %s299, 8
        %s301 = scalar_lea.vmem %s1, %s300
        %p302 = pneg %p70
        %p303 = pneg %p67
        %p304 = pneg %p91
        %p305 = pneg %p88
        %p306 = pneg %p112
        %p307 = pneg %p109
        %p308 = pneg %p133
        %p309 = pneg %p130
        %p310 = pneg %p154
        %p311 = pneg %p151
        %p312 = pneg %p175
        %p313 = pneg %p172
        %p314 = pneg %p201
        %p315 = pneg %p198
        %s316 = sand.u32 %s188, 1
        %s317 = scalar_lea.sflag [#allocation6], %s316
        %s318 = sand.u32 %s188, 1
        %s319 = smul.addr %s318, 96
        %s320 = scalar_lea.vmem [#allocation9], %s319
        %s321 = smul.u32 2, %s23
        %p322 = scmp.lt.s32.totalorder %s321, 3
        %s323 = scalar_select %p322, %s321, 3
        %s324 = smul.addr %s323, 3
        %s325 = smul.addr %s324, 8
        %s326 = scalar_lea.vmem %s0, %s325
        %s327 = smul.u32 2, %s23
        %s328 = smul.u32 2, %s23
        %p329 = scmp.lt.s32.totalorder %s328, 3
        %s330 = scalar_select %p329, %s328, 3
        %s331 = smul.addr %s330, 2
        %s332 = smul.addr %s331, 8
        %s333 = scalar_lea.vmem %s1, %s332
        %s334 = smul.u32 2, %s23
        %s335 = smul.u32 2, %s23
        %v337 = vld [vmem:[#allocation4] sm:$0x7]
        %v338 = vld [vmem:[%s3] sm:$0xff]
        %v339 = vld [vmem:[%s4] sm:$0xff]
        %v340 = vld [vmem:[%s4 + $0x8] sm:$0xff]
        %v341 = vld [vmem:[%s326] sm:$0xff]
        %v342 = vld [vmem:[%s326 + $0x8] sm:$0xff]
        %v343 = vld [vmem:[%s326 + $0x10] sm:$0xff]
        %v344 = vadd.f32 %v341, %v342
        %vm345 = vcmask 703488
        %v346 = vsel %vm345, %v343, 0.0
        %v347 = vadd.f32 %v344, %v346
        %348 = vadd.xlane.f32.xlu0 %v347
        %v349 = vpop.xlane.xlu0 %348
        %v350 = vmul.f32 %v341, %v341
        %v351 = vmul.f32 %v342, %v342
        %v352 = vmul.f32 %v343, %v343
        %v353 = vadd.f32 %v350, %v351
        %v354 = vsel %vm345, %v352, 0.0
        %v355 = vadd.f32 %v353, %v354
        %356 = vadd.xlane.f32.xlu0 %v355
        %v357 = vpop.xlane.xlu0 %356
        %vm358 = vcmask 7168
        %v359 = vsel %vm358, %v349, %v357
        %v360 = vlaneseq
        %v361 = vshrl.u32 %v360, 7
        %vm362 = vcmp.ge.s32.totalorder %v361, 0
        %vm363 = vcmp.lt.s32.totalorder %v361, 2
        %vm364 = vmand %vm362, %vm363
        %v365 = vsel %vm364, 1, 0
        %vm366 = vcmp.eq.s32.totalorder %v365, 1
        %v367 = vsel %vm366, %v359, 0.0
        %vm368 = vcmask 15360
        %v369 = vsel %vm368, %v367, 0.0
        %v370 = vrot.slane %v369, 4
        %v371 = vadd.f32 %v369, %v370
        %v372 = vrot.slane %v371, 2
        %v373 = vadd.f32 %v371, %v372
        %v374 = vrot.slane %v373, 1
        %v375 = vadd.f32 %v373, %v374
        %s376 = vtos %v375
        %s377 = smul.f32 %s376, 0.001953125
        %378 = vrot.lane.b32.xlu0 %v375, 127
        %v379 = vpop.permute.xlu0 %378
        %s380 = vtos %v379
        %s381 = smul.f32 %s380, 0.001953125
        %s382 = smul.f32 %s377, %s377
        %s383 = ssub.f32 %s381, %s382
        %s384 = sadd.f32 %s383, 1e-05
        %v385 = vstv %s384
        %v386 = vrsqrt.pop %v385
        %s387 = vtos %v386
        %v388 = vstv %s377
        %v389 = vsel %vm364, %v388, 0.0
        %v390 = vstv %s387
        %v391 = vsel %vm364, %v390, 0.0
        %vm392 = vcmp.ge.s32.totalorder %v361, 2
        %vm393 = vcmp.lt.s32.totalorder %v361, 4
        %vm394 = vmand %vm392, %vm393
        %v395 = vsel %vm394, 1, 0
        %vm396 = vcmp.eq.s32.totalorder %v395, 1
        %v397 = vsel %vm396, %v359, 0.0
        %v398 = vsel %vm368, %v397, 0.0
        %v399 = vrot.slane %v398, 4
        %v400 = vadd.f32 %v398, %v399
        %v401 = vrot.slane %v400, 2
        %v402 = vadd.f32 %v400, %v401
        %v403 = vrot.slane %v402, 1
        %v404 = vadd.f32 %v402, %v403
        %s405 = vtos %v404
        %s406 = smul.f32 %s405, 0.001953125
        %407 = vrot.lane.b32.xlu0 %v404, 127
        %v408 = vpop.permute.xlu0 %407
        %s409 = vtos %v408
        %s410 = smul.f32 %s409, 0.001953125
        %s411 = smul.f32 %s406, %s406
        %s412 = ssub.f32 %s410, %s411
        %s413 = sadd.f32 %s412, 1e-05
        %v414 = vstv %s413
        %v415 = vrsqrt.pop %v414
        %s416 = vtos %v415
        %v417 = vstv %s406
        %v418 = vsel %vm394, %v417, %v389
        %v419 = vstv %s416
        %v420 = vsel %vm394, %v419, %v391
        %vm421 = vcmp.ge.s32.totalorder %v361, 4
        %vm422 = vcmp.lt.s32.totalorder %v361, 6
        %vm423 = vmand %vm421, %vm422
        %v424 = vsel %vm423, 1, 0
        %vm425 = vcmp.eq.s32.totalorder %v424, 1
        %v426 = vsel %vm425, %v359, 0.0
        %v427 = vsel %vm368, %v426, 0.0
        %v428 = vrot.slane %v427, 4
        %v429 = vadd.f32 %v427, %v428
        %v430 = vrot.slane %v429, 2
        %v431 = vadd.f32 %v429, %v430
        %v432 = vrot.slane %v431, 1
        %v433 = vadd.f32 %v431, %v432
        %s434 = vtos %v433
        %s435 = smul.f32 %s434, 0.001953125
        %436 = vrot.lane.b32.xlu0 %v433, 127
        %v437 = vpop.permute.xlu0 %436
        %s438 = vtos %v437
        %s439 = smul.f32 %s438, 0.001953125
        %s440 = smul.f32 %s435, %s435
        %s441 = ssub.f32 %s439, %s440
        %s442 = sadd.f32 %s441, 1e-05
        %v443 = vstv %s442
        %v444 = vrsqrt.pop %v443
        %s445 = vtos %v444
        %v446 = vstv %s435
        %v447 = vsel %vm423, %v446, %v418
        %v448 = vstv %s445
        %v449 = vsel %vm423, %v448, %v420
        %vm450 = vcmp.ge.s32.totalorder %v361, 6
        %vm451 = vcmp.lt.s32.totalorder %v361, 8
        %vm452 = vmand %vm450, %vm451
        %v453 = vsel %vm452, 1, 0
        %vm454 = vcmp.eq.s32.totalorder %v453, 1
        %v455 = vsel %vm454, %v359, 0.0
        %v456 = vsel %vm368, %v455, 0.0
        %v457 = vrot.slane %v456, 4
        %v458 = vadd.f32 %v456, %v457
        %v459 = vrot.slane %v458, 2
        %v460 = vadd.f32 %v458, %v459
        %v461 = vrot.slane %v460, 1
        %v462 = vadd.f32 %v460, %v461
        %s463 = vtos %v462
        %s464 = smul.f32 %s463, 0.001953125
        %465 = vrot.lane.b32.xlu0 %v462, 127
        %v466 = vpop.permute.xlu0 %465
        %s467 = vtos %v466
        %s468 = smul.f32 %s467, 0.001953125
        %s469 = smul.f32 %s464, %s464
        %s470 = ssub.f32 %s468, %s469
        %s471 = sadd.f32 %s470, 1e-05
        %v472 = vstv %s471
        %v473 = vrsqrt.pop %v472
        %s474 = vtos %v473
        %v475 = vstv %s464
        %v476 = vsel %vm452, %v475, %v447
        %v477 = vstv %s474
        %v478 = vsel %vm452, %v477, %v449
        %v479 = vsub.f32 %v341, %v476
        %v480 = vsub.f32 %v342, %v476
        %v481 = vsub.f32 %v343, %v476
        %v482 = vmul.f32 %v479, %v478
        %v483 = vmul.f32 %v480, %v478
        %v484 = vmul.f32 %v481, %v478
        %486 = vset.pattern.permute.xlu0 0
        %487 = vperm.xlu0 %486, %v338
        %v488 = vpop.permute.xlu0 %487
        %v490 = vmul.f32 %v482, %v488
        %v491 = vmul.f32 %v483, %v488
        %v492 = vmul.f32 %v484, %v488
        %493 = vset.pattern.permute.xlu0 1
        %494 = vperm.xlu0 %493, %v338
        %v495 = vpop.permute.xlu0 %494
        %v497 = vadd.f32 %v490, %v495
        %v498 = vadd.f32 %v491, %v495
        %v499 = vadd.f32 %v492, %v495
        %v500 = vsub.f32 0.0, %v497
        %v501 = vsub.f32 0.0, %v498
        %v502 = vsub.f32 0.0, %v499
        %v503 = vmul.f32 %v500, 1.442695
        %v504 = vpow.pop %v503
        %v505 = vmul.f32 %v501, 1.442695
        %v506 = vpow.pop %v505
        %v507 = vmul.f32 %v502, 1.442695
        %v508 = vpow.pop %v507
        %v509 = vadd.f32 %v504, 1.0
        %v510 = vadd.f32 %v506, 1.0
        %v511 = vadd.f32 %v508, 1.0
        %v512 = vrcp.pop %v509
        %v513 = vrcp.pop %v510
        %v514 = vrcp.pop %v511
        %v515 = vmul.f32 %v497, %v512
        %v516 = vmul.f32 %v498, %v513
        %v517 = vmul.f32 %v499, %v514
        %v519 = vlaneseq
        %v520 = vshrl.u32 %v519, 7
        %v521 = vsub.s32 0, %v520
        %v522 = vrot.slane %v337, %v521
        %v523 = vlaneseq
        %v524 = vshrl.u32 %v523, 7
        %v525 = vsub.s32 1, %v524
        %v526 = vrot.slane %v337, %v525
        %v527 = vlaneseq
        %v528 = vshrl.u32 %v527, 7
        %v529 = vsub.s32 2, %v528
        %v530 = vrot.slane %v337, %v529
        %v534 = vmul.f32 %v515, %v522
        %v535 = vmul.f32 %v516, %v526
        %v536 = vmul.f32 %v517, %v530
        %v537 = vpack.c.bf16 %v534, %v534
        %v538 = vpack.c.bf16 %v535, %v535
        %v539 = vpack.c.bf16 %v536, %v536
        %v543 = vunpack.c.l.b16 %v537
        %v544 = vunpack.c.l.b16 %v538
        %v545 = vunpack.c.l.b16 %v539
        %v546 = vpack.c.b16 %v544, %v543
        %v547 = vpack.c.b16 %v545, %v545
        %550 = vst [vmem:[#allocation2] sm:$0xff] %v546
        %vm551 = vcmask 699392
        %552 = vst.msk [vmem:[#allocation2 + $0x8] sm:$0xf] %vm551, %v547
        %v553 = vld [vmem:[#allocation7] sm:$0xf]
        %v554 = vld [vmem:[#allocation7 + $0x4] sm:$0xf]
        %v555 = vld [vmem:[#allocation2] sm:$0xff]
        %v556 = vld [vmem:[#allocation2 + $0x8] sm:$0xf]
        %v559 = vunpack.c.l.b16 %v553
        %v560 = vunpack.c.l.b16 %v554
        %v561 = vpack.c.b16 %v560, %v559
        %562 = vrot.lane.b32.xlu0 %v561, 120
        %v563 = vpop.permute.xlu0 %562
        %v566 = vunpack.c.l.b16 %v555
        %v567 = vunpack.c.h.b16 %v555
        %v568 = vunpack.c.l.b16 %v556
        %v569 = vpack.c.b16 %v566, %v566
        %v570 = vpack.c.b16 %v567, %v567
        %v571 = vpack.c.b16 %v568, %v568
        %572 = vrot.lane.b32.xlu0 %v569, 127
        %v573 = vpop.permute.xlu0 %572
        %574 = vrot.lane.b32.xlu0 %v570, 127
        %v575 = vpop.permute.xlu0 %574
        %576 = vrot.lane.b32.xlu0 %v571, 127
        %v577 = vpop.permute.xlu0 %576
        %vm578 = vcmask 1039360
        %v579 = vsel %vm578, %v573, %v575
        %v580 = vsel %vm578, %v575, %v577
        %vm581 = vcmask 64512
        %v583 = vsel %vm581, %v563, 0
        %vm585 = vcmask 1043456
        %v587 = vsel %vm585, %v579, 0
        %v590 = vsel %vm585, %v580, 0
        %v593 = vsel %vm585, %v577, 0
        %595 = vmatprep.subr.bf16.mxu0 %v590
        %596 = vmatpush1.bf16.msra.mxu0 %v587
        %597 = vmatprep.subr.bf16.mxu0 0
        %598 = vmatpush1.bf16.msra.mxu0 0
        %599 = vmatprep.subr.bf16.mxu0 0
        %600 = vmatpush1.bf16.msra.mxu0 0
        %601 = vmatprep.subr.bf16.mxu0 0
        %602 = vmatpush1.bf16.msra.mxu0 0
        %603 = vmatprep.subr.bf16.mxu0 0
        %604 = vmatpush1.bf16.msra.mxu0 0
        %605 = vmatprep.subr.bf16.mxu0 0
        %606 = vmatpush1.bf16.msra.mxu0 0
        %607 = vmatprep.subr.bf16.mxu0 0
        %608 = vmatpush1.bf16.msra.mxu0 0
        %609 = vmatprep.subr.bf16.mxu0 0
        %610 = vmatpush1.bf16.msra.mxu0 0
        %611 = vmatprep.subr.bf16.mxu0 0
        %612 = vmatpush1.bf16.msra.mxu0 0
        %613 = vmatprep.subr.bf16.mxu0 0
        %614 = vmatpush1.bf16.msra.mxu0 0
        %615 = vmatprep.subr.bf16.mxu0 0
        %616 = vmatpush1.bf16.msra.mxu0 0
        %617 = vmatprep.subr.bf16.mxu0 0
        %618 = vmatpush1.bf16.msra.mxu0 0
        %619 = vmatprep.subr.bf16.mxu0 0
        %620 = vmatpush1.bf16.msra.mxu0 0
        %621 = vmatprep.subr.bf16.mxu0 0
        %622 = vmatpush1.bf16.msra.mxu0 0
        %623 = vmatprep.subr.bf16.mxu0 0
        %624 = vmatpush1.bf16.msra.mxu0 0
        %625 = vmatprep.subr.bf16.mxu0 0
        %626 = vmatpush1.bf16.msra.mxu0 0
        %627 = vmatprep.mubr.bf16.mxu0 0
        %628 = vmatmul.mubr.bf16.gmra.mrb[0].mxu0 %v583
        %v629 = vpop.f32.mrb[0].mxu0
        %v630 = vadd.f32 0.0, %v629
        %v631 = vpop.f32.mrb[0].mxu0
        %v632 = vadd.f32 0.0, %v631
        %v633 = vpop.f32.mrb[0].mxu0
        %v634 = vadd.f32 0.0, %v633
        %v635 = vpop.f32.mrb[0].mxu0
        %v636 = vadd.f32 0.0, %v635
        %637 = vdwg.mxu0
        %638 = vmatprep.subr.bf16.mxu0 0
        %639 = vmatpush1.bf16.msra.mxu0 %v593
        %640 = vmatprep.subr.bf16.mxu0 0
        %641 = vmatpush1.bf16.msra.mxu0 0
        %642 = vmatprep.subr.bf16.mxu0 0
        %643 = vmatpush1.bf16.msra.mxu0 0
        %644 = vmatprep.subr.bf16.mxu0 0
        %645 = vmatpush1.bf16.msra.mxu0 0
        %646 = vmatprep.subr.bf16.mxu0 0
        %647 = vmatpush1.bf16.msra.mxu0 0
        %648 = vmatprep.subr.bf16.mxu0 0
        %649 = vmatpush1.bf16.msra.mxu0 0
        %650 = vmatprep.subr.bf16.mxu0 0
        %651 = vmatpush1.bf16.msra.mxu0 0
        %652 = vmatprep.subr.bf16.mxu0 0
        %653 = vmatpush1.bf16.msra.mxu0 0
        %654 = vmatprep.subr.bf16.mxu0 0
        %655 = vmatpush1.bf16.msra.mxu0 0
        %656 = vmatprep.subr.bf16.mxu0 0
        %657 = vmatpush1.bf16.msra.mxu0 0
        %658 = vmatprep.subr.bf16.mxu0 0
        %659 = vmatpush1.bf16.msra.mxu0 0
        %660 = vmatprep.subr.bf16.mxu0 0
        %661 = vmatpush1.bf16.msra.mxu0 0
        %662 = vmatprep.subr.bf16.mxu0 0
        %663 = vmatpush1.bf16.msra.mxu0 0
        %664 = vmatprep.subr.bf16.mxu0 0
        %665 = vmatpush1.bf16.msra.mxu0 0
        %666 = vmatprep.subr.bf16.mxu0 0
        %667 = vmatpush1.bf16.msra.mxu0 0
        %668 = vmatprep.subr.bf16.mxu0 0
        %669 = vmatpush1.bf16.msra.mxu0 0
        %670 = vmatprep.mubr.bf16.mxu0 0
        %671 = vmatmul.mubr.bf16.gmra.mrb[0].mxu0 %v583
        %v672 = vpop.f32.mrb[0].mxu0
        %v673 = vadd.f32 0.0, %v672
        %v674 = vpop.f32.mrb[0].mxu0
        %v675 = vpop.f32.mrb[0].mxu0
        %v676 = vadd.f32 0.0, %v675
        %v677 = vpop.f32.mrb[0].mxu0
        %678 = vdwg.mxu0
        %v680 = vsel %vm581, %v561, 0
        %v683 = vsel %vm585, %v569, 0
        %v686 = vsel %vm585, %v570, 0
        %v689 = vsel %vm585, %v571, 0
        %691 = vmatprep.subr.bf16.mxu0 %v686
        %692 = vmatpush1.bf16.msra.mxu0 %v683
        %693 = vmatprep.subr.bf16.mxu0 0
        %694 = vmatpush1.bf16.msra.mxu0 0
        %695 = vmatprep.subr.bf16.mxu0 0
        %696 = vmatpush1.bf16.msra.mxu0 0
        %697 = vmatprep.subr.bf16.mxu0 0
        %698 = vmatpush1.bf16.msra.mxu0 0
        %699 = vmatprep.subr.bf16.mxu0 0
        %700 = vmatpush1.bf16.msra.mxu0 0
        %701 = vmatprep.subr.bf16.mxu0 0
        %702 = vmatpush1.bf16.msra.mxu0 0
        %703 = vmatprep.subr.bf16.mxu0 0
        %704 = vmatpush1.bf16.msra.mxu0 0
        %705 = vmatprep.subr.bf16.mxu0 0
        %706 = vmatpush1.bf16.msra.mxu0 0
        %707 = vmatprep.subr.bf16.mxu0 0
        %708 = vmatpush1.bf16.msra.mxu0 0
        %709 = vmatprep.subr.bf16.mxu0 0
        %710 = vmatpush1.bf16.msra.mxu0 0
        %711 = vmatprep.subr.bf16.mxu0 0
        %712 = vmatpush1.bf16.msra.mxu0 0
        %713 = vmatprep.subr.bf16.mxu0 0
        %714 = vmatpush1.bf16.msra.mxu0 0
        %715 = vmatprep.subr.bf16.mxu0 0
        %716 = vmatpush1.bf16.msra.mxu0 0
        %717 = vmatprep.subr.bf16.mxu0 0
        %718 = vmatpush1.bf16.msra.mxu0 0
        %719 = vmatprep.subr.bf16.mxu0 0
        %720 = vmatpush1.bf16.msra.mxu0 0
        %721 = vmatprep.subr.bf16.mxu0 0
        %722 = vmatpush1.bf16.msra.mxu0 0
        %723 = vmatprep.mubr.bf16.mxu0 0
        %724 = vmatmul.mubr.bf16.gmra.mrb[0].mxu0 %v680
        %v725 = vpop.f32.mrb[0].mxu0
        %v726 = vadd.f32 %v630, %v725
        %v727 = vpop.f32.mrb[0].mxu0
        %v728 = vadd.f32 %v632, %v727
        %v729 = vpop.f32.mrb[0].mxu0
        %v730 = vadd.f32 %v634, %v729
        %v731 = vpop.f32.mrb[0].mxu0
        %v732 = vadd.f32 %v636, %v731
        %733 = vdwg.mxu0
        %734 = vmatprep.subr.bf16.mxu0 0
        %735 = vmatpush1.bf16.msra.mxu0 %v689
        %736 = vmatprep.subr.bf16.mxu0 0
        %737 = vmatpush1.bf16.msra.mxu0 0
        %738 = vmatprep.subr.bf16.mxu0 0
        %739 = vmatpush1.bf16.msra.mxu0 0
        %740 = vmatprep.subr.bf16.mxu0 0
        %741 = vmatpush1.bf16.msra.mxu0 0
        %742 = vmatprep.subr.bf16.mxu0 0
        %743 = vmatpush1.bf16.msra.mxu0 0
        %744 = vmatprep.subr.bf16.mxu0 0
        %745 = vmatpush1.bf16.msra.mxu0 0
        %746 = vmatprep.subr.bf16.mxu0 0
        %747 = vmatpush1.bf16.msra.mxu0 0
        %748 = vmatprep.subr.bf16.mxu0 0
        %749 = vmatpush1.bf16.msra.mxu0 0
        %750 = vmatprep.subr.bf16.mxu0 0
        %751 = vmatpush1.bf16.msra.mxu0 0
        %752 = vmatprep.subr.bf16.mxu0 0
        %753 = vmatpush1.bf16.msra.mxu0 0
        %754 = vmatprep.subr.bf16.mxu0 0
        %755 = vmatpush1.bf16.msra.mxu0 0
        %756 = vmatprep.subr.bf16.mxu0 0
        %757 = vmatpush1.bf16.msra.mxu0 0
        %758 = vmatprep.subr.bf16.mxu0 0
        %759 = vmatpush1.bf16.msra.mxu0 0
        %760 = vmatprep.subr.bf16.mxu0 0
        %761 = vmatpush1.bf16.msra.mxu0 0
        %762 = vmatprep.subr.bf16.mxu0 0
        %763 = vmatpush1.bf16.msra.mxu0 0
        %764 = vmatprep.subr.bf16.mxu0 0
        %765 = vmatpush1.bf16.msra.mxu0 0
        %766 = vmatprep.mubr.bf16.mxu0 0
        %767 = vmatmul.mubr.bf16.gmra.mrb[0].mxu0 %v680
        %v768 = vpop.f32.mrb[0].mxu0
        %v769 = vadd.f32 %v673, %v768
        %v770 = vpop.f32.mrb[0].mxu0
        %v771 = vpop.f32.mrb[0].mxu0
        %v772 = vadd.f32 %v676, %v771
        %v773 = vpop.f32.mrb[0].mxu0
        %774 = vdwg.mxu0
        %775 = vrot.lane.b32.xlu0 %v561, 112
        %v776 = vpop.permute.xlu0 %775
        %777 = vrot.lane.b32.xlu0 %v569, 126
        %v778 = vpop.permute.xlu0 %777
        %779 = vrot.lane.b32.xlu0 %v570, 126
        %v780 = vpop.permute.xlu0 %779
        %781 = vrot.lane.b32.xlu0 %v571, 126
        %v782 = vpop.permute.xlu0 %781
        %vm783 = vcmask 1031168
        %v784 = vsel %vm783, %v778, %v780
        %v785 = vsel %vm783, %v780, %v782
        %v787 = vsel %vm581, %v776, 0
        %v790 = vsel %vm585, %v784, 0
        %v793 = vsel %vm585, %v785, 0
        %v796 = vsel %vm585, %v782, 0
        %798 = vmatprep.subr.bf16.mxu0 %v793
        %799 = vmatpush1.bf16.msra.mxu0 %v790
        %800 = vmatprep.subr.bf16.mxu0 0
        %801 = vmatpush1.bf16.msra.mxu0 0
        %802 = vmatprep.subr.bf16.mxu0 0
        %803 = vmatpush1.bf16.msra.mxu0 0
        %804 = vmatprep.subr.bf16.mxu0 0
        %805 = vmatpush1.bf16.msra.mxu0 0
        %806 = vmatprep.subr.bf16.mxu0 0
        %807 = vmatpush1.bf16.msra.mxu0 0
        %808 = vmatprep.subr.bf16.mxu0 0
        %809 = vmatpush1.bf16.msra.mxu0 0
        %810 = vmatprep.subr.bf16.mxu0 0
        %811 = vmatpush1.bf16.msra.mxu0 0
        %812 = vmatprep.subr.bf16.mxu0 0
        %813 = vmatpush1.bf16.msra.mxu0 0
        %814 = vmatprep.subr.bf16.mxu0 0
        %815 = vmatpush1.bf16.msra.mxu0 0
        %816 = vmatprep.subr.bf16.mxu0 0
        %817 = vmatpush1.bf16.msra.mxu0 0
        %818 = vmatprep.subr.bf16.mxu0 0
        %819 = vmatpush1.bf16.msra.mxu0 0
        %820 = vmatprep.subr.bf16.mxu0 0
        %821 = vmatpush1.bf16.msra.mxu0 0
        %822 = vmatprep.subr.bf16.mxu0 0
        %823 = vmatpush1.bf16.msra.mxu0 0
        %824 = vmatprep.subr.bf16.mxu0 0
        %825 = vmatpush1.bf16.msra.mxu0 0
        %826 = vmatprep.subr.bf16.mxu0 0
        %827 = vmatpush1.bf16.msra.mxu0 0
        %828 = vmatprep.subr.bf16.mxu0 0
        %829 = vmatpush1.bf16.msra.mxu0 0
        %830 = vmatprep.mubr.bf16.mxu0 0
        %831 = vmatmul.mubr.bf16.gmra.mrb[0].mxu0 %v787
        %v832 = vpop.f32.mrb[0].mxu0
        %v833 = vadd.f32 0.0, %v832
        %v834 = vpop.f32.mrb[0].mxu0
        %v835 = vadd.f32 0.0, %v834
        %v836 = vpop.f32.mrb[0].mxu0
        %v837 = vadd.f32 0.0, %v836
        %v838 = vpop.f32.mrb[0].mxu0
        %v839 = vadd.f32 0.0, %v838
        %840 = vdwg.mxu0
        %841 = vmatprep.subr.bf16.mxu0 0
        %842 = vmatpush1.bf16.msra.mxu0 %v796
        %843 = vmatprep.subr.bf16.mxu0 0
        %844 = vmatpush1.bf16.msra.mxu0 0
        %845 = vmatprep.subr.bf16.mxu0 0
        %846 = vmatpush1.bf16.msra.mxu0 0
        %847 = vmatprep.subr.bf16.mxu0 0
        %848 = vmatpush1.bf16.msra.mxu0 0
        %849 = vmatprep.subr.bf16.mxu0 0
        %850 = vmatpush1.bf16.msra.mxu0 0
        %851 = vmatprep.subr.bf16.mxu0 0
        %852 = vmatpush1.bf16.msra.mxu0 0
        %853 = vmatprep.subr.bf16.mxu0 0
        %854 = vmatpush1.bf16.msra.mxu0 0
        %855 = vmatprep.subr.bf16.mxu0 0
        %856 = vmatpush1.bf16.msra.mxu0 0
        %857 = vmatprep.subr.bf16.mxu0 0
        %858 = vmatpush1.bf16.msra.mxu0 0
        %859 = vmatprep.subr.bf16.mxu0 0
        %860 = vmatpush1.bf16.msra.mxu0 0
        %861 = vmatprep.subr.bf16.mxu0 0
        %862 = vmatpush1.bf16.msra.mxu0 0
        %863 = vmatprep.subr.bf16.mxu0 0
        %864 = vmatpush1.bf16.msra.mxu0 0
        %865 = vmatprep.subr.bf16.mxu0 0
        %866 = vmatpush1.bf16.msra.mxu0 0
        %867 = vmatprep.subr.bf16.mxu0 0
        %868 = vmatpush1.bf16.msra.mxu0 0
        %869 = vmatprep.subr.bf16.mxu0 0
        %870 = vmatpush1.bf16.msra.mxu0 0
        %871 = vmatprep.subr.bf16.mxu0 0
        %872 = vmatpush1.bf16.msra.mxu0 0
        %873 = vmatprep.mubr.bf16.mxu0 0
        %874 = vmatmul.mubr.bf16.gmra.mrb[0].mxu0 %v787
        %v875 = vpop.f32.mrb[0].mxu0
        %v876 = vadd.f32 0.0, %v875
        %v877 = vpop.f32.mrb[0].mxu0
        %v878 = vpop.f32.mrb[0].mxu0
        %v879 = vadd.f32 0.0, %v878
        %v880 = vpop.f32.mrb[0].mxu0
        %881 = vdwg.mxu0
        %v882 = vadd.f32 %v726, %v833
        %v883 = vadd.f32 %v728, %v835
        %v884 = vadd.f32 %v769, %v876
        %v885 = vadd.f32 %v730, %v837
        %v886 = vadd.f32 %v732, %v839
        %v887 = vadd.f32 %v772, %v879
        %888 = vrot.lane.b32.xlu0 %v561, 104
        %v889 = vpop.permute.xlu0 %888
        %890 = vrot.lane.b32.xlu0 %v569, 110
        %v891 = vpop.permute.xlu0 %890
        %892 = vrot.lane.b32.xlu0 %v570, 110
        %v893 = vpop.permute.xlu0 %892
        %894 = vrot.lane.b32.xlu0 %v571, 110
        %v895 = vpop.permute.xlu0 %894
        %vm896 = vcmask 900096
        %v897 = vsel %vm896, %v891, %v893
        %v898 = vsel %vm896, %v893, %v895
        %v900 = vsel %vm581, %v889, 0
        %v903 = vsel %vm585, %v897, 0
        %v906 = vsel %vm585, %v898, 0
        %v909 = vsel %vm585, %v895, 0
        %911 = vmatprep.subr.bf16.mxu0 %v906
        %912 = vmatpush1.bf16.msra.mxu0 %v903
        %913 = vmatprep.subr.bf16.mxu0 0
        %914 = vmatpush1.bf16.msra.mxu0 0
        %915 = vmatprep.subr.bf16.mxu0 0
        %916 = vmatpush1.bf16.msra.mxu0 0
        %917 = vmatprep.subr.bf16.mxu0 0
        %918 = vmatpush1.bf16.msra.mxu0 0
        %919 = vmatprep.subr.bf16.mxu0 0
        %920 = vmatpush1.bf16.msra.mxu0 0
        %921 = vmatprep.subr.bf16.mxu0 0
        %922 = vmatpush1.bf16.msra.mxu0 0
        %923 = vmatprep.subr.bf16.mxu0 0
        %924 = vmatpush1.bf16.msra.mxu0 0
        %925 = vmatprep.subr.bf16.mxu0 0
        %926 = vmatpush1.bf16.msra.mxu0 0
        %927 = vmatprep.subr.bf16.mxu0 0
        %928 = vmatpush1.bf16.msra.mxu0 0
        %929 = vmatprep.subr.bf16.mxu0 0
        %930 = vmatpush1.bf16.msra.mxu0 0
        %931 = vmatprep.subr.bf16.mxu0 0
        %932 = vmatpush1.bf16.msra.mxu0 0
        %933 = vmatprep.subr.bf16.mxu0 0
        %934 = vmatpush1.bf16.msra.mxu0 0
        %935 = vmatprep.subr.bf16.mxu0 0
        %936 = vmatpush1.bf16.msra.mxu0 0
        %937 = vmatprep.subr.bf16.mxu0 0
        %938 = vmatpush1.bf16.msra.mxu0 0
        %939 = vmatprep.subr.bf16.mxu0 0
        %940 = vmatpush1.bf16.msra.mxu0 0
        %941 = vmatprep.subr.bf16.mxu0 0
        %942 = vmatpush1.bf16.msra.mxu0 0
        %943 = vmatprep.mubr.bf16.mxu0 0
        %944 = vmatmul.mubr.bf16.gmra.mrb[0].mxu0 %v900
        %v945 = vpop.f32.mrb[0].mxu0
        %v946 = vadd.f32 0.0, %v945
        %v947 = vpop.f32.mrb[0].mxu0
        %v948 = vadd.f32 0.0, %v947
        %v949 = vpop.f32.mrb[0].mxu0
        %v950 = vadd.f32 0.0, %v949
        %v951 = vpop.f32.mrb[0].mxu0
        %v952 = vadd.f32 0.0, %v951
        %953 = vdwg.mxu0
        %954 = vmatprep.subr.bf16.mxu0 0
        %955 = vmatpush1.bf16.msra.mxu0 %v909
        %956 = vmatprep.subr.bf16.mxu0 0
        %957 = vmatpush1.bf16.msra.mxu0 0
        %958 = vmatprep.subr.bf16.mxu0 0
        %959 = vmatpush1.bf16.msra.mxu0 0
        %960 = vmatprep.subr.bf16.mxu0 0
        %961 = vmatpush1.bf16.msra.mxu0 0
        %962 = vmatprep.subr.bf16.mxu0 0
        %963 = vmatpush1.bf16.msra.mxu0 0
        %964 = vmatprep.subr.bf16.mxu0 0
        %965 = vmatpush1.bf16.msra.mxu0 0
        %966 = vmatprep.subr.bf16.mxu0 0
        %967 = vmatpush1.bf16.msra.mxu0 0
        %968 = vmatprep.subr.bf16.mxu0 0
        %969 = vmatpush1.bf16.msra.mxu0 0
        %970 = vmatprep.subr.bf16.mxu0 0
        %971 = vmatpush1.bf16.msra.mxu0 0
        %972 = vmatprep.subr.bf16.mxu0 0
        %973 = vmatpush1.bf16.msra.mxu0 0
        %974 = vmatprep.subr.bf16.mxu0 0
        %975 = vmatpush1.bf16.msra.mxu0 0
        %976 = vmatprep.subr.bf16.mxu0 0
        %977 = vmatpush1.bf16.msra.mxu0 0
        %978 = vmatprep.subr.bf16.mxu0 0
        %979 = vmatpush1.bf16.msra.mxu0 0
        %980 = vmatprep.subr.bf16.mxu0 0
        %981 = vmatpush1.bf16.msra.mxu0 0
        %982 = vmatprep.subr.bf16.mxu0 0
        %983 = vmatpush1.bf16.msra.mxu0 0
        %984 = vmatprep.subr.bf16.mxu0 0
        %985 = vmatpush1.bf16.msra.mxu0 0
        %986 = vmatprep.mubr.bf16.mxu0 0
        %987 = vmatmul.mubr.bf16.gmra.mrb[0].mxu0 %v900
        %v988 = vpop.f32.mrb[0].mxu0
        %v989 = vadd.f32 0.0, %v988
        %v990 = vpop.f32.mrb[0].mxu0
        %v991 = vpop.f32.mrb[0].mxu0
        %v992 = vadd.f32 0.0, %v991
        %v993 = vpop.f32.mrb[0].mxu0
        %994 = vdwg.mxu0
        %v995 = vadd.f32 %v882, %v946
        %v996 = vadd.f32 %v883, %v948
        %v997 = vadd.f32 %v884, %v989
        %v998 = vadd.f32 %v885, %v950
        %v999 = vadd.f32 %v886, %v952
        %v1000 = vadd.f32 %v887, %v992
        %1001 = vrot.lane.b32.xlu0 %v561, 96
        %v1002 = vpop.permute.xlu0 %1001
        %1003 = vrot.lane.b32.xlu0 %v569, 109
        %v1004 = vpop.permute.xlu0 %1003
        %1005 = vrot.lane.b32.xlu0 %v570, 109
        %v1006 = vpop.permute.xlu0 %1005
        %1007 = vrot.lane.b32.xlu0 %v571, 109
        %v1008 = vpop.permute.xlu0 %1007
        %vm1009 = vcmask 891904
        %v1010 = vsel %vm1009, %v1004, %v1006
        %v1011 = vsel %vm1009, %v1006, %v1008
        %v1013 = vsel %vm581, %v1002, 0
        %v1016 = vsel %vm585, %v1010, 0
        %v1019 = vsel %vm585, %v1011, 0
        %v1022 = vsel %vm585, %v1008, 0
        %1024 = vmatprep.subr.bf16.mxu0 %v1019
        %1025 = vmatpush1.bf16.msra.mxu0 %v1016
        %1026 = vmatprep.subr.bf16.mxu0 0
        %1027 = vmatpush1.bf16.msra.mxu0 0
        %1028 = vmatprep.subr.bf16.mxu0 0
        %1029 = vmatpush1.bf16.msra.mxu0 0
        %1030 = vmatprep.subr.bf16.mxu0 0
        %1031 = vmatpush1.bf16.msra.mxu0 0
        %1032 = vmatprep.subr.bf16.mxu0 0
        %1033 = vmatpush1.bf16.msra.mxu0 0
        %1034 = vmatprep.subr.bf16.mxu0 0
        %1035 = vmatpush1.bf16.msra.mxu0 0
        %1036 = vmatprep.subr.bf16.mxu0 0
        %1037 = vmatpush1.bf16.msra.mxu0 0
        %1038 = vmatprep.subr.bf16.mxu0 0
        %1039 = vmatpush1.bf16.msra.mxu0 0
        %1040 = vmatprep.subr.bf16.mxu0 0
        %1041 = vmatpush1.bf16.msra.mxu0 0
        %1042 = vmatprep.subr.bf16.mxu0 0
        %1043 = vmatpush1.bf16.msra.mxu0 0
        %1044 = vmatprep.subr.bf16.mxu0 0
        %1045 = vmatpush1.bf16.msra.mxu0 0
        %1046 = vmatprep.subr.bf16.mxu0 0
        %1047 = vmatpush1.bf16.msra.mxu0 0
        %1048 = vmatprep.subr.bf16.mxu0 0
        %1049 = vmatpush1.bf16.msra.mxu0 0
        %1050 = vmatprep.subr.bf16.mxu0 0
        %1051 = vmatpush1.bf16.msra.mxu0 0
        %1052 = vmatprep.subr.bf16.mxu0 0
        %1053 = vmatpush1.bf16.msra.mxu0 0
        %1054 = vmatprep.subr.bf16.mxu0 0
        %1055 = vmatpush1.bf16.msra.mxu0 0
        %1056 = vmatprep.mubr.bf16.mxu0 0
        %1057 = vmatmul.mubr.bf16.gmra.mrb[0].mxu0 %v1013
        %v1058 = vpop.f32.mrb[0].mxu0
        %v1059 = vadd.f32 0.0, %v1058
        %v1060 = vpop.f32.mrb[0].mxu0
        %v1061 = vadd.f32 0.0, %v1060
        %v1062 = vpop.f32.mrb[0].mxu0
        %v1063 = vadd.f32 0.0, %v1062
        %v1064 = vpop.f32.mrb[0].mxu0
        %v1065 = vadd.f32 0.0, %v1064
        %1066 = vdwg.mxu0
        %1067 = vmatprep.subr.bf16.mxu0 0
        %1068 = vmatpush1.bf16.msra.mxu0 %v1022
        %1069 = vmatprep.subr.bf16.mxu0 0
        %1070 = vmatpush1.bf16.msra.mxu0 0
        %1071 = vmatprep.subr.bf16.mxu0 0
        %1072 = vmatpush1.bf16.msra.mxu0 0
        %1073 = vmatprep.subr.bf16.mxu0 0
        %1074 = vmatpush1.bf16.msra.mxu0 0
        %1075 = vmatprep.subr.bf16.mxu0 0
        %1076 = vmatpush1.bf16.msra.mxu0 0
        %1077 = vmatprep.subr.bf16.mxu0 0
        %1078 = vmatpush1.bf16.msra.mxu0 0
        %1079 = vmatprep.subr.bf16.mxu0 0
        %1080 = vmatpush1.bf16.msra.mxu0 0
        %1081 = vmatprep.subr.bf16.mxu0 0
        %1082 = vmatpush1.bf16.msra.mxu0 0
        %1083 = vmatprep.subr.bf16.mxu0 0
        %1084 = vmatpush1.bf16.msra.mxu0 0
        %1085 = vmatprep.subr.bf16.mxu0 0
        %1086 = vmatpush1.bf16.msra.mxu0 0
        %1087 = vmatprep.subr.bf16.mxu0 0
        %1088 = vmatpush1.bf16.msra.mxu0 0
        %1089 = vmatprep.subr.bf16.mxu0 0
        %1090 = vmatpush1.bf16.msra.mxu0 0
        %1091 = vmatprep.subr.bf16.mxu0 0
        %1092 = vmatpush1.bf16.msra.mxu0 0
        %1093 = vmatprep.subr.bf16.mxu0 0
        %1094 = vmatpush1.bf16.msra.mxu0 0
        %1095 = vmatprep.subr.bf16.mxu0 0
        %1096 = vmatpush1.bf16.msra.mxu0 0
        %1097 = vmatprep.subr.bf16.mxu0 0
        %1098 = vmatpush1.bf16.msra.mxu0 0
        %1099 = vmatprep.mubr.bf16.mxu0 0
        %1100 = vmatmul.mubr.bf16.gmra.mrb[0].mxu0 %v1013
        %v1101 = vpop.f32.mrb[0].mxu0
        %v1102 = vadd.f32 0.0, %v1101
        %v1103 = vpop.f32.mrb[0].mxu0
        %v1104 = vpop.f32.mrb[0].mxu0
        %v1105 = vadd.f32 0.0, %v1104
        %v1106 = vpop.f32.mrb[0].mxu0
        %1107 = vdwg.mxu0
        %v1108 = vadd.f32 %v995, %v1059
        %v1109 = vadd.f32 %v996, %v1061
        %v1110 = vadd.f32 %v997, %v1102
        %v1111 = vadd.f32 %v998, %v1063
        %v1112 = vadd.f32 %v999, %v1065
        %v1113 = vadd.f32 %v1000, %v1105
        %1114 = vrot.lane.b32.xlu0 %v561, 88
        %v1115 = vpop.permute.xlu0 %1114
        %1116 = vrot.lane.b32.xlu0 %v569, 108
        %v1117 = vpop.permute.xlu0 %1116
        %1118 = vrot.lane.b32.xlu0 %v570, 108
        %v1119 = vpop.permute.xlu0 %1118
        %1120 = vrot.lane.b32.xlu0 %v571, 108
        %v1121 = vpop.permute.xlu0 %1120
        %vm1122 = vcmask 883712
        %v1123 = vsel %vm1122, %v1117, %v1119
        %v1124 = vsel %vm1122, %v1119, %v1121
        %v1126 = vsel %vm581, %v1115, 0
        %v1129 = vsel %vm585, %v1123, 0
        %v1132 = vsel %vm585, %v1124, 0
        %v1135 = vsel %vm585, %v1121, 0
        %1137 = vmatprep.subr.bf16.mxu0 %v1132
        %1138 = vmatpush1.bf16.msra.mxu0 %v1129
        %1139 = vmatprep.subr.bf16.mxu0 0
        %1140 = vmatpush1.bf16.msra.mxu0 0
        %1141 = vmatprep.subr.bf16.mxu0 0
        %1142 = vmatpush1.bf16.msra.mxu0 0
        %1143 = vmatprep.subr.bf16.mxu0 0
        %1144 = vmatpush1.bf16.msra.mxu0 0
        %1145 = vmatprep.subr.bf16.mxu0 0
        %1146 = vmatpush1.bf16.msra.mxu0 0
        %1147 = vmatprep.subr.bf16.mxu0 0
        %1148 = vmatpush1.bf16.msra.mxu0 0
        %1149 = vmatprep.subr.bf16.mxu0 0
        %1150 = vmatpush1.bf16.msra.mxu0 0
        %1151 = vmatprep.subr.bf16.mxu0 0
        %1152 = vmatpush1.bf16.msra.mxu0 0
        %1153 = vmatprep.subr.bf16.mxu0 0
        %1154 = vmatpush1.bf16.msra.mxu0 0
        %1155 = vmatprep.subr.bf16.mxu0 0
        %1156 = vmatpush1.bf16.msra.mxu0 0
        %1157 = vmatprep.subr.bf16.mxu0 0
        %1158 = vmatpush1.bf16.msra.mxu0 0
        %1159 = vmatprep.subr.bf16.mxu0 0
        %1160 = vmatpush1.bf16.msra.mxu0 0
        %1161 = vmatprep.subr.bf16.mxu0 0
        %1162 = vmatpush1.bf16.msra.mxu0 0
        %1163 = vmatprep.subr.bf16.mxu0 0
        %1164 = vmatpush1.bf16.msra.mxu0 0
        %1165 = vmatprep.subr.bf16.mxu0 0
        %1166 = vmatpush1.bf16.msra.mxu0 0
        %1167 = vmatprep.subr.bf16.mxu0 0
        %1168 = vmatpush1.bf16.msra.mxu0 0
        %1169 = vmatprep.mubr.bf16.mxu0 0
        %1170 = vmatmul.mubr.bf16.gmra.mrb[0].mxu0 %v1126
        %v1171 = vpop.f32.mrb[0].mxu0
        %v1172 = vadd.f32 0.0, %v1171
        %v1173 = vpop.f32.mrb[0].mxu0
        %v1174 = vadd.f32 0.0, %v1173
        %v1175 = vpop.f32.mrb[0].mxu0
        %v1176 = vadd.f32 0.0, %v1175
        %v1177 = vpop.f32.mrb[0].mxu0
        %v1178 = vadd.f32 0.0, %v1177
        %1179 = vdwg.mxu0
        %1180 = vmatprep.subr.bf16.mxu0 0
        %1181 = vmatpush1.bf16.msra.mxu0 %v1135
        %1182 = vmatprep.subr.bf16.mxu0 0
        %1183 = vmatpush1.bf16.msra.mxu0 0
        %1184 = vmatprep.subr.bf16.mxu0 0
        %1185 = vmatpush1.bf16.msra.mxu0 0
        %1186 = vmatprep.subr.bf16.mxu0 0
        %1187 = vmatpush1.bf16.msra.mxu0 0
        %1188 = vmatprep.subr.bf16.mxu0 0
        %1189 = vmatpush1.bf16.msra.mxu0 0
        %1190 = vmatprep.subr.bf16.mxu0 0
        %1191 = vmatpush1.bf16.msra.mxu0 0
        %1192 = vmatprep.subr.bf16.mxu0 0
        %1193 = vmatpush1.bf16.msra.mxu0 0
        %1194 = vmatprep.subr.bf16.mxu0 0
        %1195 = vmatpush1.bf16.msra.mxu0 0
        %1196 = vmatprep.subr.bf16.mxu0 0
        %1197 = vmatpush1.bf16.msra.mxu0 0
        %1198 = vmatprep.subr.bf16.mxu0 0
        %1199 = vmatpush1.bf16.msra.mxu0 0
        %1200 = vmatprep.subr.bf16.mxu0 0
        %1201 = vmatpush1.bf16.msra.mxu0 0
        %1202 = vmatprep.subr.bf16.mxu0 0
        %1203 = vmatpush1.bf16.msra.mxu0 0
        %1204 = vmatprep.subr.bf16.mxu0 0
        %1205 = vmatpush1.bf16.msra.mxu0 0
        %1206 = vmatprep.subr.bf16.mxu0 0
        %1207 = vmatpush1.bf16.msra.mxu0 0
        %1208 = vmatprep.subr.bf16.mxu0 0
        %1209 = vmatpush1.bf16.msra.mxu0 0
        %1210 = vmatprep.subr.bf16.mxu0 0
        %1211 = vmatpush1.bf16.msra.mxu0 0
        %1212 = vmatprep.mubr.bf16.mxu0 0
        %1213 = vmatmul.mubr.bf16.gmra.mrb[0].mxu0 %v1126
        %v1214 = vpop.f32.mrb[0].mxu0
        %v1215 = vadd.f32 0.0, %v1214
        %v1216 = vpop.f32.mrb[0].mxu0
        %v1217 = vpop.f32.mrb[0].mxu0
        %v1218 = vadd.f32 0.0, %v1217
        %v1219 = vpop.f32.mrb[0].mxu0
        %1220 = vdwg.mxu0
        %v1221 = vadd.f32 %v1108, %v1172
        %v1222 = vadd.f32 %v1109, %v1174
        %v1223 = vadd.f32 %v1110, %v1215
        %v1224 = vadd.f32 %v1111, %v1176
        %v1225 = vadd.f32 %v1112, %v1178
        %v1226 = vadd.f32 %v1113, %v1218
        %1227 = vrot.lane.b32.xlu0 %v561, 80
        %v1228 = vpop.permute.xlu0 %1227
        %1229 = vrot.lane.b32.xlu0 %v569, 92
        %v1230 = vpop.permute.xlu0 %1229
        %1231 = vrot.lane.b32.xlu0 %v570, 92
        %v1232 = vpop.permute.xlu0 %1231
        %1233 = vrot.lane.b32.xlu0 %v571, 92
        %v1234 = vpop.permute.xlu0 %1233
        %vm1235 = vcmask 752640
        %v1236 = vsel %vm1235, %v1230, %v1232
        %v1237 = vsel %vm1235, %v1232, %v1234
        %v1239 = vsel %vm581, %v1228, 0
        %v1242 = vsel %vm585, %v1236, 0
        %v1245 = vsel %vm585, %v1237, 0
        %v1248 = vsel %vm585, %v1234, 0
        %1250 = vmatprep.subr.bf16.mxu0 %v1245
        %1251 = vmatpush1.bf16.msra.mxu0 %v1242
        %1252 = vmatprep.subr.bf16.mxu0 0
        %1253 = vmatpush1.bf16.msra.mxu0 0
        %1254 = vmatprep.subr.bf16.mxu0 0
        %1255 = vmatpush1.bf16.msra.mxu0 0
        %1256 = vmatprep.subr.bf16.mxu0 0
        %1257 = vmatpush1.bf16.msra.mxu0 0
        %1258 = vmatprep.subr.bf16.mxu0 0
        %1259 = vmatpush1.bf16.msra.mxu0 0
        %1260 = vmatprep.subr.bf16.mxu0 0
        %1261 = vmatpush1.bf16.msra.mxu0 0
        %1262 = vmatprep.subr.bf16.mxu0 0
        %1263 = vmatpush1.bf16.msra.mxu0 0
        %1264 = vmatprep.subr.bf16.mxu0 0
        %1265 = vmatpush1.bf16.msra.mxu0 0
        %1266 = vmatprep.subr.bf16.mxu0 0
        %1267 = vmatpush1.bf16.msra.mxu0 0
        %1268 = vmatprep.subr.bf16.mxu0 0
        %1269 = vmatpush1.bf16.msra.mxu0 0
        %1270 = vmatprep.subr.bf16.mxu0 0
        %1271 = vmatpush1.bf16.msra.mxu0 0
        %1272 = vmatprep.subr.bf16.mxu0 0
        %1273 = vmatpush1.bf16.msra.mxu0 0
        %1274 = vmatprep.subr.bf16.mxu0 0
        %1275 = vmatpush1.bf16.msra.mxu0 0
        %1276 = vmatprep.subr.bf16.mxu0 0
        %1277 = vmatpush1.bf16.msra.mxu0 0
        %1278 = vmatprep.subr.bf16.mxu0 0
        %1279 = vmatpush1.bf16.msra.mxu0 0
        %1280 = vmatprep.subr.bf16.mxu0 0
        %1281 = vmatpush1.bf16.msra.mxu0 0
        %1282 = vmatprep.mubr.bf16.mxu0 0
        %1283 = vmatmul.mubr.bf16.gmra.mrb[0].mxu0 %v1239
        %v1284 = vpop.f32.mrb[0].mxu0
        %v1285 = vadd.f32 0.0, %v1284
        %v1286 = vpop.f32.mrb[0].mxu0
        %v1287 = vadd.f32 0.0, %v1286
        %v1288 = vpop.f32.mrb[0].mxu0
        %v1289 = vadd.f32 0.0, %v1288
        %v1290 = vpop.f32.mrb[0].mxu0
        %v1291 = vadd.f32 0.0, %v1290
        %1292 = vdwg.mxu0
        %1293 = vmatprep.subr.bf16.mxu0 0
        %1294 = vmatpush1.bf16.msra.mxu0 %v1248
        %1295 = vmatprep.subr.bf16.mxu0 0
        %1296 = vmatpush1.bf16.msra.mxu0 0
        %1297 = vmatprep.subr.bf16.mxu0 0
        %1298 = vmatpush1.bf16.msra.mxu0 0
        %1299 = vmatprep.subr.bf16.mxu0 0
        %1300 = vmatpush1.bf16.msra.mxu0 0
        %1301 = vmatprep.subr.bf16.mxu0 0
        %1302 = vmatpush1.bf16.msra.mxu0 0
        %1303 = vmatprep.subr.bf16.mxu0 0
        %1304 = vmatpush1.bf16.msra.mxu0 0
        %1305 = vmatprep.subr.bf16.mxu0 0
        %1306 = vmatpush1.bf16.msra.mxu0 0
        %1307 = vmatprep.subr.bf16.mxu0 0
        %1308 = vmatpush1.bf16.msra.mxu0 0
        %1309 = vmatprep.subr.bf16.mxu0 0
        %1310 = vmatpush1.bf16.msra.mxu0 0
        %1311 = vmatprep.subr.bf16.mxu0 0
        %1312 = vmatpush1.bf16.msra.mxu0 0
        %1313 = vmatprep.subr.bf16.mxu0 0
        %1314 = vmatpush1.bf16.msra.mxu0 0
        %1315 = vmatprep.subr.bf16.mxu0 0
        %1316 = vmatpush1.bf16.msra.mxu0 0
        %1317 = vmatprep.subr.bf16.mxu0 0
        %1318 = vmatpush1.bf16.msra.mxu0 0
        %1319 = vmatprep.subr.bf16.mxu0 0
        %1320 = vmatpush1.bf16.msra.mxu0 0
        %1321 = vmatprep.subr.bf16.mxu0 0
        %1322 = vmatpush1.bf16.msra.mxu0 0
        %1323 = vmatprep.subr.bf16.mxu0 0
        %1324 = vmatpush1.bf16.msra.mxu0 0
        %1325 = vmatprep.mubr.bf16.mxu0 0
        %1326 = vmatmul.mubr.bf16.gmra.mrb[0].mxu0 %v1239
        %v1327 = vpop.f32.mrb[0].mxu0
        %v1328 = vadd.f32 0.0, %v1327
        %v1329 = vpop.f32.mrb[0].mxu0
        %v1330 = vpop.f32.mrb[0].mxu0
        %v1331 = vadd.f32 0.0, %v1330
        %v1332 = vpop.f32.mrb[0].mxu0
        %1333 = vdwg.mxu0
        %v1334 = vadd.f32 %v1221, %v1285
        %v1335 = vadd.f32 %v1222, %v1287
        %v1336 = vadd.f32 %v1223, %v1328
        %v1337 = vadd.f32 %v1224, %v1289
        %v1338 = vadd.f32 %v1225, %v1291
        %v1339 = vadd.f32 %v1226, %v1331
        %1340 = vrot.lane.b32.xlu0 %v561, 72
        %v1341 = vpop.permute.xlu0 %1340
        %1342 = vrot.lane.b32.xlu0 %v569, 91
        %v1343 = vpop.permute.xlu0 %1342
        %1344 = vrot.lane.b32.xlu0 %v570, 91
        %v1345 = vpop.permute.xlu0 %1344
        %1346 = vrot.lane.b32.xlu0 %v571, 91
        %v1347 = vpop.permute.xlu0 %1346
        %vm1348 = vcmask 744448
        %v1349 = vsel %vm1348, %v1343, %v1345
        %v1350 = vsel %vm1348, %v1345, %v1347
        %v1352 = vsel %vm581, %v1341, 0
        %v1355 = vsel %vm585, %v1349, 0
        %v1358 = vsel %vm585, %v1350, 0
        %v1361 = vsel %vm585, %v1347, 0
        %1363 = vmatprep.subr.bf16.mxu0 %v1358
        %1364 = vmatpush1.bf16.msra.mxu0 %v1355
        %1365 = vmatprep.subr.bf16.mxu0 0
        %1366 = vmatpush1.bf16.msra.mxu0 0
        %1367 = vmatprep.subr.bf16.mxu0 0
        %1368 = vmatpush1.bf16.msra.mxu0 0
        %1369 = vmatprep.subr.bf16.mxu0 0
        %1370 = vmatpush1.bf16.msra.mxu0 0
        %1371 = vmatprep.subr.bf16.mxu0 0
        %1372 = vmatpush1.bf16.msra.mxu0 0
        %1373 = vmatprep.subr.bf16.mxu0 0
        %1374 = vmatpush1.bf16.msra.mxu0 0
        %1375 = vmatprep.subr.bf16.mxu0 0
        %1376 = vmatpush1.bf16.msra.mxu0 0
        %1377 = vmatprep.subr.bf16.mxu0 0
        %1378 = vmatpush1.bf16.msra.mxu0 0
        %1379 = vmatprep.subr.bf16.mxu0 0
        %1380 = vmatpush1.bf16.msra.mxu0 0
        %1381 = vmatprep.subr.bf16.mxu0 0
        %1382 = vmatpush1.bf16.msra.mxu0 0
        %1383 = vmatprep.subr.bf16.mxu0 0
        %1384 = vmatpush1.bf16.msra.mxu0 0
        %1385 = vmatprep.subr.bf16.mxu0 0
        %1386 = vmatpush1.bf16.msra.mxu0 0
        %1387 = vmatprep.subr.bf16.mxu0 0
        %1388 = vmatpush1.bf16.msra.mxu0 0
        %1389 = vmatprep.subr.bf16.mxu0 0
        %1390 = vmatpush1.bf16.msra.mxu0 0
        %1391 = vmatprep.subr.bf16.mxu0 0
        %1392 = vmatpush1.bf16.msra.mxu0 0
        %1393 = vmatprep.subr.bf16.mxu0 0
        %1394 = vmatpush1.bf16.msra.mxu0 0
        %1395 = vmatprep.mubr.bf16.mxu0 0
        %1396 = vmatmul.mubr.bf16.gmra.mrb[0].mxu0 %v1352
        %v1397 = vpop.f32.mrb[0].mxu0
        %v1398 = vadd.f32 0.0, %v1397
        %v1399 = vpop.f32.mrb[0].mxu0
        %v1400 = vadd.f32 0.0, %v1399
        %v1401 = vpop.f32.mrb[0].mxu0
        %v1402 = vadd.f32 0.0, %v1401
        %v1403 = vpop.f32.mrb[0].mxu0
        %v1404 = vadd.f32 0.0, %v1403
        %1405 = vdwg.mxu0
        %1406 = vmatprep.subr.bf16.mxu0 0
        %1407 = vmatpush1.bf16.msra.mxu0 %v1361
        %1408 = vmatprep.subr.bf16.mxu0 0
        %1409 = vmatpush1.bf16.msra.mxu0 0
        %1410 = vmatprep.subr.bf16.mxu0 0
        %1411 = vmatpush1.bf16.msra.mxu0 0
        %1412 = vmatprep.subr.bf16.mxu0 0
        %1413 = vmatpush1.bf16.msra.mxu0 0
        %1414 = vmatprep.subr.bf16.mxu0 0
        %1415 = vmatpush1.bf16.msra.mxu0 0
        %1416 = vmatprep.subr.bf16.mxu0 0
        %1417 = vmatpush1.bf16.msra.mxu0 0
        %1418 = vmatprep.subr.bf16.mxu0 0
        %1419 = vmatpush1.bf16.msra.mxu0 0
        %1420 = vmatprep.subr.bf16.mxu0 0
        %1421 = vmatpush1.bf16.msra.mxu0 0
        %1422 = vmatprep.subr.bf16.mxu0 0
        %1423 = vmatpush1.bf16.msra.mxu0 0
        %1424 = vmatprep.subr.bf16.mxu0 0
        %1425 = vmatpush1.bf16.msra.mxu0 0
        %1426 = vmatprep.subr.bf16.mxu0 0
        %1427 = vmatpush1.bf16.msra.mxu0 0
        %1428 = vmatprep.subr.bf16.mxu0 0
        %1429 = vmatpush1.bf16.msra.mxu0 0
        %1430 = vmatprep.subr.bf16.mxu0 0
        %1431 = vmatpush1.bf16.msra.mxu0 0
        %1432 = vmatprep.subr.bf16.mxu0 0
        %1433 = vmatpush1.bf16.msra.mxu0 0
        %1434 = vmatprep.subr.bf16.mxu0 0
        %1435 = vmatpush1.bf16.msra.mxu0 0
        %1436 = vmatprep.subr.bf16.mxu0 0
        %1437 = vmatpush1.bf16.msra.mxu0 0
        %1438 = vmatprep.mubr.bf16.mxu0 0
        %1439 = vmatmul.mubr.bf16.gmra.mrb[0].mxu0 %v1352
        %v1440 = vpop.f32.mrb[0].mxu0
        %v1441 = vadd.f32 0.0, %v1440
        %v1442 = vpop.f32.mrb[0].mxu0
        %v1443 = vpop.f32.mrb[0].mxu0
        %v1444 = vadd.f32 0.0, %v1443
        %v1445 = vpop.f32.mrb[0].mxu0
        %1446 = vdwg.mxu0
        %v1447 = vadd.f32 %v1334, %v1398
        %v1448 = vadd.f32 %v1335, %v1400
        %v1449 = vadd.f32 %v1336, %v1441
        %v1450 = vadd.f32 %v1337, %v1402
        %v1451 = vadd.f32 %v1338, %v1404
        %v1452 = vadd.f32 %v1339, %v1444
        %1453 = vrot.lane.b32.xlu0 %v561, 64
        %v1454 = vpop.permute.xlu0 %1453
        %1455 = vrot.lane.b32.xlu0 %v569, 90
        %v1456 = vpop.permute.xlu0 %1455
        %1457 = vrot.lane.b32.xlu0 %v570, 90
        %v1458 = vpop.permute.xlu0 %1457
        %1459 = vrot.lane.b32.xlu0 %v571, 90
        %v1460 = vpop.permute.xlu0 %1459
        %vm1461 = vcmask 736256
        %v1462 = vsel %vm1461, %v1456, %v1458
        %v1463 = vsel %vm1461, %v1458, %v1460
        %v1465 = vsel %vm581, %v1454, 0
        %v1468 = vsel %vm585, %v1462, 0
        %v1471 = vsel %vm585, %v1463, 0
        %v1474 = vsel %vm585, %v1460, 0
        %1476 = vmatprep.subr.bf16.mxu0 %v1471
        %1477 = vmatpush1.bf16.msra.mxu0 %v1468
        %1478 = vmatprep.subr.bf16.mxu0 0
        %1479 = vmatpush1.bf16.msra.mxu0 0
        %1480 = vmatprep.subr.bf16.mxu0 0
        %1481 = vmatpush1.bf16.msra.mxu0 0
        %1482 = vmatprep.subr.bf16.mxu0 0
        %1483 = vmatpush1.bf16.msra.mxu0 0
        %1484 = vmatprep.subr.bf16.mxu0 0
        %1485 = vmatpush1.bf16.msra.mxu0 0
        %1486 = vmatprep.subr.bf16.mxu0 0
        %1487 = vmatpush1.bf16.msra.mxu0 0
        %1488 = vmatprep.subr.bf16.mxu0 0
        %1489 = vmatpush1.bf16.msra.mxu0 0
        %1490 = vmatprep.subr.bf16.mxu0 0
        %1491 = vmatpush1.bf16.msra.mxu0 0
        %1492 = vmatprep.subr.bf16.mxu0 0
        %1493 = vmatpush1.bf16.msra.mxu0 0
        %1494 = vmatprep.subr.bf16.mxu0 0
        %1495 = vmatpush1.bf16.msra.mxu0 0
        %1496 = vmatprep.subr.bf16.mxu0 0
        %1497 = vmatpush1.bf16.msra.mxu0 0
        %1498 = vmatprep.subr.bf16.mxu0 0
        %1499 = vmatpush1.bf16.msra.mxu0 0
        %1500 = vmatprep.subr.bf16.mxu0 0
        %1501 = vmatpush1.bf16.msra.mxu0 0
        %1502 = vmatprep.subr.bf16.mxu0 0
        %1503 = vmatpush1.bf16.msra.mxu0 0
        %1504 = vmatprep.subr.bf16.mxu0 0
        %1505 = vmatpush1.bf16.msra.mxu0 0
        %1506 = vmatprep.subr.bf16.mxu0 0
        %1507 = vmatpush1.bf16.msra.mxu0 0
        %1508 = vmatprep.mubr.bf16.mxu0 0
        %1509 = vmatmul.mubr.bf16.gmra.mrb[0].mxu0 %v1465
        %v1510 = vpop.f32.mrb[0].mxu0
        %v1511 = vadd.f32 0.0, %v1510
        %v1512 = vpop.f32.mrb[0].mxu0
        %v1513 = vadd.f32 0.0, %v1512
        %v1514 = vpop.f32.mrb[0].mxu0
        %v1515 = vadd.f32 0.0, %v1514
        %v1516 = vpop.f32.mrb[0].mxu0
        %v1517 = vadd.f32 0.0, %v1516
        %1518 = vdwg.mxu0
        %1519 = vmatprep.subr.bf16.mxu0 0
        %1520 = vmatpush1.bf16.msra.mxu0 %v1474
        %1521 = vmatprep.subr.bf16.mxu0 0
        %1522 = vmatpush1.bf16.msra.mxu0 0
        %1523 = vmatprep.subr.bf16.mxu0 0
        %1524 = vmatpush1.bf16.msra.mxu0 0
        %1525 = vmatprep.subr.bf16.mxu0 0
        %1526 = vmatpush1.bf16.msra.mxu0 0
        %1527 = vmatprep.subr.bf16.mxu0 0
        %1528 = vmatpush1.bf16.msra.mxu0 0
        %1529 = vmatprep.subr.bf16.mxu0 0
        %1530 = vmatpush1.bf16.msra.mxu0 0
        %1531 = vmatprep.subr.bf16.mxu0 0
        %1532 = vmatpush1.bf16.msra.mxu0 0
        %1533 = vmatprep.subr.bf16.mxu0 0
        %1534 = vmatpush1.bf16.msra.mxu0 0
        %1535 = vmatprep.subr.bf16.mxu0 0
        %1536 = vmatpush1.bf16.msra.mxu0 0
        %1537 = vmatprep.subr.bf16.mxu0 0
        %1538 = vmatpush1.bf16.msra.mxu0 0
        %1539 = vmatprep.subr.bf16.mxu0 0
        %1540 = vmatpush1.bf16.msra.mxu0 0
        %1541 = vmatprep.subr.bf16.mxu0 0
        %1542 = vmatpush1.bf16.msra.mxu0 0
        %1543 = vmatprep.subr.bf16.mxu0 0
        %1544 = vmatpush1.bf16.msra.mxu0 0
        %1545 = vmatprep.subr.bf16.mxu0 0
        %1546 = vmatpush1.bf16.msra.mxu0 0
        %1547 = vmatprep.subr.bf16.mxu0 0
        %1548 = vmatpush1.bf16.msra.mxu0 0
        %1549 = vmatprep.subr.bf16.mxu0 0
        %1550 = vmatpush1.bf16.msra.mxu0 0
        %1551 = vmatprep.mubr.bf16.mxu0 0
        %1552 = vmatmul.mubr.bf16.gmra.mrb[0].mxu0 %v1465
        %v1553 = vpop.f32.mrb[0].mxu0
        %v1554 = vadd.f32 0.0, %v1553
        %v1555 = vpop.f32.mrb[0].mxu0
        %v1556 = vpop.f32.mrb[0].mxu0
        %v1557 = vadd.f32 0.0, %v1556
        %v1558 = vpop.f32.mrb[0].mxu0
        %1559 = vdwg.mxu0
        %v1560 = vadd.f32 %v1447, %v1511
        %v1561 = vadd.f32 %v1448, %v1513
        %v1562 = vadd.f32 %v1449, %v1554
        %v1563 = vadd.f32 %v1450, %v1515
        %v1564 = vadd.f32 %v1451, %v1517
        %v1565 = vadd.f32 %v1452, %v1557
        %v1566 = vld [vmem:[%s333] sm:$0xff]
        %v1567 = vld [vmem:[%s333 + $0x8] sm:$0xff]
        %1569 = vset.pattern.permute.xlu0 0
        %1570 = vperm.xlu0 %1569, %v1566
        %v1571 = vpop.permute.xlu0 %1570
        %1574 = vset.pattern.permute.xlu0 0
        %1575 = vperm.xlu0 %1574, %v1567
        %v1576 = vpop.permute.xlu0 %1575
        %v1578 = vadd.f32 %v1560, %v1571
        %v1579 = vadd.f32 %v1561, %v1571
        %v1580 = vadd.f32 %v1562, %v1571
        %v1581 = vadd.f32 %v1563, %v1576
        %v1582 = vadd.f32 %v1564, %v1576
        %v1583 = vadd.f32 %v1565, %v1576
        %1584 = vrot.lane.b32.xlu0 %v522, 109
        %v1585 = vpop.permute.xlu0 %1584
        %1586 = vrot.lane.b32.xlu0 %v526, 109
        %v1587 = vpop.permute.xlu0 %1586
        %1588 = vrot.lane.b32.xlu0 %v530, 109
        %v1589 = vpop.permute.xlu0 %1588
        %vm1590 = vcmask 891904
        %v1591 = vsel %vm1590, %v1585, %v1587
        %v1592 = vsel %vm1590, %v1587, %v1589
        %v1596 = vmul.f32 %v1578, %v1591
        %v1597 = vmul.f32 %v1579, %v1592
        %v1598 = vmul.f32 %v1580, %v1589
        %v1599 = vmul.f32 %v1581, %v1591
        %v1600 = vmul.f32 %v1582, %v1592
        %v1601 = vmul.f32 %v1583, %v1589
        %v1602 = vadd.f32 %v1596, %v1597
        %vm1603 = vcmask 261120
        %v1604 = vsel %vm1603, %v1598, 0.0
        %v1605 = vadd.f32 %v1602, %v1604
        %1606 = vadd.xlane.f32.xlu0 %v1605
        %v1607 = vpop.xlane.xlu0 %1606
        %v1608 = vadd.f32 %v1599, %v1600
        %v1609 = vsel %vm1603, %v1601, 0.0
        %v1610 = vadd.f32 %v1608, %v1609
        %1611 = vadd.xlane.f32.xlu0 %v1610
        %v1612 = vpop.xlane.xlu0 %1611
        %v1613 = vmul.f32 %v1596, %v1596
        %v1614 = vmul.f32 %v1597, %v1597
        %v1615 = vmul.f32 %v1598, %v1598
        %v1616 = vmul.f32 %v1599, %v1599
        %v1617 = vmul.f32 %v1600, %v1600
        %v1618 = vmul.f32 %v1601, %v1601
        %v1619 = vadd.f32 %v1613, %v1614
        %v1620 = vsel %vm1603, %v1615, 0.0
        %v1621 = vadd.f32 %v1619, %v1620
        %1622 = vadd.xlane.f32.xlu0 %v1621
        %v1623 = vpop.xlane.xlu0 %1622
        %v1624 = vadd.f32 %v1616, %v1617
        %v1625 = vsel %vm1603, %v1618, 0.0
        %v1626 = vadd.f32 %v1624, %v1625
        %1627 = vadd.xlane.f32.xlu0 %v1626
        %v1628 = vpop.xlane.xlu0 %1627
        %v1629 = vsel %vm358, %v1607, %v1623
        %v1630 = vsel %vm358, %v1612, %v1628
        %v1631 = vadd.s32 %v361, 8
        %vm1632 = vcmp.ge.s32.totalorder %v1631, 0
        %vm1633 = vcmp.lt.s32.totalorder %v1631, 4
        %vm1634 = vmand %vm362, %vm393
        %vm1635 = vmand %vm1632, %vm1633
        %v1636 = vsel %vm1634, 1, 0
        %v1637 = vsel %vm1635, 1, 0
        %vm1638 = vcmp.eq.s32.totalorder %v1636, 1
        %vm1639 = vcmp.eq.s32.totalorder %v1637, 1
        %v1640 = vsel %vm1638, %v1629, 0.0
        %v1641 = vsel %vm1639, %v1630, 0.0
        %v1642 = vsel %vm368, %v1640, 0.0
        %v1643 = vsel %vm368, %v1641, 0.0
        %v1644 = vadd.f32 %v1642, %v1643
        %v1645 = vrot.slane %v1644, 4
        %v1646 = vadd.f32 %v1644, %v1645
        %v1647 = vrot.slane %v1646, 2
        %v1648 = vadd.f32 %v1646, %v1647
        %v1649 = vrot.slane %v1648, 1
        %v1650 = vadd.f32 %v1648, %v1649
        %s1651 = vtos %v1650
        %s1652 = smul.f32 %s1651, 0.0009765625
        %1653 = vrot.lane.b32.xlu0 %v1650, 127
        %v1654 = vpop.permute.xlu0 %1653
        %s1655 = vtos %v1654
        %s1656 = smul.f32 %s1655, 0.0009765625
        %s1657 = smul.f32 %s1652, %s1652
        %s1658 = ssub.f32 %s1656, %s1657
        %s1659 = sadd.f32 %s1658, 1e-05
        %v1660 = vstv %s1659
        %v1661 = vrsqrt.pop %v1660
        %s1662 = vtos %v1661
        %v1663 = vstv %s1652
        %v1664 = vsel %vm1634, %v1663, 0.0
        %v1665 = vsel %vm1635, %v1663, 0.0
        %v1666 = vstv %s1662
        %v1667 = vsel %vm1634, %v1666, 0.0
        %v1668 = vsel %vm1635, %v1666, 0.0
        %vm1669 = vcmp.ge.s32.totalorder %v1631, 4
        %vm1670 = vcmp.lt.s32.totalorder %v1631, 8
        %vm1671 = vmand %vm421, %vm451
        %vm1672 = vmand %vm1669, %vm1670
        %v1673 = vsel %vm1671, 1, 0
        %v1674 = vsel %vm1672, 1, 0
        %vm1675 = vcmp.eq.s32.totalorder %v1673, 1
        %vm1676 = vcmp.eq.s32.totalorder %v1674, 1
        %v1677 = vsel %vm1675, %v1629, 0.0
        %v1678 = vsel %vm1676, %v1630, 0.0
        %v1679 = vsel %vm368, %v1677, 0.0
        %v1680 = vsel %vm368, %v1678, 0.0
        %v1681 = vadd.f32 %v1679, %v1680
        %v1682 = vrot.slane %v1681, 4
        %v1683 = vadd.f32 %v1681, %v1682
        %v1684 = vrot.slane %v1683, 2
        %v1685 = vadd.f32 %v1683, %v1684
        %v1686 = vrot.slane %v1685, 1
        %v1687 = vadd.f32 %v1685, %v1686
        %s1688 = vtos %v1687
        %s1689 = smul.f32 %s1688, 0.0009765625
        %1690 = vrot.lane.b32.xlu0 %v1687, 127
        %v1691 = vpop.permute.xlu0 %1690
        %s1692 = vtos %v1691
        %s1693 = smul.f32 %s1692, 0.0009765625
        %s1694 = smul.f32 %s1689, %s1689
        %s1695 = ssub.f32 %s1693, %s1694
        %s1696 = sadd.f32 %s1695, 1e-05
        %v1697 = vstv %s1696
        %v1698 = vrsqrt.pop %v1697
        %s1699 = vtos %v1698
        %v1700 = vstv %s1689
        %v1701 = vsel %vm1671, %v1700, %v1664
        %v1702 = vsel %vm1672, %v1700, %v1665
        %v1703 = vstv %s1699
        %v1704 = vsel %vm1671, %v1703, %v1667
        %v1705 = vsel %vm1672, %v1703, %v1668
        %vm1706 = vcmp.ge.s32.totalorder %v361, 8
        %vm1707 = vcmp.ge.s32.totalorder %v1631, 8
        %vm1708 = vcmp.lt.s32.totalorder %v361, 12
        %vm1709 = vcmp.lt.s32.totalorder %v1631, 12
        %vm1710 = vmand %vm1706, %vm1708
        %vm1711 = vmand %vm1707, %vm1709
        %v1712 = vsel %vm1710, 1, 0
        %v1713 = vsel %vm1711, 1, 0
        %vm1714 = vcmp.eq.s32.totalorder %v1712, 1
        %vm1715 = vcmp.eq.s32.totalorder %v1713, 1
        %v1716 = vsel %vm1714, %v1629, 0.0
        %v1717 = vsel %vm1715, %v1630, 0.0
        %v1718 = vsel %vm368, %v1716, 0.0
        %v1719 = vsel %vm368, %v1717, 0.0
        %v1720 = vadd.f32 %v1718, %v1719
        %v1721 = vrot.slane %v1720, 4
        %v1722 = vadd.f32 %v1720, %v1721
        %v1723 = vrot.slane %v1722, 2
        %v1724 = vadd.f32 %v1722, %v1723
        %v1725 = vrot.slane %v1724, 1
        %v1726 = vadd.f32 %v1724, %v1725
        %s1727 = vtos %v1726
        %s1728 = smul.f32 %s1727, 0.0009765625
        %1729 = vrot.lane.b32.xlu0 %v1726, 127
        %v1730 = vpop.permute.xlu0 %1729
        %s1731 = vtos %v1730
        %s1732 = smul.f32 %s1731, 0.0009765625
        %s1733 = smul.f32 %s1728, %s1728
        %s1734 = ssub.f32 %s1732, %s1733
        %s1735 = sadd.f32 %s1734, 1e-05
        %v1736 = vstv %s1735
        %v1737 = vrsqrt.pop %v1736
        %s1738 = vtos %v1737
        %v1739 = vstv %s1728
        %v1740 = vsel %vm1710, %v1739, %v1701
        %v1741 = vsel %vm1711, %v1739, %v1702
        %v1742 = vstv %s1738
        %v1743 = vsel %vm1710, %v1742, %v1704
        %v1744 = vsel %vm1711, %v1742, %v1705
        %vm1745 = vcmp.ge.s32.totalorder %v361, 12
        %vm1746 = vcmp.ge.s32.totalorder %v1631, 12
        %vm1747 = vcmp.lt.s32.totalorder %v361, 16
        %vm1748 = vcmp.lt.s32.totalorder %v1631, 16
        %vm1749 = vmand %vm1745, %vm1747
        %vm1750 = vmand %vm1746, %vm1748
        %v1751 = vsel %vm1749, 1, 0
        %v1752 = vsel %vm1750, 1, 0
        %vm1753 = vcmp.eq.s32.totalorder %v1751, 1
        %vm1754 = vcmp.eq.s32.totalorder %v1752, 1
        %v1755 = vsel %vm1753, %v1629, 0.0
        %v1756 = vsel %vm1754, %v1630, 0.0
        %v1757 = vsel %vm368, %v1755, 0.0
        %v1758 = vsel %vm368, %v1756, 0.0
        %v1759 = vadd.f32 %v1757, %v1758
        %v1760 = vrot.slane %v1759, 4
        %v1761 = vadd.f32 %v1759, %v1760
        %v1762 = vrot.slane %v1761, 2
        %v1763 = vadd.f32 %v1761, %v1762
        %v1764 = vrot.slane %v1763, 1
        %v1765 = vadd.f32 %v1763, %v1764
        %s1766 = vtos %v1765
        %s1767 = smul.f32 %s1766, 0.0009765625
        %1768 = vrot.lane.b32.xlu0 %v1765, 127
        %v1769 = vpop.permute.xlu0 %1768
        %s1770 = vtos %v1769
        %s1771 = smul.f32 %s1770, 0.0009765625
        %s1772 = smul.f32 %s1767, %s1767
        %s1773 = ssub.f32 %s1771, %s1772
        %s1774 = sadd.f32 %s1773, 1e-05
        %v1775 = vstv %s1774
        %v1776 = vrsqrt.pop %v1775
        %s1777 = vtos %v1776
        %v1778 = vstv %s1767
        %v1779 = vsel %vm1749, %v1778, %v1740
        %v1780 = vsel %vm1750, %v1778, %v1741
        %v1781 = vstv %s1777
        %v1782 = vsel %vm1749, %v1781, %v1743
        %v1783 = vsel %vm1750, %v1781, %v1744
        %v1784 = vsub.f32 %v1596, %v1779
        %v1785 = vsub.f32 %v1597, %v1779
        %v1786 = vsub.f32 %v1598, %v1779
        %v1787 = vsub.f32 %v1599, %v1780
        %v1788 = vsub.f32 %v1600, %v1780
        %v1789 = vsub.f32 %v1601, %v1780
        %v1790 = vmul.f32 %v1784, %v1782
        %v1791 = vmul.f32 %v1785, %v1782
        %v1792 = vmul.f32 %v1786, %v1782
        %v1793 = vmul.f32 %v1787, %v1783
        %v1794 = vmul.f32 %v1788, %v1783
        %v1795 = vmul.f32 %v1789, %v1783
        %1797 = vset.pattern.permute.xlu0 0
        %1798 = vperm.xlu0 %1797, %v339
        %v1799 = vpop.permute.xlu0 %1798
        %1802 = vset.pattern.permute.xlu0 0
        %1803 = vperm.xlu0 %1802, %v340
        %v1804 = vpop.permute.xlu0 %1803
        %v1806 = vmul.f32 %v1790, %v1799
        %v1807 = vmul.f32 %v1791, %v1799
        %v1808 = vmul.f32 %v1792, %v1799
        %v1809 = vmul.f32 %v1793, %v1804
        %v1810 = vmul.f32 %v1794, %v1804
        %v1811 = vmul.f32 %v1795, %v1804
        %1812 = vset.pattern.permute.xlu0 1
        %1813 = vperm.xlu0 %1812, %v339
        %v1814 = vpop.permute.xlu0 %1813
        %1816 = vset.pattern.permute.xlu0 1
        %1817 = vperm.xlu0 %1816, %v340
        %v1818 = vpop.permute.xlu0 %1817
        %v1820 = vadd.f32 %v1806, %v1814
        %v1821 = vadd.f32 %v1807, %v1814
        %v1822 = vadd.f32 %v1808, %v1814
        %v1823 = vadd.f32 %v1809, %v1818
        %v1824 = vadd.f32 %v1810, %v1818
        %v1825 = vadd.f32 %v1811, %v1818
        %v1826 = vsub.f32 0.0, %v1820
        %v1827 = vsub.f32 0.0, %v1821
        %v1828 = vsub.f32 0.0, %v1822
        %v1829 = vsub.f32 0.0, %v1823
        %v1830 = vsub.f32 0.0, %v1824
        %v1831 = vsub.f32 0.0, %v1825
        %v1832 = vmul.f32 %v1826, 1.442695
        %v1833 = vpow.pop %v1832
        %v1834 = vmul.f32 %v1827, 1.442695
        %v1835 = vpow.pop %v1834
        %v1836 = vmul.f32 %v1828, 1.442695
        %v1837 = vpow.pop %v1836
        %v1838 = vmul.f32 %v1829, 1.442695
        %v1839 = vpow.pop %v1838
        %v1840 = vmul.f32 %v1830, 1.442695
        %v1841 = vpow.pop %v1840
        %v1842 = vmul.f32 %v1831, 1.442695
        %v1843 = vpow.pop %v1842
        %v1844 = vadd.f32 %v1833, 1.0
        %v1845 = vadd.f32 %v1835, 1.0
        %v1846 = vadd.f32 %v1837, 1.0
        %v1847 = vadd.f32 %v1839, 1.0
        %v1848 = vadd.f32 %v1841, 1.0
        %v1849 = vadd.f32 %v1843, 1.0
        %v1850 = vrcp.pop %v1844
        %v1851 = vrcp.pop %v1845
        %v1852 = vrcp.pop %v1846
        %v1853 = vrcp.pop %v1847
        %v1854 = vrcp.pop %v1848
        %v1855 = vrcp.pop %v1849
        %v1856 = vmul.f32 %v1820, %v1850
        %v1857 = vmul.f32 %v1821, %v1851
        %v1858 = vmul.f32 %v1822, %v1852
        %v1859 = vmul.f32 %v1823, %v1853
        %v1860 = vmul.f32 %v1824, %v1854
        %v1861 = vmul.f32 %v1825, %v1855
        %v1862 = vmul.f32 %v1856, %v1591
        %v1863 = vmul.f32 %v1857, %v1592
        %v1864 = vmul.f32 %v1858, %v1589
        %v1865 = vmul.f32 %v1859, %v1591
        %v1866 = vmul.f32 %v1860, %v1592
        %v1867 = vmul.f32 %v1861, %v1589
        %vm1868 = vcmask 154624
        %1869 = vst.msk [vmem:[#allocation3] sm:$0xff] %vm1868, 0
        %vm1870 = vcmask 703896
        %1871 = vst.msk [vmem:[#allocation3 + $0x10] sm:$0xff] %vm1870, 0
        %v1872 = vpack.c.bf16 %v1865, %v1862
        %v1873 = vpack.c.bf16 %v1866, %v1863
        %v1874 = vpack.c.bf16 %v1867, %v1864
        %1878 = vrot.lane.b32.xlu0 %v1872, 19
        %v1879 = vpop.permute.xlu0 %1878
        %1880 = vrot.lane.b32.xlu0 %v1873, 19
        %v1881 = vpop.permute.xlu0 %1880
        %1882 = vrot.lane.b32.xlu0 %v1874, 19
        %v1883 = vpop.permute.xlu0 %1882
        %vm1884 = vcmask 154624
        %v1885 = vsel %vm1884, %v1879, %v1881
        %v1886 = vsel %vm1884, %v1881, %v1883
        %vm1890 = vcmask 1047704
        %1891 = vst.msk [vmem:[#allocation3] sm:$0xff] %vm1890, %v1879
        %1892 = vst [vmem:[#allocation3 + $0x8] sm:$0xff] %v1885
        %vm1893 = vcmask 416768
        %1894 = vst.msk [vmem:[#allocation3 + $0x10] sm:$0xff] %vm1893, %v1886
        %v1895 = vld [vmem:[#allocation3] sm:$0xff]
        %v1896 = vld [vmem:[#allocation3 + $0x8] sm:$0xff]
        %v1897 = vld [vmem:[#allocation3 + $0x10] sm:$0xff]
        %1901 = vrot.lane.b32.xlu0 %v1895, 127
        %v1902 = vpop.permute.xlu0 %1901
        %1903 = vrot.lane.b32.xlu0 %v1896, 127
        %v1904 = vpop.permute.xlu0 %1903
        %1905 = vrot.lane.b32.xlu0 %v1897, 127
        %v1906 = vpop.permute.xlu0 %1905
        %v1907 = vsel %vm578, %v1902, %v1904
        %v1908 = vsel %vm578, %v1904, %v1906
        %1912 = vrot.lane.b32.xlu0 %v1895, 126
        %v1913 = vpop.permute.xlu0 %1912
        %1914 = vrot.lane.b32.xlu0 %v1896, 126
        %v1915 = vpop.permute.xlu0 %1914
        %1916 = vrot.lane.b32.xlu0 %v1897, 126
        %v1917 = vpop.permute.xlu0 %1916
        %v1918 = vsel %vm783, %v1913, %v1915
        %v1919 = vsel %vm783, %v1915, %v1917
        %v1923 = vld [vmem:[%s6] sm:$0xf]
        %v1924 = vld [vmem:[%s6 + $0x8] sm:$0xf]
        %v1927 = vunpack.c.l.b16 %v1923
        %v1928 = vunpack.c.l.b16 %v1924
        %v1929 = vpack.c.b16 %v1928, %v1927
        %1930 = vrot.lane.b32.xlu0 %v1929, 80
        %v1931 = vpop.permute.xlu0 %1930
        %1932 = vrot.lane.b32.xlu0 %v1895, 110
        %v1933 = vpop.permute.xlu0 %1932
        %1934 = vrot.lane.b32.xlu0 %v1896, 110
        %v1935 = vpop.permute.xlu0 %1934
        %1936 = vrot.lane.b32.xlu0 %v1897, 110
        %v1937 = vpop.permute.xlu0 %1936
        %1938 = vrot.lane.b32.xlu0 %v1907, 110
        %v1939 = vpop.permute.xlu0 %1938
        %1940 = vrot.lane.b32.xlu0 %v1908, 110
        %v1941 = vpop.permute.xlu0 %1940
        %1942 = vrot.lane.b32.xlu0 %v1906, 110
        %v1943 = vpop.permute.xlu0 %1942
        %1944 = vrot.lane.b32.xlu0 %v1918, 110
        %v1945 = vpop.permute.xlu0 %1944
        %1946 = vrot.lane.b32.xlu0 %v1919, 110
        %v1947 = vpop.permute.xlu0 %1946
        %1948 = vrot.lane.b32.xlu0 %v1917, 110
        %v1949 = vpop.permute.xlu0 %1948
        %v1950 = vsel %vm896, %v1933, %v1935
        %v1951 = vsel %vm896, %v1935, %v1937
        %v1952 = vsel %vm896, %v1939, %v1941
        %v1953 = vsel %vm896, %v1941, %v1943
        %v1954 = vsel %vm896, %v1945, %v1947
        %v1955 = vsel %vm896, %v1947, %v1949
        %vm1965 = vcmask 392192
        %v1967 = vsel %vm1965, %v1931, 0
        %1969 = vmatprep.subr.bf16.mxu0 %v1951
        %1970 = vmatpush1.bf16.msra.mxu0 %v1950
        %1971 = vmatprep.subr.bf16.mxu0 %v1953
        %1972 = vmatpush1.bf16.msra.mxu0 %v1952
        %1973 = vmatprep.subr.bf16.mxu0 %v1955
        %1974 = vmatpush1.bf16.msra.mxu0 %v1954
        %1975 = vmatprep.subr.bf16.mxu0 0
        %1976 = vmatpush1.bf16.msra.mxu0 0
        %1977 = vmatprep.subr.bf16.mxu0 0
        %1978 = vmatpush1.bf16.msra.mxu0 0
        %1979 = vmatprep.subr.bf16.mxu0 0
        %1980 = vmatpush1.bf16.msra.mxu0 0
        %1981 = vmatprep.subr.bf16.mxu0 0
        %1982 = vmatpush1.bf16.msra.mxu0 0
        %1983 = vmatprep.subr.bf16.mxu0 0
        %1984 = vmatpush1.bf16.msra.mxu0 0
        %1985 = vmatprep.subr.bf16.mxu0 0
        %1986 = vmatpush1.bf16.msra.mxu0 0
        %1987 = vmatprep.subr.bf16.mxu0 0
        %1988 = vmatpush1.bf16.msra.mxu0 0
        %1989 = vmatprep.subr.bf16.mxu0 0
        %1990 = vmatpush1.bf16.msra.mxu0 0
        %1991 = vmatprep.subr.bf16.mxu0 0
        %1992 = vmatpush1.bf16.msra.mxu0 0
        %1993 = vmatprep.subr.bf16.mxu0 0
        %1994 = vmatpush1.bf16.msra.mxu0 0
        %1995 = vmatprep.subr.bf16.mxu0 0
        %1996 = vmatpush1.bf16.msra.mxu0 0
        %1997 = vmatprep.subr.bf16.mxu0 0
        %1998 = vmatpush1.bf16.msra.mxu0 0
        %1999 = vmatprep.subr.bf16.mxu0 0
        %2000 = vmatpush1.bf16.msra.mxu0 0
        %2001 = vmatprep.mubr.bf16.mxu0 0
        %2002 = vmatmul.mubr.bf16.gmra.mrb[0].mxu0 %v1967
        %v2003 = vpop.f32.mrb[0].mxu0
        %v2004 = vadd.f32 0.0, %v2003
        %v2005 = vpop.f32.mrb[0].mxu0
        %v2006 = vadd.f32 0.0, %v2005
        %v2007 = vpop.f32.mrb[0].mxu0
        %v2008 = vadd.f32 0.0, %v2007
        %v2009 = vpop.f32.mrb[0].mxu0
        %v2010 = vadd.f32 0.0, %v2009
        %2011 = vdwg.mxu0
        %2012 = vmatprep.subr.bf16.mxu0 0
        %2013 = vmatpush1.bf16.msra.mxu0 %v1937
        %2014 = vmatprep.subr.bf16.mxu0 0
        %2015 = vmatpush1.bf16.msra.mxu0 %v1943
        %2016 = vmatprep.subr.bf16.mxu0 0
        %2017 = vmatpush1.bf16.msra.mxu0 %v1949
        %2018 = vmatprep.subr.bf16.mxu0 0
        %2019 = vmatpush1.bf16.msra.mxu0 0
        %2020 = vmatprep.subr.bf16.mxu0 0
        %2021 = vmatpush1.bf16.msra.mxu0 0
        %2022 = vmatprep.subr.bf16.mxu0 0
        %2023 = vmatpush1.bf16.msra.mxu0 0
        %2024 = vmatprep.subr.bf16.mxu0 0
        %2025 = vmatpush1.bf16.msra.mxu0 0
        %2026 = vmatprep.subr.bf16.mxu0 0
        %2027 = vmatpush1.bf16.msra.mxu0 0
        %2028 = vmatprep.subr.bf16.mxu0 0
        %2029 = vmatpush1.bf16.msra.mxu0 0
        %2030 = vmatprep.subr.bf16.mxu0 0
        %2031 = vmatpush1.bf16.msra.mxu0 0
        %2032 = vmatprep.subr.bf16.mxu0 0
        %2033 = vmatpush1.bf16.msra.mxu0 0
        %2034 = vmatprep.subr.bf16.mxu0 0
        %2035 = vmatpush1.bf16.msra.mxu0 0
        %2036 = vmatprep.subr.bf16.mxu0 0
        %2037 = vmatpush1.bf16.msra.mxu0 0
        %2038 = vmatprep.subr.bf16.mxu0 0
        %2039 = vmatpush1.bf16.msra.mxu0 0
        %2040 = vmatprep.subr.bf16.mxu0 0
        %2041 = vmatpush1.bf16.msra.mxu0 0
        %2042 = vmatprep.subr.bf16.mxu0 0
        %2043 = vmatpush1.bf16.msra.mxu0 0
        %2044 = vmatprep.mubr.bf16.mxu0 0
        %2045 = vmatmul.mubr.bf16.gmra.mrb[0].mxu0 %v1967
        %v2046 = vpop.f32.mrb[0].mxu0
        %v2047 = vadd.f32 0.0, %v2046
        %v2048 = vpop.f32.mrb[0].mxu0
        %v2049 = vpop.f32.mrb[0].mxu0
        %v2050 = vadd.f32 0.0, %v2049
        %v2051 = vpop.f32.mrb[0].mxu0
        %2052 = vdwg.mxu0
        %v2054 = vsel %vm1965, %v1929, 0
        %2056 = vmatprep.subr.bf16.mxu0 %v1896
        %2057 = vmatpush1.bf16.msra.mxu0 %v1895
        %2058 = vmatprep.subr.bf16.mxu0 %v1908
        %2059 = vmatpush1.bf16.msra.mxu0 %v1907
        %2060 = vmatprep.subr.bf16.mxu0 %v1919
        %2061 = vmatpush1.bf16.msra.mxu0 %v1918
        %2062 = vmatprep.subr.bf16.mxu0 0
        %2063 = vmatpush1.bf16.msra.mxu0 0
        %2064 = vmatprep.subr.bf16.mxu0 0
        %2065 = vmatpush1.bf16.msra.mxu0 0
        %2066 = vmatprep.subr.bf16.mxu0 0
        %2067 = vmatpush1.bf16.msra.mxu0 0
        %2068 = vmatprep.subr.bf16.mxu0 0
        %2069 = vmatpush1.bf16.msra.mxu0 0
        %2070 = vmatprep.subr.bf16.mxu0 0
        %2071 = vmatpush1.bf16.msra.mxu0 0
        %2072 = vmatprep.subr.bf16.mxu0 0
        %2073 = vmatpush1.bf16.msra.mxu0 0
        %2074 = vmatprep.subr.bf16.mxu0 0
        %2075 = vmatpush1.bf16.msra.mxu0 0
        %2076 = vmatprep.subr.bf16.mxu0 0
        %2077 = vmatpush1.bf16.msra.mxu0 0
        %2078 = vmatprep.subr.bf16.mxu0 0
        %2079 = vmatpush1.bf16.msra.mxu0 0
        %2080 = vmatprep.subr.bf16.mxu0 0
        %2081 = vmatpush1.bf16.msra.mxu0 0
        %2082 = vmatprep.subr.bf16.mxu0 0
        %2083 = vmatpush1.bf16.msra.mxu0 0
        %2084 = vmatprep.subr.bf16.mxu0 0
        %2085 = vmatpush1.bf16.msra.mxu0 0
        %2086 = vmatprep.subr.bf16.mxu0 0
        %2087 = vmatpush1.bf16.msra.mxu0 0
        %2088 = vmatprep.mubr.bf16.mxu0 0
        %2089 = vmatmul.mubr.bf16.gmra.mrb[0].mxu0 %v2054
        %v2090 = vpop.f32.mrb[0].mxu0
        %v2091 = vadd.f32 %v2004, %v2090
        %v2092 = vpop.f32.mrb[0].mxu0
        %v2093 = vadd.f32 %v2006, %v2092
        %v2094 = vpop.f32.mrb[0].mxu0
        %v2095 = vadd.f32 %v2008, %v2094
        %v2096 = vpop.f32.mrb[0].mxu0
        %v2097 = vadd.f32 %v2010, %v2096
        %2098 = vdwg.mxu0
        %2099 = vmatprep.subr.bf16.mxu0 0
        %2100 = vmatpush1.bf16.msra.mxu0 %v1897
        %2101 = vmatprep.subr.bf16.mxu0 0
        %2102 = vmatpush1.bf16.msra.mxu0 %v1906
        %2103 = vmatprep.subr.bf16.mxu0 0
        %2104 = vmatpush1.bf16.msra.mxu0 %v1917
        %2105 = vmatprep.subr.bf16.mxu0 0
        %2106 = vmatpush1.bf16.msra.mxu0 0
        %2107 = vmatprep.subr.bf16.mxu0 0
        %2108 = vmatpush1.bf16.msra.mxu0 0
        %2109 = vmatprep.subr.bf16.mxu0 0
        %2110 = vmatpush1.bf16.msra.mxu0 0
        %2111 = vmatprep.subr.bf16.mxu0 0
        %2112 = vmatpush1.bf16.msra.mxu0 0
        %2113 = vmatprep.subr.bf16.mxu0 0
        %2114 = vmatpush1.bf16.msra.mxu0 0
        %2115 = vmatprep.subr.bf16.mxu0 0
        %2116 = vmatpush1.bf16.msra.mxu0 0
        %2117 = vmatprep.subr.bf16.mxu0 0
        %2118 = vmatpush1.bf16.msra.mxu0 0
        %2119 = vmatprep.subr.bf16.mxu0 0
        %2120 = vmatpush1.bf16.msra.mxu0 0
        %2121 = vmatprep.subr.bf16.mxu0 0
        %2122 = vmatpush1.bf16.msra.mxu0 0
        %2123 = vmatprep.subr.bf16.mxu0 0
        %2124 = vmatpush1.bf16.msra.mxu0 0
        %2125 = vmatprep.subr.bf16.mxu0 0
        %2126 = vmatpush1.bf16.msra.mxu0 0
        %2127 = vmatprep.subr.bf16.mxu0 0
        %2128 = vmatpush1.bf16.msra.mxu0 0
        %2129 = vmatprep.subr.bf16.mxu0 0
        %2130 = vmatpush1.bf16.msra.mxu0 0
        %2131 = vmatprep.mubr.bf16.mxu0 0
        %2132 = vmatmul.mubr.bf16.gmra.mrb[0].mxu0 %v2054
        %v2133 = vpop.f32.mrb[0].mxu0
        %v2134 = vadd.f32 %v2047, %v2133
        %v2135 = vpop.f32.mrb[0].mxu0
        %v2136 = vpop.f32.mrb[0].mxu0
        %v2137 = vadd.f32 %v2050, %v2136
        %v2138 = vpop.f32.mrb[0].mxu0
        %2139 = vdwg.mxu0
        %v2140 = vld [vmem:[%s6] sm:$0xff]
        %v2141 = vld [vmem:[%s6 + $0x8] sm:$0xff]
        %v2144 = vunpack.c.l.b16 %v2140
        %v2145 = vunpack.c.h.b16 %v2140
        %v2146 = vunpack.c.l.b16 %v2141
        %v2147 = vunpack.c.h.b16 %v2141
        %v2148 = vpack.c.b16 %v2146, %v2144
        %v2149 = vpack.c.b16 %v2147, %v2145
        %2150 = vrot.lane.b32.xlu0 %v2148, 32
        %v2151 = vpop.permute.xlu0 %2150
        %2152 = vrot.lane.b32.xlu0 %v2149, 32
        %v2153 = vpop.permute.xlu0 %2152
        %vm2154 = vcmask 261120
        %v2155 = vsel %vm2154, %v2151, %v2153
        %2156 = vrot.lane.b32.xlu0 %v1895, 92
        %v2157 = vpop.permute.xlu0 %2156
        %2158 = vrot.lane.b32.xlu0 %v1896, 92
        %v2159 = vpop.permute.xlu0 %2158
        %2160 = vrot.lane.b32.xlu0 %v1897, 92
        %v2161 = vpop.permute.xlu0 %2160
        %2162 = vrot.lane.b32.xlu0 %v1907, 92
        %v2163 = vpop.permute.xlu0 %2162
        %2164 = vrot.lane.b32.xlu0 %v1908, 92
        %v2165 = vpop.permute.xlu0 %2164
        %2166 = vrot.lane.b32.xlu0 %v1906, 92
        %v2167 = vpop.permute.xlu0 %2166
        %2168 = vrot.lane.b32.xlu0 %v1918, 92
        %v2169 = vpop.permute.xlu0 %2168
        %2170 = vrot.lane.b32.xlu0 %v1919, 92
        %v2171 = vpop.permute.xlu0 %2170
        %2172 = vrot.lane.b32.xlu0 %v1917, 92
        %v2173 = vpop.permute.xlu0 %2172
        %v2174 = vsel %vm1235, %v2157, %v2159
        %v2175 = vsel %vm1235, %v2159, %v2161
        %v2176 = vsel %vm1235, %v2163, %v2165
        %v2177 = vsel %vm1235, %v2165, %v2167
        %v2178 = vsel %vm1235, %v2169, %v2171
        %v2179 = vsel %vm1235, %v2171, %v2173
        %v2190 = vsel %vm1965, %v2155, 0
        %2192 = vmatprep.subr.bf16.mxu0 %v2175
        %2193 = vmatpush1.bf16.msra.mxu0 %v2174
        %2194 = vmatprep.subr.bf16.mxu0 %v2177
        %2195 = vmatpush1.bf16.msra.mxu0 %v2176
        %2196 = vmatprep.subr.bf16.mxu0 %v2179
        %2197 = vmatpush1.bf16.msra.mxu0 %v2178
        %2198 = vmatprep.subr.bf16.mxu0 0
        %2199 = vmatpush1.bf16.msra.mxu0 0
        %2200 = vmatprep.subr.bf16.mxu0 0
        %2201 = vmatpush1.bf16.msra.mxu0 0
        %2202 = vmatprep.subr.bf16.mxu0 0
        %2203 = vmatpush1.bf16.msra.mxu0 0
        %2204 = vmatprep.subr.bf16.mxu0 0
        %2205 = vmatpush1.bf16.msra.mxu0 0
        %2206 = vmatprep.subr.bf16.mxu0 0
        %2207 = vmatpush1.bf16.msra.mxu0 0
        %2208 = vmatprep.subr.bf16.mxu0 0
        %2209 = vmatpush1.bf16.msra.mxu0 0
        %2210 = vmatprep.subr.bf16.mxu0 0
        %2211 = vmatpush1.bf16.msra.mxu0 0
        %2212 = vmatprep.subr.bf16.mxu0 0
        %2213 = vmatpush1.bf16.msra.mxu0 0
        %2214 = vmatprep.subr.bf16.mxu0 0
        %2215 = vmatpush1.bf16.msra.mxu0 0
        %2216 = vmatprep.subr.bf16.mxu0 0
        %2217 = vmatpush1.bf16.msra.mxu0 0
        %2218 = vmatprep.subr.bf16.mxu0 0
        %2219 = vmatpush1.bf16.msra.mxu0 0
        %2220 = vmatprep.subr.bf16.mxu0 0
        %2221 = vmatpush1.bf16.msra.mxu0 0
        %2222 = vmatprep.subr.bf16.mxu0 0
        %2223 = vmatpush1.bf16.msra.mxu0 0
        %2224 = vmatprep.mubr.bf16.mxu0 0
        %2225 = vmatmul.mubr.bf16.gmra.mrb[0].mxu0 %v2190
        %v2226 = vpop.f32.mrb[0].mxu0
        %v2227 = vadd.f32 0.0, %v2226
        %v2228 = vpop.f32.mrb[0].mxu0
        %v2229 = vadd.f32 0.0, %v2228
        %v2230 = vpop.f32.mrb[0].mxu0
        %v2231 = vadd.f32 0.0, %v2230
        %v2232 = vpop.f32.mrb[0].mxu0
        %v2233 = vadd.f32 0.0, %v2232
        %2234 = vdwg.mxu0
        %2235 = vmatprep.subr.bf16.mxu0 0
        %2236 = vmatpush1.bf16.msra.mxu0 %v2161
        %2237 = vmatprep.subr.bf16.mxu0 0
        %2238 = vmatpush1.bf16.msra.mxu0 %v2167
        %2239 = vmatprep.subr.bf16.mxu0 0
        %2240 = vmatpush1.bf16.msra.mxu0 %v2173
        %2241 = vmatprep.subr.bf16.mxu0 0
        %2242 = vmatpush1.bf16.msra.mxu0 0
        %2243 = vmatprep.subr.bf16.mxu0 0
        %2244 = vmatpush1.bf16.msra.mxu0 0
        %2245 = vmatprep.subr.bf16.mxu0 0
        %2246 = vmatpush1.bf16.msra.mxu0 0
        %2247 = vmatprep.subr.bf16.mxu0 0
        %2248 = vmatpush1.bf16.msra.mxu0 0
        %2249 = vmatprep.subr.bf16.mxu0 0
        %2250 = vmatpush1.bf16.msra.mxu0 0
        %2251 = vmatprep.subr.bf16.mxu0 0
        %2252 = vmatpush1.bf16.msra.mxu0 0
        %2253 = vmatprep.subr.bf16.mxu0 0
        %2254 = vmatpush1.bf16.msra.mxu0 0
        %2255 = vmatprep.subr.bf16.mxu0 0
        %2256 = vmatpush1.bf16.msra.mxu0 0
        %2257 = vmatprep.subr.bf16.mxu0 0
        %2258 = vmatpush1.bf16.msra.mxu0 0
        %2259 = vmatprep.subr.bf16.mxu0 0
        %2260 = vmatpush1.bf16.msra.mxu0 0
        %2261 = vmatprep.subr.bf16.mxu0 0
        %2262 = vmatpush1.bf16.msra.mxu0 0
        %2263 = vmatprep.subr.bf16.mxu0 0
        %2264 = vmatpush1.bf16.msra.mxu0 0
        %2265 = vmatprep.subr.bf16.mxu0 0
        %2266 = vmatpush1.bf16.msra.mxu0 0
        %2267 = vmatprep.mubr.bf16.mxu0 0
        %2268 = vmatmul.mubr.bf16.gmra.mrb[0].mxu0 %v2190
        %v2269 = vpop.f32.mrb[0].mxu0
        %v2270 = vadd.f32 0.0, %v2269
        %v2271 = vpop.f32.mrb[0].mxu0
        %v2272 = vpop.f32.mrb[0].mxu0
        %v2273 = vadd.f32 0.0, %v2272
        %v2274 = vpop.f32.mrb[0].mxu0
        %2275 = vdwg.mxu0
        %v2276 = vadd.f32 %v2091, %v2227
        %v2277 = vadd.f32 %v2093, %v2229
        %v2278 = vadd.f32 %v2134, %v2270
        %v2279 = vadd.f32 %v2095, %v2231
        %v2280 = vadd.f32 %v2097, %v2233
        %v2281 = vadd.f32 %v2137, %v2273
        %v2282 = vld [vmem:[%s326] sm:$0xff]
        %v2283 = vld [vmem:[%s326 + $0x8] sm:$0xff]
        %v2284 = vld [vmem:[%s326 + $0x10] sm:$0xff]
        %v2285 = vpack.c.bf16 %v2282, %v2282
        %v2286 = vpack.c.bf16 %v2283, %v2283
        %v2287 = vpack.c.bf16 %v2284, %v2284
        %v2288 = vld [vmem:[%s6 + $0x4] sm:$0xf]
        %v2289 = vld [vmem:[%s6 + $0xc] sm:$0xf]
        %v2292 = vunpack.c.l.b16 %v2288
        %v2293 = vunpack.c.l.b16 %v2289
        %v2294 = vpack.c.b16 %v2293, %v2292
        %2295 = vrot.lane.b32.xlu0 %v2294, 112
        %v2296 = vpop.permute.xlu0 %2295
        %2300 = vrot.lane.b32.xlu0 %v2285, 109
        %v2301 = vpop.permute.xlu0 %2300
        %2302 = vrot.lane.b32.xlu0 %v2286, 109
        %v2303 = vpop.permute.xlu0 %2302
        %2304 = vrot.lane.b32.xlu0 %v2287, 109
        %v2305 = vpop.permute.xlu0 %2304
        %v2306 = vsel %vm1009, %v2301, %v2303
        %v2307 = vsel %vm1009, %v2303, %v2305
        %v2309 = vsel %vm581, %v2296, 0
        %v2312 = vsel %vm585, %v2306, 0
        %v2315 = vsel %vm585, %v2307, 0
        %v2318 = vsel %vm585, %v2305, 0
        %2320 = vmatprep.subr.bf16.mxu0 %v2315
        %2321 = vmatpush1.bf16.msra.mxu0 %v2312
        %2322 = vmatprep.subr.bf16.mxu0 0
        %2323 = vmatpush1.bf16.msra.mxu0 0
        %2324 = vmatprep.subr.bf16.mxu0 0
        %2325 = vmatpush1.bf16.msra.mxu0 0
        %2326 = vmatprep.subr.bf16.mxu0 0
        %2327 = vmatpush1.bf16.msra.mxu0 0
        %2328 = vmatprep.subr.bf16.mxu0 0
        %2329 = vmatpush1.bf16.msra.mxu0 0
        %2330 = vmatprep.subr.bf16.mxu0 0
        %2331 = vmatpush1.bf16.msra.mxu0 0
        %2332 = vmatprep.subr.bf16.mxu0 0
        %2333 = vmatpush1.bf16.msra.mxu0 0
        %2334 = vmatprep.subr.bf16.mxu0 0
        %2335 = vmatpush1.bf16.msra.mxu0 0
        %2336 = vmatprep.subr.bf16.mxu0 0
        %2337 = vmatpush1.bf16.msra.mxu0 0
        %2338 = vmatprep.subr.bf16.mxu0 0
        %2339 = vmatpush1.bf16.msra.mxu0 0
        %2340 = vmatprep.subr.bf16.mxu0 0
        %2341 = vmatpush1.bf16.msra.mxu0 0
        %2342 = vmatprep.subr.bf16.mxu0 0
        %2343 = vmatpush1.bf16.msra.mxu0 0
        %2344 = vmatprep.subr.bf16.mxu0 0
        %2345 = vmatpush1.bf16.msra.mxu0 0
        %2346 = vmatprep.subr.bf16.mxu0 0
        %2347 = vmatpush1.bf16.msra.mxu0 0
        %2348 = vmatprep.subr.bf16.mxu0 0
        %2349 = vmatpush1.bf16.msra.mxu0 0
        %2350 = vmatprep.subr.bf16.mxu0 0
        %2351 = vmatpush1.bf16.msra.mxu0 0
        %2352 = vmatprep.mubr.bf16.mxu0 0
        %2353 = vmatmul.mubr.bf16.gmra.mrb[0].mxu0 %v2309
        %v2354 = vpop.f32.mrb[0].mxu0
        %v2355 = vadd.f32 0.0, %v2354
        %v2356 = vpop.f32.mrb[0].mxu0
        %v2357 = vadd.f32 0.0, %v2356
        %v2358 = vpop.f32.mrb[0].mxu0
        %v2359 = vadd.f32 0.0, %v2358
        %v2360 = vpop.f32.mrb[0].mxu0
        %v2361 = vadd.f32 0.0, %v2360
        %2362 = vdwg.mxu0
        %2363 = vmatprep.subr.bf16.mxu0 0
        %2364 = vmatpush1.bf16.msra.mxu0 %v2318
        %2365 = vmatprep.subr.bf16.mxu0 0
        %2366 = vmatpush1.bf16.msra.mxu0 0
        %2367 = vmatprep.subr.bf16.mxu0 0
        %2368 = vmatpush1.bf16.msra.mxu0 0
        %2369 = vmatprep.subr.bf16.mxu0 0
        %2370 = vmatpush1.bf16.msra.mxu0 0
        %2371 = vmatprep.subr.bf16.mxu0 0
        %2372 = vmatpush1.bf16.msra.mxu0 0
        %2373 = vmatprep.subr.bf16.mxu0 0
        %2374 = vmatpush1.bf16.msra.mxu0 0
        %2375 = vmatprep.subr.bf16.mxu0 0
        %2376 = vmatpush1.bf16.msra.mxu0 0
        %2377 = vmatprep.subr.bf16.mxu0 0
        %2378 = vmatpush1.bf16.msra.mxu0 0
        %2379 = vmatprep.subr.bf16.mxu0 0
        %2380 = vmatpush1.bf16.msra.mxu0 0
        %2381 = vmatprep.subr.bf16.mxu0 0
        %2382 = vmatpush1.bf16.msra.mxu0 0
        %2383 = vmatprep.subr.bf16.mxu0 0
        %2384 = vmatpush1.bf16.msra.mxu0 0
        %2385 = vmatprep.subr.bf16.mxu0 0
        %2386 = vmatpush1.bf16.msra.mxu0 0
        %2387 = vmatprep.subr.bf16.mxu0 0
        %2388 = vmatpush1.bf16.msra.mxu0 0
        %2389 = vmatprep.subr.bf16.mxu0 0
        %2390 = vmatpush1.bf16.msra.mxu0 0
        %2391 = vmatprep.subr.bf16.mxu0 0
        %2392 = vmatpush1.bf16.msra.mxu0 0
        %2393 = vmatprep.subr.bf16.mxu0 0
        %2394 = vmatpush1.bf16.msra.mxu0 0
        %2395 = vmatprep.mubr.bf16.mxu0 0
        %2396 = vmatmul.mubr.bf16.gmra.mrb[0].mxu0 %v2309
        %v2397 = vpop.f32.mrb[0].mxu0
        %v2398 = vadd.f32 0.0, %v2397
        %v2399 = vpop.f32.mrb[0].mxu0
        %v2400 = vpop.f32.mrb[0].mxu0
        %v2401 = vadd.f32 0.0, %v2400
        %v2402 = vpop.f32.mrb[0].mxu0
        %2403 = vdwg.mxu0
        %v2404 = vadd.f32 %v2276, %v2355
        %v2405 = vadd.f32 %v2277, %v2357
        %v2406 = vadd.f32 %v2278, %v2398
        %v2407 = vadd.f32 %v2279, %v2359
        %v2408 = vadd.f32 %v2280, %v2361
        %v2409 = vadd.f32 %v2281, %v2401
        %2410 = vset.pattern.permute.xlu0 2
        %2411 = vperm.xlu0 %2410, %v339
        %v2412 = vpop.permute.xlu0 %2411
        %2414 = vset.pattern.permute.xlu0 2
        %2415 = vperm.xlu0 %2414, %v340
        %v2416 = vpop.permute.xlu0 %2415
        %v2418 = vadd.f32 %v2404, %v2412
        %v2419 = vadd.f32 %v2405, %v2412
        %v2420 = vadd.f32 %v2406, %v2412
        %v2421 = vadd.f32 %v2407, %v2416
        %v2422 = vadd.f32 %v2408, %v2416
        %v2423 = vadd.f32 %v2409, %v2416
        %2424 = vst [vmem:[%s320] sm:$0xff] %v2418
        %2425 = vst [vmem:[%s320 + $0x8] sm:$0xff] %v2419
        %2426 = vst.msk [vmem:[%s320 + $0x10] sm:$0xff] %vm1603, %v2420
        %2427 = vst [vmem:[%s320 + $0x18] sm:$0xff] %v2421
        %2428 = vst [vmem:[%s320 + $0x20] sm:$0xff] %v2422
        %2429 = vst.msk [vmem:[%s320 + $0x28] sm:$0xff] %vm1603, %v2423
        %s2430 = scalar_lea.vmem %s326, 24
        %v2431 = vld [vmem:[%s2430] sm:$0xff]
        %v2432 = vld [vmem:[%s2430 + $0x8] sm:$0xff]
        %v2433 = vld [vmem:[%s2430 + $0x10] sm:$0xff]
        %v2434 = vadd.f32 %v2431, %v2432
        %v2435 = vsel %vm345, %v2433, 0.0
        %v2436 = vadd.f32 %v2434, %v2435
        %2437 = vadd.xlane.f32.xlu0 %v2436
        %v2438 = vpop.xlane.xlu0 %2437
        %v2439 = vmul.f32 %v2431, %v2431
        %v2440 = vmul.f32 %v2432, %v2432
        %v2441 = vmul.f32 %v2433, %v2433
        %v2442 = vadd.f32 %v2439, %v2440
        %v2443 = vsel %vm345, %v2441, 0.0
        %v2444 = vadd.f32 %v2442, %v2443
        %2445 = vadd.xlane.f32.xlu0 %v2444
        %v2446 = vpop.xlane.xlu0 %2445
        %v2447 = vsel %vm358, %v2438, %v2446
        %v2448 = vsel %vm366, %v2447, 0.0
        %v2449 = vsel %vm368, %v2448, 0.0
        %v2450 = vrot.slane %v2449, 4
        %v2451 = vadd.f32 %v2449, %v2450
        %v2452 = vrot.slane %v2451, 2
        %v2453 = vadd.f32 %v2451, %v2452
        %v2454 = vrot.slane %v2453, 1
        %v2455 = vadd.f32 %v2453, %v2454
        %s2456 = vtos %v2455
        %s2457 = smul.f32 %s2456, 0.001953125
        %2458 = vrot.lane.b32.xlu0 %v2455, 127
        %v2459 = vpop.permute.xlu0 %2458
        %s2460 = vtos %v2459
        %s2461 = smul.f32 %s2460, 0.001953125
        %s2462 = smul.f32 %s2457, %s2457
        %s2463 = ssub.f32 %s2461, %s2462
        %s2464 = sadd.f32 %s2463, 1e-05
        %v2465 = vstv %s2464
        %v2466 = vrsqrt.pop %v2465
        %s2467 = vtos %v2466
        %v2468 = vstv %s2457
        %v2469 = vsel %vm364, %v2468, 0.0
        %v2470 = vstv %s2467
        %v2471 = vsel %vm364, %v2470, 0.0
        %v2472 = vsel %vm396, %v2447, 0.0
        %v2473 = vsel %vm368, %v2472, 0.0
        %v2474 = vrot.slane %v2473, 4
        %v2475 = vadd.f32 %v2473, %v2474
        %v2476 = vrot.slane %v2475, 2
        %v2477 = vadd.f32 %v2475, %v2476
        %v2478 = vrot.slane %v2477, 1
        %v2479 = vadd.f32 %v2477, %v2478
        %s2480 = vtos %v2479
        %s2481 = smul.f32 %s2480, 0.001953125
        %2482 = vrot.lane.b32.xlu0 %v2479, 127
        %v2483 = vpop.permute.xlu0 %2482
        %s2484 = vtos %v2483
        %s2485 = smul.f32 %s2484, 0.001953125
        %s2486 = smul.f32 %s2481, %s2481
        %s2487 = ssub.f32 %s2485, %s2486
        %s2488 = sadd.f32 %s2487, 1e-05
        %v2489 = vstv %s2488
        %v2490 = vrsqrt.pop %v2489
        %s2491 = vtos %v2490
        %v2492 = vstv %s2481
        %v2493 = vsel %vm394, %v2492, %v2469
        %v2494 = vstv %s2491
        %v2495 = vsel %vm394, %v2494, %v2471
        %v2496 = vsel %vm425, %v2447, 0.0
        %v2497 = vsel %vm368, %v2496, 0.0
        %v2498 = vrot.slane %v2497, 4
        %v2499 = vadd.f32 %v2497, %v2498
        %v2500 = vrot.slane %v2499, 2
        %v2501 = vadd.f32 %v2499, %v2500
        %v2502 = vrot.slane %v2501, 1
        %v2503 = vadd.f32 %v2501, %v2502
        %s2504 = vtos %v2503
        %s2505 = smul.f32 %s2504, 0.001953125
        %2506 = vrot.lane.b32.xlu0 %v2503, 127
        %v2507 = vpop.permute.xlu0 %2506
        %s2508 = vtos %v2507
        %s2509 = smul.f32 %s2508, 0.001953125
        %s2510 = smul.f32 %s2505, %s2505
        %s2511 = ssub.f32 %s2509, %s2510
        %s2512 = sadd.f32 %s2511, 1e-05
        %v2513 = vstv %s2512
        %v2514 = vrsqrt.pop %v2513
        %s2515 = vtos %v2514
        %v2516 = vstv %s2505
        %v2517 = vsel %vm423, %v2516, %v2493
        %v2518 = vstv %s2515
        %v2519 = vsel %vm423, %v2518, %v2495
        %v2520 = vsel %vm454, %v2447, 0.0
        %v2521 = vsel %vm368, %v2520, 0.0
        %v2522 = vrot.slane %v2521, 4
        %v2523 = vadd.f32 %v2521, %v2522
        %v2524 = vrot.slane %v2523, 2
        %v2525 = vadd.f32 %v2523, %v2524
        %v2526 = vrot.slane %v2525, 1
        %v2527 = vadd.f32 %v2525, %v2526
        %s2528 = vtos %v2527
        %s2529 = smul.f32 %s2528, 0.001953125
        %2530 = vrot.lane.b32.xlu0 %v2527, 127
        %v2531 = vpop.permute.xlu0 %2530
        %s2532 = vtos %v2531
        %s2533 = smul.f32 %s2532, 0.001953125
        %s2534 = smul.f32 %s2529, %s2529
        %s2535 = ssub.f32 %s2533, %s2534
        %s2536 = sadd.f32 %s2535, 1e-05
        %v2537 = vstv %s2536
        %v2538 = vrsqrt.pop %v2537
        %s2539 = vtos %v2538
        %v2540 = vstv %s2529
        %v2541 = vsel %vm452, %v2540, %v2517
        %v2542 = vstv %s2539
        %v2543 = vsel %vm452, %v2542, %v2519
        %v2544 = vsub.f32 %v2431, %v2541
        %v2545 = vsub.f32 %v2432, %v2541
        %v2546 = vsub.f32 %v2433, %v2541
        %v2547 = vmul.f32 %v2544, %v2543
        %v2548 = vmul.f32 %v2545, %v2543
        %v2549 = vmul.f32 %v2546, %v2543
        %v2550 = vmul.f32 %v2547, %v488
        %v2551 = vmul.f32 %v2548, %v488
        %v2552 = vmul.f32 %v2549, %v488
        %v2553 = vadd.f32 %v2550, %v495
        %v2554 = vadd.f32 %v2551, %v495
        %v2555 = vadd.f32 %v2552, %v495
        %v2556 = vsub.f32 0.0, %v2553
        %v2557 = vsub.f32 0.0, %v2554
        %v2558 = vsub.f32 0.0, %v2555
        %v2559 = vmul.f32 %v2556, 1.442695
        %v2560 = vpow.pop %v2559
        %v2561 = vmul.f32 %v2557, 1.442695
        %v2562 = vpow.pop %v2561
        %v2563 = vmul.f32 %v2558, 1.442695
        %v2564 = vpow.pop %v2563
        %v2565 = vadd.f32 %v2560, 1.0
        %v2566 = vadd.f32 %v2562, 1.0
        %v2567 = vadd.f32 %v2564, 1.0
        %v2568 = vrcp.pop %v2565
        %v2569 = vrcp.pop %v2566
        %v2570 = vrcp.pop %v2567
        %v2571 = vmul.f32 %v2553, %v2568
        %v2572 = vmul.f32 %v2554, %v2569
        %v2573 = vmul.f32 %v2555, %v2570
        %v2574 = vmul.f32 %v2571, %v522
        %v2575 = vmul.f32 %v2572, %v526
        %v2576 = vmul.f32 %v2573, %v530
        %v2577 = vpack.c.bf16 %v2574, %v2574
        %v2578 = vpack.c.bf16 %v2575, %v2575
        %v2579 = vpack.c.bf16 %v2576, %v2576
        %v2583 = vunpack.c.l.b16 %v2577
        %v2584 = vunpack.c.l.b16 %v2578
        %v2585 = vunpack.c.l.b16 %v2579
        %v2586 = vpack.c.b16 %v2584, %v2583
        %v2587 = vpack.c.b16 %v2585, %v2585
        %s2590 = scalar_lea.vmem [#allocation2], 12
        %2591 = vst [vmem:[%s2590] sm:$0xff] %v2586
        %2592 = vst.msk [vmem:[%s2590 + $0x8] sm:$0xf] %vm551, %v2587
        %v2593 = vld [vmem:[#allocation7] sm:$0xf]
        %v2594 = vld [vmem:[#allocation7 + $0x4] sm:$0xf]
        %v2595 = vld [vmem:[%s2590] sm:$0xff]
        %v2596 = vld [vmem:[%s2590 + $0x8] sm:$0xf]
        %v2599 = vunpack.c.l.b16 %v2593
        %v2600 = vunpack.c.l.b16 %v2594
        %v2601 = vpack.c.b16 %v2600, %v2599
        %2602 = vrot.lane.b32.xlu0 %v2601, 120
        %v2603 = vpop.permute.xlu0 %2602
        %v2606 = vunpack.c.l.b16 %v2595
        %v2607 = vunpack.c.h.b16 %v2595
        %v2608 = vunpack.c.l.b16 %v2596
        %v2609 = vpack.c.b16 %v2606, %v2606
        %v2610 = vpack.c.b16 %v2607, %v2607
        %v2611 = vpack.c.b16 %v2608, %v2608
        %2612 = vrot.lane.b32.xlu0 %v2609, 127
        %v2613 = vpop.permute.xlu0 %2612
        %2614 = vrot.lane.b32.xlu0 %v2610, 127
        %v2615 = vpop.permute.xlu0 %2614
        %2616 = vrot.lane.b32.xlu0 %v2611, 127
        %v2617 = vpop.permute.xlu0 %2616
        %v2618 = vsel %vm578, %v2613, %v2615
        %v2619 = vsel %vm578, %v2615, %v2617
        %v2621 = vsel %vm581, %v2603, 0
        %v2624 = vsel %vm585, %v2618, 0
        %v2627 = vsel %vm585, %v2619, 0
        %v2630 = vsel %vm585, %v2617, 0
        %2632 = vmatprep.subr.bf16.mxu0 %v2627
        %2633 = vmatpush1.bf16.msra.mxu0 %v2624
        %2634 = vmatprep.subr.bf16.mxu0 0
        %2635 = vmatpush1.bf16.msra.mxu0 0
        %2636 = vmatprep.subr.bf16.mxu0 0
        %2637 = vmatpush1.bf16.msra.mxu0 0
        %2638 = vmatprep.subr.bf16.mxu0 0
        %2639 = vmatpush1.bf16.msra.mxu0 0
        %2640 = vmatprep.subr.bf16.mxu0 0
        %2641 = vmatpush1.bf16.msra.mxu0 0
        %2642 = vmatprep.subr.bf16.mxu0 0
        %2643 = vmatpush1.bf16.msra.mxu0 0
        %2644 = vmatprep.subr.bf16.mxu0 0
        %2645 = vmatpush1.bf16.msra.mxu0 0
        %2646 = vmatprep.subr.bf16.mxu0 0
        %2647 = vmatpush1.bf16.msra.mxu0 0
        %2648 = vmatprep.subr.bf16.mxu0 0
        %2649 = vmatpush1.bf16.msra.mxu0 0
        %2650 = vmatprep.subr.bf16.mxu0 0
        %2651 = vmatpush1.bf16.msra.mxu0 0
        %2652 = vmatprep.subr.bf16.mxu0 0
        %2653 = vmatpush1.bf16.msra.mxu0 0
        %2654 = vmatprep.subr.bf16.mxu0 0
        %2655 = vmatpush1.bf16.msra.mxu0 0
        %2656 = vmatprep.subr.bf16.mxu0 0
        %2657 = vmatpush1.bf16.msra.mxu0 0
        %2658 = vmatprep.subr.bf16.mxu0 0
        %2659 = vmatpush1.bf16.msra.mxu0 0
        %2660 = vmatprep.subr.bf16.mxu0 0
        %2661 = vmatpush1.bf16.msra.mxu0 0
        %2662 = vmatprep.subr.bf16.mxu0 0
        %2663 = vmatpush1.bf16.msra.mxu0 0
        %2664 = vmatprep.mubr.bf16.mxu0 0
        %2665 = vmatmul.mubr.bf16.gmra.mrb[0].mxu0 %v2621
        %v2666 = vpop.f32.mrb[0].mxu0
        %v2667 = vadd.f32 0.0, %v2666
        %v2668 = vpop.f32.mrb[0].mxu0
        %v2669 = vadd.f32 0.0, %v2668
        %v2670 = vpop.f32.mrb[0].mxu0
        %v2671 = vadd.f32 0.0, %v2670
        %v2672 = vpop.f32.mrb[0].mxu0
        %v2673 = vadd.f32 0.0, %v2672
        %2674 = vdwg.mxu0
        %2675 = vmatprep.subr.bf16.mxu0 0
        %2676 = vmatpush1.bf16.msra.mxu0 %v2630
        %2677 = vmatprep.subr.bf16.mxu0 0
        %2678 = vmatpush1.bf16.msra.mxu0 0
        %2679 = vmatprep.subr.bf16.mxu0 0
        %2680 = vmatpush1.bf16.msra.mxu0 0
        %2681 = vmatprep.subr.bf16.mxu0 0
        %2682 = vmatpush1.bf16.msra.mxu0 0
        %2683 = vmatprep.subr.bf16.mxu0 0
        %2684 = vmatpush1.bf16.msra.mxu0 0
        %2685 = vmatprep.subr.bf16.mxu0 0
        %2686 = vmatpush1.bf16.msra.mxu0 0
        %2687 = vmatprep.subr.bf16.mxu0 0
        %2688 = vmatpush1.bf16.msra.mxu0 0
        %2689 = vmatprep.subr.bf16.mxu0 0
        %2690 = vmatpush1.bf16.msra.mxu0 0
        %2691 = vmatprep.subr.bf16.mxu0 0
        %2692 = vmatpush1.bf16.msra.mxu0 0
        %2693 = vmatprep.subr.bf16.mxu0 0
        %2694 = vmatpush1.bf16.msra.mxu0 0
        %2695 = vmatprep.subr.bf16.mxu0 0
        %2696 = vmatpush1.bf16.msra.mxu0 0
        %2697 = vmatprep.subr.bf16.mxu0 0
        %2698 = vmatpush1.bf16.msra.mxu0 0
        %2699 = vmatprep.subr.bf16.mxu0 0
        %2700 = vmatpush1.bf16.msra.mxu0 0
        %2701 = vmatprep.subr.bf16.mxu0 0
        %2702 = vmatpush1.bf16.msra.mxu0 0
        %2703 = vmatprep.subr.bf16.mxu0 0
        %2704 = vmatpush1.bf16.msra.mxu0 0
        %2705 = vmatprep.subr.bf16.mxu0 0
        %2706 = vmatpush1.bf16.msra.mxu0 0
        %2707 = vmatprep.mubr.bf16.mxu0 0
        %2708 = vmatmul.mubr.bf16.gmra.mrb[0].mxu0 %v2621
        %v2709 = vpop.f32.mrb[0].mxu0
        %v2710 = vadd.f32 0.0, %v2709
        %v2711 = vpop.f32.mrb[0].mxu0
        %v2712 = vpop.f32.mrb[0].mxu0
        %v2713 = vadd.f32 0.0, %v2712
        %v2714 = vpop.f32.mrb[0].mxu0
        %2715 = vdwg.mxu0
        %v2717 = vsel %vm581, %v2601, 0
        %v2720 = vsel %vm585, %v2609, 0
        %v2723 = vsel %vm585, %v2610, 0
        %v2726 = vsel %vm585, %v2611, 0
        %2728 = vmatprep.subr.bf16.mxu0 %v2723
        %2729 = vmatpush1.bf16.msra.mxu0 %v2720
        %2730 = vmatprep.subr.bf16.mxu0 0
        %2731 = vmatpush1.bf16.msra.mxu0 0
        %2732 = vmatprep.subr.bf16.mxu0 0
        %2733 = vmatpush1.bf16.msra.mxu0 0
        %2734 = vmatprep.subr.bf16.mxu0 0
        %2735 = vmatpush1.bf16.msra.mxu0 0
        %2736 = vmatprep.subr.bf16.mxu0 0
        %2737 = vmatpush1.bf16.msra.mxu0 0
        %2738 = vmatprep.subr.bf16.mxu0 0
        %2739 = vmatpush1.bf16.msra.mxu0 0
        %2740 = vmatprep.subr.bf16.mxu0 0
        %2741 = vmatpush1.bf16.msra.mxu0 0
        %2742 = vmatprep.subr.bf16.mxu0 0
        %2743 = vmatpush1.bf16.msra.mxu0 0
        %2744 = vmatprep.subr.bf16.mxu0 0
        %2745 = vmatpush1.bf16.msra.mxu0 0
        %2746 = vmatprep.subr.bf16.mxu0 0
        %2747 = vmatpush1.bf16.msra.mxu0 0
        %2748 = vmatprep.subr.bf16.mxu0 0
        %2749 = vmatpush1.bf16.msra.mxu0 0
        %2750 = vmatprep.subr.bf16.mxu0 0
        %2751 = vmatpush1.bf16.msra.mxu0 0
        %2752 = vmatprep.subr.bf16.mxu0 0
        %2753 = vmatpush1.bf16.msra.mxu0 0
        %2754 = vmatprep.subr.bf16.mxu0 0
        %2755 = vmatpush1.bf16.msra.mxu0 0
        %2756 = vmatprep.subr.bf16.mxu0 0
        %2757 = vmatpush1.bf16.msra.mxu0 0
        %2758 = vmatprep.subr.bf16.mxu0 0
        %2759 = vmatpush1.bf16.msra.mxu0 0
        %2760 = vmatprep.mubr.bf16.mxu0 0
        %2761 = vmatmul.mubr.bf16.gmra.mrb[0].mxu0 %v2717
        %v2762 = vpop.f32.mrb[0].mxu0
        %v2763 = vadd.f32 %v2667, %v2762
        %v2764 = vpop.f32.mrb[0].mxu0
        %v2765 = vadd.f32 %v2669, %v2764
        %v2766 = vpop.f32.mrb[0].mxu0
        %v2767 = vadd.f32 %v2671, %v2766
        %v2768 = vpop.f32.mrb[0].mxu0
        %v2769 = vadd.f32 %v2673, %v2768
        %2770 = vdwg.mxu0
        %2771 = vmatprep.subr.bf16.mxu0 0
        %2772 = vmatpush1.bf16.msra.mxu0 %v2726
        %2773 = vmatprep.subr.bf16.mxu0 0
        %2774 = vmatpush1.bf16.msra.mxu0 0
        %2775 = vmatprep.subr.bf16.mxu0 0
        %2776 = vmatpush1.bf16.msra.mxu0 0
        %2777 = vmatprep.subr.bf16.mxu0 0
        %2778 = vmatpush1.bf16.msra.mxu0 0
        %2779 = vmatprep.subr.bf16.mxu0 0
        %2780 = vmatpush1.bf16.msra.mxu0 0
        %2781 = vmatprep.subr.bf16.mxu0 0
        %2782 = vmatpush1.bf16.msra.mxu0 0
        %2783 = vmatprep.subr.bf16.mxu0 0
        %2784 = vmatpush1.bf16.msra.mxu0 0
        %2785 = vmatprep.subr.bf16.mxu0 0
        %2786 = vmatpush1.bf16.msra.mxu0 0
        %2787 = vmatprep.subr.bf16.mxu0 0
        %2788 = vmatpush1.bf16.msra.mxu0 0
        %2789 = vmatprep.subr.bf16.mxu0 0
        %2790 = vmatpush1.bf16.msra.mxu0 0
        %2791 = vmatprep.subr.bf16.mxu0 0
        %2792 = vmatpush1.bf16.msra.mxu0 0
        %2793 = vmatprep.subr.bf16.mxu0 0
        %2794 = vmatpush1.bf16.msra.mxu0 0
        %2795 = vmatprep.subr.bf16.mxu0 0
        %2796 = vmatpush1.bf16.msra.mxu0 0
        %2797 = vmatprep.subr.bf16.mxu0 0
        %2798 = vmatpush1.bf16.msra.mxu0 0
        %2799 = vmatprep.subr.bf16.mxu0 0
        %2800 = vmatpush1.bf16.msra.mxu0 0
        %2801 = vmatprep.subr.bf16.mxu0 0
        %2802 = vmatpush1.bf16.msra.mxu0 0
        %2803 = vmatprep.mubr.bf16.mxu0 0
        %2804 = vmatmul.mubr.bf16.gmra.mrb[0].mxu0 %v2717
        %v2805 = vpop.f32.mrb[0].mxu0
        %v2806 = vadd.f32 %v2710, %v2805
        %v2807 = vpop.f32.mrb[0].mxu0
        %v2808 = vpop.f32.mrb[0].mxu0
        %v2809 = vadd.f32 %v2713, %v2808
        %v2810 = vpop.f32.mrb[0].mxu0
        %2811 = vdwg.mxu0
        %2812 = vrot.lane.b32.xlu0 %v2601, 112
        %v2813 = vpop.permute.xlu0 %2812
        %2814 = vrot.lane.b32.xlu0 %v2609, 126
        %v2815 = vpop.permute.xlu0 %2814
        %2816 = vrot.lane.b32.xlu0 %v2610, 126
        %v2817 = vpop.permute.xlu0 %2816
        %2818 = vrot.lane.b32.xlu0 %v2611, 126
        %v2819 = vpop.permute.xlu0 %2818
        %v2820 = vsel %vm783, %v2815, %v2817
        %v2821 = vsel %vm783, %v2817, %v2819
        %v2823 = vsel %vm581, %v2813, 0
        %v2826 = vsel %vm585, %v2820, 0
        %v2829 = vsel %vm585, %v2821, 0
        %v2832 = vsel %vm585, %v2819, 0
        %2834 = vmatprep.subr.bf16.mxu0 %v2829
        %2835 = vmatpush1.bf16.msra.mxu0 %v2826
        %2836 = vmatprep.subr.bf16.mxu0 0
        %2837 = vmatpush1.bf16.msra.mxu0 0
        %2838 = vmatprep.subr.bf16.mxu0 0
        %2839 = vmatpush1.bf16.msra.mxu0 0
        %2840 = vmatprep.subr.bf16.mxu0 0
        %2841 = vmatpush1.bf16.msra.mxu0 0
        %2842 = vmatprep.subr.bf16.mxu0 0
        %2843 = vmatpush1.bf16.msra.mxu0 0
        %2844 = vmatprep.subr.bf16.mxu0 0
        %2845 = vmatpush1.bf16.msra.mxu0 0
        %2846 = vmatprep.subr.bf16.mxu0 0
        %2847 = vmatpush1.bf16.msra.mxu0 0
        %2848 = vmatprep.subr.bf16.mxu0 0
        %2849 = vmatpush1.bf16.msra.mxu0 0
        %2850 = vmatprep.subr.bf16.mxu0 0
        %2851 = vmatpush1.bf16.msra.mxu0 0
        %2852 = vmatprep.subr.bf16.mxu0 0
        %2853 = vmatpush1.bf16.msra.mxu0 0
        %2854 = vmatprep.subr.bf16.mxu0 0
        %2855 = vmatpush1.bf16.msra.mxu0 0
        %2856 = vmatprep.subr.bf16.mxu0 0
        %2857 = vmatpush1.bf16.msra.mxu0 0
        %2858 = vmatprep.subr.bf16.mxu0 0
        %2859 = vmatpush1.bf16.msra.mxu0 0
        %2860 = vmatprep.subr.bf16.mxu0 0
        %2861 = vmatpush1.bf16.msra.mxu0 0
        %2862 = vmatprep.subr.bf16.mxu0 0
        %2863 = vmatpush1.bf16.msra.mxu0 0
        %2864 = vmatprep.subr.bf16.mxu0 0
        %2865 = vmatpush1.bf16.msra.mxu0 0
        %2866 = vmatprep.mubr.bf16.mxu0 0
        %2867 = vmatmul.mubr.bf16.gmra.mrb[0].mxu0 %v2823
        %v2868 = vpop.f32.mrb[0].mxu0
        %v2869 = vadd.f32 0.0, %v2868
        %v2870 = vpop.f32.mrb[0].mxu0
        %v2871 = vadd.f32 0.0, %v2870
        %v2872 = vpop.f32.mrb[0].mxu0
        %v2873 = vadd.f32 0.0, %v2872
        %v2874 = vpop.f32.mrb[0].mxu0
        %v2875 = vadd.f32 0.0, %v2874
        %2876 = vdwg.mxu0
        %2877 = vmatprep.subr.bf16.mxu0 0
        %2878 = vmatpush1.bf16.msra.mxu0 %v2832
        %2879 = vmatprep.subr.bf16.mxu0 0
        %2880 = vmatpush1.bf16.msra.mxu0 0
        %2881 = vmatprep.subr.bf16.mxu0 0
        %2882 = vmatpush1.bf16.msra.mxu0 0
        %2883 = vmatprep.subr.bf16.mxu0 0
        %2884 = vmatpush1.bf16.msra.mxu0 0
        %2885 = vmatprep.subr.bf16.mxu0 0
        %2886 = vmatpush1.bf16.msra.mxu0 0
        %2887 = vmatprep.subr.bf16.mxu0 0
        %2888 = vmatpush1.bf16.msra.mxu0 0
        %2889 = vmatprep.subr.bf16.mxu0 0
        %2890 = vmatpush1.bf16.msra.mxu0 0
        %2891 = vmatprep.subr.bf16.mxu0 0
        %2892 = vmatpush1.bf16.msra.mxu0 0
        %2893 = vmatprep.subr.bf16.mxu0 0
        %2894 = vmatpush1.bf16.msra.mxu0 0
        %2895 = vmatprep.subr.bf16.mxu0 0
        %2896 = vmatpush1.bf16.msra.mxu0 0
        %2897 = vmatprep.subr.bf16.mxu0 0
        %2898 = vmatpush1.bf16.msra.mxu0 0
        %2899 = vmatprep.subr.bf16.mxu0 0
        %2900 = vmatpush1.bf16.msra.mxu0 0
        %2901 = vmatprep.subr.bf16.mxu0 0
        %2902 = vmatpush1.bf16.msra.mxu0 0
        %2903 = vmatprep.subr.bf16.mxu0 0
        %2904 = vmatpush1.bf16.msra.mxu0 0
        %2905 = vmatprep.subr.bf16.mxu0 0
        %2906 = vmatpush1.bf16.msra.mxu0 0
        %2907 = vmatprep.subr.bf16.mxu0 0
        %2908 = vmatpush1.bf16.msra.mxu0 0
        %2909 = vmatprep.mubr.bf16.mxu0 0
        %2910 = vmatmul.mubr.bf16.gmra.mrb[0].mxu0 %v2823
        %v2911 = vpop.f32.mrb[0].mxu0
        %v2912 = vadd.f32 0.0, %v2911
        %v2913 = vpop.f32.mrb[0].mxu0
        %v2914 = vpop.f32.mrb[0].mxu0
        %v2915 = vadd.f32 0.0, %v2914
        %v2916 = vpop.f32.mrb[0].mxu0
        %2917 = vdwg.mxu0
        %v2918 = vadd.f32 %v2763, %v2869
        %v2919 = vadd.f32 %v2765, %v2871
        %v2920 = vadd.f32 %v2806, %v2912
        %v2921 = vadd.f32 %v2767, %v2873
        %v2922 = vadd.f32 %v2769, %v2875
        %v2923 = vadd.f32 %v2809, %v2915
        %2924 = vrot.lane.b32.xlu0 %v2601, 104
        %v2925 = vpop.permute.xlu0 %2924
        %2926 = vrot.lane.b32.xlu0 %v2609, 110
        %v2927 = vpop.permute.xlu0 %2926
        %2928 = vrot.lane.b32.xlu0 %v2610, 110
        %v2929 = vpop.permute.xlu0 %2928
        %2930 = vrot.lane.b32.xlu0 %v2611, 110
        %v2931 = vpop.permute.xlu0 %2930
        %v2932 = vsel %vm896, %v2927, %v2929
        %v2933 = vsel %vm896, %v2929, %v2931
        %v2935 = vsel %vm581, %v2925, 0
        %v2938 = vsel %vm585, %v2932, 0
        %v2941 = vsel %vm585, %v2933, 0
        %v2944 = vsel %vm585, %v2931, 0
        %2946 = vmatprep.subr.bf16.mxu0 %v2941
        %2947 = vmatpush1.bf16.msra.mxu0 %v2938
        %2948 = vmatprep.subr.bf16.mxu0 0
        %2949 = vmatpush1.bf16.msra.mxu0 0
        %2950 = vmatprep.subr.bf16.mxu0 0
        %2951 = vmatpush1.bf16.msra.mxu0 0
        %2952 = vmatprep.subr.bf16.mxu0 0
        %2953 = vmatpush1.bf16.msra.mxu0 0
        %2954 = vmatprep.subr.bf16.mxu0 0
        %2955 = vmatpush1.bf16.msra.mxu0 0
        %2956 = vmatprep.subr.bf16.mxu0 0
        %2957 = vmatpush1.bf16.msra.mxu0 0
        %2958 = vmatprep.subr.bf16.mxu0 0
        %2959 = vmatpush1.bf16.msra.mxu0 0
        %2960 = vmatprep.subr.bf16.mxu0 0
        %2961 = vmatpush1.bf16.msra.mxu0 0
        %2962 = vmatprep.subr.bf16.mxu0 0
        %2963 = vmatpush1.bf16.msra.mxu0 0
        %2964 = vmatprep.subr.bf16.mxu0 0
        %2965 = vmatpush1.bf16.msra.mxu0 0
        %2966 = vmatprep.subr.bf16.mxu0 0
        %2967 = vmatpush1.bf16.msra.mxu0 0
        %2968 = vmatprep.subr.bf16.mxu0 0
        %2969 = vmatpush1.bf16.msra.mxu0 0
        %2970 = vmatprep.subr.bf16.mxu0 0
        %2971 = vmatpush1.bf16.msra.mxu0 0
        %2972 = vmatprep.subr.bf16.mxu0 0
        %2973 = vmatpush1.bf16.msra.mxu0 0
        %2974 = vmatprep.subr.bf16.mxu0 0
        %2975 = vmatpush1.bf16.msra.mxu0 0
        %2976 = vmatprep.subr.bf16.mxu0 0
        %2977 = vmatpush1.bf16.msra.mxu0 0
        %2978 = vmatprep.mubr.bf16.mxu0 0
        %2979 = vmatmul.mubr.bf16.gmra.mrb[0].mxu0 %v2935
        %v2980 = vpop.f32.mrb[0].mxu0
        %v2981 = vadd.f32 0.0, %v2980
        %v2982 = vpop.f32.mrb[0].mxu0
        %v2983 = vadd.f32 0.0, %v2982
        %v2984 = vpop.f32.mrb[0].mxu0
        %v2985 = vadd.f32 0.0, %v2984
        %v2986 = vpop.f32.mrb[0].mxu0
        %v2987 = vadd.f32 0.0, %v2986
        %2988 = vdwg.mxu0
        %2989 = vmatprep.subr.bf16.mxu0 0
        %2990 = vmatpush1.bf16.msra.mxu0 %v2944
        %2991 = vmatprep.subr.bf16.mxu0 0
        %2992 = vmatpush1.bf16.msra.mxu0 0
        %2993 = vmatprep.subr.bf16.mxu0 0
        %2994 = vmatpush1.bf16.msra.mxu0 0
        %2995 = vmatprep.subr.bf16.mxu0 0
        %2996 = vmatpush1.bf16.msra.mxu0 0
        %2997 = vmatprep.subr.bf16.mxu0 0
        %2998 = vmatpush1.bf16.msra.mxu0 0
        %2999 = vmatprep.subr.bf16.mxu0 0
        %3000 = vmatpush1.bf16.msra.mxu0 0
        %3001 = vmatprep.subr.bf16.mxu0 0
        %3002 = vmatpush1.bf16.msra.mxu0 0
        %3003 = vmatprep.subr.bf16.mxu0 0
        %3004 = vmatpush1.bf16.msra.mxu0 0
        %3005 = vmatprep.subr.bf16.mxu0 0
        %3006 = vmatpush1.bf16.msra.mxu0 0
        %3007 = vmatprep.subr.bf16.mxu0 0
        %3008 = vmatpush1.bf16.msra.mxu0 0
        %3009 = vmatprep.subr.bf16.mxu0 0
        %3010 = vmatpush1.bf16.msra.mxu0 0
        %3011 = vmatprep.subr.bf16.mxu0 0
        %3012 = vmatpush1.bf16.msra.mxu0 0
        %3013 = vmatprep.subr.bf16.mxu0 0
        %3014 = vmatpush1.bf16.msra.mxu0 0
        %3015 = vmatprep.subr.bf16.mxu0 0
        %3016 = vmatpush1.bf16.msra.mxu0 0
        %3017 = vmatprep.subr.bf16.mxu0 0
        %3018 = vmatpush1.bf16.msra.mxu0 0
        %3019 = vmatprep.subr.bf16.mxu0 0
        %3020 = vmatpush1.bf16.msra.mxu0 0
        %3021 = vmatprep.mubr.bf16.mxu0 0
        %3022 = vmatmul.mubr.bf16.gmra.mrb[0].mxu0 %v2935
        %v3023 = vpop.f32.mrb[0].mxu0
        %v3024 = vadd.f32 0.0, %v3023
        %v3025 = vpop.f32.mrb[0].mxu0
        %v3026 = vpop.f32.mrb[0].mxu0
        %v3027 = vadd.f32 0.0, %v3026
        %v3028 = vpop.f32.mrb[0].mxu0
        %3029 = vdwg.mxu0
        %v3030 = vadd.f32 %v2918, %v2981
        %v3031 = vadd.f32 %v2919, %v2983
        %v3032 = vadd.f32 %v2920, %v3024
        %v3033 = vadd.f32 %v2921, %v2985
        %v3034 = vadd.f32 %v2922, %v2987
        %v3035 = vadd.f32 %v2923, %v3027
        %3036 = vrot.lane.b32.xlu0 %v2601, 96
        %v3037 = vpop.permute.xlu0 %3036
        %3038 = vrot.lane.b32.xlu0 %v2609, 109
        %v3039 = vpop.permute.xlu0 %3038
        %3040 = vrot.lane.b32.xlu0 %v2610, 109
        %v3041 = vpop.permute.xlu0 %3040
        %3042 = vrot.lane.b32.xlu0 %v2611, 109
        %v3043 = vpop.permute.xlu0 %3042
        %v3044 = vsel %vm1009, %v3039, %v3041
        %v3045 = vsel %vm1009, %v3041, %v3043
        %v3047 = vsel %vm581, %v3037, 0
        %v3050 = vsel %vm585, %v3044, 0
        %v3053 = vsel %vm585, %v3045, 0
        %v3056 = vsel %vm585, %v3043, 0
        %3058 = vmatprep.subr.bf16.mxu0 %v3053
        %3059 = vmatpush1.bf16.msra.mxu0 %v3050
        %3060 = vmatprep.subr.bf16.mxu0 0
        %3061 = vmatpush1.bf16.msra.mxu0 0
        %3062 = vmatprep.subr.bf16.mxu0 0
        %3063 = vmatpush1.bf16.msra.mxu0 0
        %3064 = vmatprep.subr.bf16.mxu0 0
        %3065 = vmatpush1.bf16.msra.mxu0 0
        %3066 = vmatprep.subr.bf16.mxu0 0
        %3067 = vmatpush1.bf16.msra.mxu0 0
        %3068 = vmatprep.subr.bf16.mxu0 0
        %3069 = vmatpush1.bf16.msra.mxu0 0
        %3070 = vmatprep.subr.bf16.mxu0 0
        %3071 = vmatpush1.bf16.msra.mxu0 0
        %3072 = vmatprep.subr.bf16.mxu0 0
        %3073 = vmatpush1.bf16.msra.mxu0 0
        %3074 = vmatprep.subr.bf16.mxu0 0
        %3075 = vmatpush1.bf16.msra.mxu0 0
        %3076 = vmatprep.subr.bf16.mxu0 0
        %3077 = vmatpush1.bf16.msra.mxu0 0
        %3078 = vmatprep.subr.bf16.mxu0 0
        %3079 = vmatpush1.bf16.msra.mxu0 0
        %3080 = vmatprep.subr.bf16.mxu0 0
        %3081 = vmatpush1.bf16.msra.mxu0 0
        %3082 = vmatprep.subr.bf16.mxu0 0
        %3083 = vmatpush1.bf16.msra.mxu0 0
        %3084 = vmatprep.subr.bf16.mxu0 0
        %3085 = vmatpush1.bf16.msra.mxu0 0
        %3086 = vmatprep.subr.bf16.mxu0 0
        %3087 = vmatpush1.bf16.msra.mxu0 0
        %3088 = vmatprep.subr.bf16.mxu0 0
        %3089 = vmatpush1.bf16.msra.mxu0 0
        %3090 = vmatprep.mubr.bf16.mxu0 0
        %3091 = vmatmul.mubr.bf16.gmra.mrb[0].mxu0 %v3047
        %v3092 = vpop.f32.mrb[0].mxu0
        %v3093 = vadd.f32 0.0, %v3092
        %v3094 = vpop.f32.mrb[0].mxu0
        %v3095 = vadd.f32 0.0, %v3094
        %v3096 = vpop.f32.mrb[0].mxu0
        %v3097 = vadd.f32 0.0, %v3096
        %v3098 = vpop.f32.mrb[0].mxu0
        %v3099 = vadd.f32 0.0, %v3098
        %3100 = vdwg.mxu0
        %3101 = vmatprep.subr.bf16.mxu0 0
        %3102 = vmatpush1.bf16.msra.mxu0 %v3056
        %3103 = vmatprep.subr.bf16.mxu0 0
        %3104 = vmatpush1.bf16.msra.mxu0 0
        %3105 = vmatprep.subr.bf16.mxu0 0
        %3106 = vmatpush1.bf16.msra.mxu0 0
        %3107 = vmatprep.subr.bf16.mxu0 0
        %3108 = vmatpush1.bf16.msra.mxu0 0
        %3109 = vmatprep.subr.bf16.mxu0 0
        %3110 = vmatpush1.bf16.msra.mxu0 0
        %3111 = vmatprep.subr.bf16.mxu0 0
        %3112 = vmatpush1.bf16.msra.mxu0 0
        %3113 = vmatprep.subr.bf16.mxu0 0
        %3114 = vmatpush1.bf16.msra.mxu0 0
        %3115 = vmatprep.subr.bf16.mxu0 0
        %3116 = vmatpush1.bf16.msra.mxu0 0
        %3117 = vmatprep.subr.bf16.mxu0 0
        %3118 = vmatpush1.bf16.msra.mxu0 0
        %3119 = vmatprep.subr.bf16.mxu0 0
        %3120 = vmatpush1.bf16.msra.mxu0 0
        %3121 = vmatprep.subr.bf16.mxu0 0
        %3122 = vmatpush1.bf16.msra.mxu0 0
        %3123 = vmatprep.subr.bf16.mxu0 0
        %3124 = vmatpush1.bf16.msra.mxu0 0
        %3125 = vmatprep.subr.bf16.mxu0 0
        %3126 = vmatpush1.bf16.msra.mxu0 0
        %3127 = vmatprep.subr.bf16.mxu0 0
        %3128 = vmatpush1.bf16.msra.mxu0 0
        %3129 = vmatprep.subr.bf16.mxu0 0
        %3130 = vmatpush1.bf16.msra.mxu0 0
        %3131 = vmatprep.subr.bf16.mxu0 0
        %3132 = vmatpush1.bf16.msra.mxu0 0
        %3133 = vmatprep.mubr.bf16.mxu0 0
        %3134 = vmatmul.mubr.bf16.gmra.mrb[0].mxu0 %v3047
        %v3135 = vpop.f32.mrb[0].mxu0
        %v3136 = vadd.f32 0.0, %v3135
        %v3137 = vpop.f32.mrb[0].mxu0
        %v3138 = vpop.f32.mrb[0].mxu0
        %v3139 = vadd.f32 0.0, %v3138
        %v3140 = vpop.f32.mrb[0].mxu0
        %3141 = vdwg.mxu0
        %v3142 = vadd.f32 %v3030, %v3093
        %v3143 = vadd.f32 %v3031, %v3095
        %v3144 = vadd.f32 %v3032, %v3136
        %v3145 = vadd.f32 %v3033, %v3097
        %v3146 = vadd.f32 %v3034, %v3099
        %v3147 = vadd.f32 %v3035, %v3139
        %3148 = vrot.lane.b32.xlu0 %v2601, 88
        %v3149 = vpop.permute.xlu0 %3148
        %3150 = vrot.lane.b32.xlu0 %v2609, 108
        %v3151 = vpop.permute.xlu0 %3150
        %3152 = vrot.lane.b32.xlu0 %v2610, 108
        %v3153 = vpop.permute.xlu0 %3152
        %3154 = vrot.lane.b32.xlu0 %v2611, 108
        %v3155 = vpop.permute.xlu0 %3154
        %v3156 = vsel %vm1122, %v3151, %v3153
        %v3157 = vsel %vm1122, %v3153, %v3155
        %v3159 = vsel %vm581, %v3149, 0
        %v3162 = vsel %vm585, %v3156, 0
        %v3165 = vsel %vm585, %v3157, 0
        %v3168 = vsel %vm585, %v3155, 0
        %3170 = vmatprep.subr.bf16.mxu0 %v3165
        %3171 = vmatpush1.bf16.msra.mxu0 %v3162
        %3172 = vmatprep.subr.bf16.mxu0 0
        %3173 = vmatpush1.bf16.msra.mxu0 0
        %3174 = vmatprep.subr.bf16.mxu0 0
        %3175 = vmatpush1.bf16.msra.mxu0 0
        %3176 = vmatprep.subr.bf16.mxu0 0
        %3177 = vmatpush1.bf16.msra.mxu0 0
        %3178 = vmatprep.subr.bf16.mxu0 0
        %3179 = vmatpush1.bf16.msra.mxu0 0
        %3180 = vmatprep.subr.bf16.mxu0 0
        %3181 = vmatpush1.bf16.msra.mxu0 0
        %3182 = vmatprep.subr.bf16.mxu0 0
        %3183 = vmatpush1.bf16.msra.mxu0 0
        %3184 = vmatprep.subr.bf16.mxu0 0
        %3185 = vmatpush1.bf16.msra.mxu0 0
        %3186 = vmatprep.subr.bf16.mxu0 0
        %3187 = vmatpush1.bf16.msra.mxu0 0
        %3188 = vmatprep.subr.bf16.mxu0 0
        %3189 = vmatpush1.bf16.msra.mxu0 0
        %3190 = vmatprep.subr.bf16.mxu0 0
        %3191 = vmatpush1.bf16.msra.mxu0 0
        %3192 = vmatprep.subr.bf16.mxu0 0
        %3193 = vmatpush1.bf16.msra.mxu0 0
        %3194 = vmatprep.subr.bf16.mxu0 0
        %3195 = vmatpush1.bf16.msra.mxu0 0
        %3196 = vmatprep.subr.bf16.mxu0 0
        %3197 = vmatpush1.bf16.msra.mxu0 0
        %3198 = vmatprep.subr.bf16.mxu0 0
        %3199 = vmatpush1.bf16.msra.mxu0 0
        %3200 = vmatprep.subr.bf16.mxu0 0
        %3201 = vmatpush1.bf16.msra.mxu0 0
        %3202 = vmatprep.mubr.bf16.mxu0 0
        %3203 = vmatmul.mubr.bf16.gmra.mrb[0].mxu0 %v3159
        %v3204 = vpop.f32.mrb[0].mxu0
        %v3205 = vadd.f32 0.0, %v3204
        %v3206 = vpop.f32.mrb[0].mxu0
        %v3207 = vadd.f32 0.0, %v3206
        %v3208 = vpop.f32.mrb[0].mxu0
        %v3209 = vadd.f32 0.0, %v3208
        %v3210 = vpop.f32.mrb[0].mxu0
        %v3211 = vadd.f32 0.0, %v3210
        %3212 = vdwg.mxu0
        %3213 = vmatprep.subr.bf16.mxu0 0
        %3214 = vmatpush1.bf16.msra.mxu0 %v3168
        %3215 = vmatprep.subr.bf16.mxu0 0
        %3216 = vmatpush1.bf16.msra.mxu0 0
        %3217 = vmatprep.subr.bf16.mxu0 0
        %3218 = vmatpush1.bf16.msra.mxu0 0
        %3219 = vmatprep.subr.bf16.mxu0 0
        %3220 = vmatpush1.bf16.msra.mxu0 0
        %3221 = vmatprep.subr.bf16.mxu0 0
        %3222 = vmatpush1.bf16.msra.mxu0 0
        %3223 = vmatprep.subr.bf16.mxu0 0
        %3224 = vmatpush1.bf16.msra.mxu0 0
        %3225 = vmatprep.subr.bf16.mxu0 0
        %3226 = vmatpush1.bf16.msra.mxu0 0
        %3227 = vmatprep.subr.bf16.mxu0 0
        %3228 = vmatpush1.bf16.msra.mxu0 0
        %3229 = vmatprep.subr.bf16.mxu0 0
        %3230 = vmatpush1.bf16.msra.mxu0 0
        %3231 = vmatprep.subr.bf16.mxu0 0
        %3232 = vmatpush1.bf16.msra.mxu0 0
        %3233 = vmatprep.subr.bf16.mxu0 0
        %3234 = vmatpush1.bf16.msra.mxu0 0
        %3235 = vmatprep.subr.bf16.mxu0 0
        %3236 = vmatpush1.bf16.msra.mxu0 0
        %3237 = vmatprep.subr.bf16.mxu0 0
        %3238 = vmatpush1.bf16.msra.mxu0 0
        %3239 = vmatprep.subr.bf16.mxu0 0
        %3240 = vmatpush1.bf16.msra.mxu0 0
        %3241 = vmatprep.subr.bf16.mxu0 0
        %3242 = vmatpush1.bf16.msra.mxu0 0
        %3243 = vmatprep.subr.bf16.mxu0 0
        %3244 = vmatpush1.bf16.msra.mxu0 0
        %3245 = vmatprep.mubr.bf16.mxu0 0
        %3246 = vmatmul.mubr.bf16.gmra.mrb[0].mxu0 %v3159
        %v3247 = vpop.f32.mrb[0].mxu0
        %v3248 = vadd.f32 0.0, %v3247
        %v3249 = vpop.f32.mrb[0].mxu0
        %v3250 = vpop.f32.mrb[0].mxu0
        %v3251 = vadd.f32 0.0, %v3250
        %v3252 = vpop.f32.mrb[0].mxu0
        %3253 = vdwg.mxu0
        %v3254 = vadd.f32 %v3142, %v3205
        %v3255 = vadd.f32 %v3143, %v3207
        %v3256 = vadd.f32 %v3144, %v3248
        %v3257 = vadd.f32 %v3145, %v3209
        %v3258 = vadd.f32 %v3146, %v3211
        %v3259 = vadd.f32 %v3147, %v3251
        %3260 = vrot.lane.b32.xlu0 %v2601, 80
        %v3261 = vpop.permute.xlu0 %3260
        %3262 = vrot.lane.b32.xlu0 %v2609, 92
        %v3263 = vpop.permute.xlu0 %3262
        %3264 = vrot.lane.b32.xlu0 %v2610, 92
        %v3265 = vpop.permute.xlu0 %3264
        %3266 = vrot.lane.b32.xlu0 %v2611, 92
        %v3267 = vpop.permute.xlu0 %3266
        %v3268 = vsel %vm1235, %v3263, %v3265
        %v3269 = vsel %vm1235, %v3265, %v3267
        %v3271 = vsel %vm581, %v3261, 0
        %v3274 = vsel %vm585, %v3268, 0
        %v3277 = vsel %vm585, %v3269, 0
        %v3280 = vsel %vm585, %v3267, 0
        %3282 = vmatprep.subr.bf16.mxu0 %v3277
        %3283 = vmatpush1.bf16.msra.mxu0 %v3274
        %3284 = vmatprep.subr.bf16.mxu0 0
        %3285 = vmatpush1.bf16.msra.mxu0 0
        %3286 = vmatprep.subr.bf16.mxu0 0
        %3287 = vmatpush1.bf16.msra.mxu0 0
        %3288 = vmatprep.subr.bf16.mxu0 0
        %3289 = vmatpush1.bf16.msra.mxu0 0
        %3290 = vmatprep.subr.bf16.mxu0 0
        %3291 = vmatpush1.bf16.msra.mxu0 0
        %3292 = vmatprep.subr.bf16.mxu0 0
        %3293 = vmatpush1.bf16.msra.mxu0 0
        %3294 = vmatprep.subr.bf16.mxu0 0
        %3295 = vmatpush1.bf16.msra.mxu0 0
        %3296 = vmatprep.subr.bf16.mxu0 0
        %3297 = vmatpush1.bf16.msra.mxu0 0
        %3298 = vmatprep.subr.bf16.mxu0 0
        %3299 = vmatpush1.bf16.msra.mxu0 0
        %3300 = vmatprep.subr.bf16.mxu0 0
        %3301 = vmatpush1.bf16.msra.mxu0 0
        %3302 = vmatprep.subr.bf16.mxu0 0
        %3303 = vmatpush1.bf16.msra.mxu0 0
        %3304 = vmatprep.subr.bf16.mxu0 0
        %3305 = vmatpush1.bf16.msra.mxu0 0
        %3306 = vmatprep.subr.bf16.mxu0 0
        %3307 = vmatpush1.bf16.msra.mxu0 0
        %3308 = vmatprep.subr.bf16.mxu0 0
        %3309 = vmatpush1.bf16.msra.mxu0 0
        %3310 = vmatprep.subr.bf16.mxu0 0
        %3311 = vmatpush1.bf16.msra.mxu0 0
        %3312 = vmatprep.subr.bf16.mxu0 0
        %3313 = vmatpush1.bf16.msra.mxu0 0
        %3314 = vmatprep.mubr.bf16.mxu0 0
        %3315 = vmatmul.mubr.bf16.gmra.mrb[0].mxu0 %v3271
        %v3316 = vpop.f32.mrb[0].mxu0
        %v3317 = vadd.f32 0.0, %v3316
        %v3318 = vpop.f32.mrb[0].mxu0
        %v3319 = vadd.f32 0.0, %v3318
        %v3320 = vpop.f32.mrb[0].mxu0
        %v3321 = vadd.f32 0.0, %v3320
        %v3322 = vpop.f32.mrb[0].mxu0
        %v3323 = vadd.f32 0.0, %v3322
        %3324 = vdwg.mxu0
        %3325 = vmatprep.subr.bf16.mxu0 0
        %3326 = vmatpush1.bf16.msra.mxu0 %v3280
        %3327 = vmatprep.subr.bf16.mxu0 0
        %3328 = vmatpush1.bf16.msra.mxu0 0
        %3329 = vmatprep.subr.bf16.mxu0 0
        %3330 = vmatpush1.bf16.msra.mxu0 0
        %3331 = vmatprep.subr.bf16.mxu0 0
        %3332 = vmatpush1.bf16.msra.mxu0 0
        %3333 = vmatprep.subr.bf16.mxu0 0
        %3334 = vmatpush1.bf16.msra.mxu0 0
        %3335 = vmatprep.subr.bf16.mxu0 0
        %3336 = vmatpush1.bf16.msra.mxu0 0
        %3337 = vmatprep.subr.bf16.mxu0 0
        %3338 = vmatpush1.bf16.msra.mxu0 0
        %3339 = vmatprep.subr.bf16.mxu0 0
        %3340 = vmatpush1.bf16.msra.mxu0 0
        %3341 = vmatprep.subr.bf16.mxu0 0
        %3342 = vmatpush1.bf16.msra.mxu0 0
        %3343 = vmatprep.subr.bf16.mxu0 0
        %3344 = vmatpush1.bf16.msra.mxu0 0
        %3345 = vmatprep.subr.bf16.mxu0 0
        %3346 = vmatpush1.bf16.msra.mxu0 0
        %3347 = vmatprep.subr.bf16.mxu0 0
        %3348 = vmatpush1.bf16.msra.mxu0 0
        %3349 = vmatprep.subr.bf16.mxu0 0
        %3350 = vmatpush1.bf16.msra.mxu0 0
        %3351 = vmatprep.subr.bf16.mxu0 0
        %3352 = vmatpush1.bf16.msra.mxu0 0
        %3353 = vmatprep.subr.bf16.mxu0 0
        %3354 = vmatpush1.bf16.msra.mxu0 0
        %3355 = vmatprep.subr.bf16.mxu0 0
        %3356 = vmatpush1.bf16.msra.mxu0 0
        %3357 = vmatprep.mubr.bf16.mxu0 0
        %3358 = vmatmul.mubr.bf16.gmra.mrb[0].mxu0 %v3271
        %v3359 = vpop.f32.mrb[0].mxu0
        %v3360 = vadd.f32 0.0, %v3359
        %v3361 = vpop.f32.mrb[0].mxu0
        %v3362 = vpop.f32.mrb[0].mxu0
        %v3363 = vadd.f32 0.0, %v3362
        %v3364 = vpop.f32.mrb[0].mxu0
        %3365 = vdwg.mxu0
        %v3366 = vadd.f32 %v3254, %v3317
        %v3367 = vadd.f32 %v3255, %v3319
        %v3368 = vadd.f32 %v3256, %v3360
        %v3369 = vadd.f32 %v3257, %v3321
        %v3370 = vadd.f32 %v3258, %v3323
        %v3371 = vadd.f32 %v3259, %v3363
        %3372 = vrot.lane.b32.xlu0 %v2601, 72
        %v3373 = vpop.permute.xlu0 %3372
        %3374 = vrot.lane.b32.xlu0 %v2609, 91
        %v3375 = vpop.permute.xlu0 %3374
        %3376 = vrot.lane.b32.xlu0 %v2610, 91
        %v3377 = vpop.permute.xlu0 %3376
        %3378 = vrot.lane.b32.xlu0 %v2611, 91
        %v3379 = vpop.permute.xlu0 %3378
        %v3380 = vsel %vm1348, %v3375, %v3377
        %v3381 = vsel %vm1348, %v3377, %v3379
        %v3383 = vsel %vm581, %v3373, 0
        %v3386 = vsel %vm585, %v3380, 0
        %v3389 = vsel %vm585, %v3381, 0
        %v3392 = vsel %vm585, %v3379, 0
        %3394 = vmatprep.subr.bf16.mxu0 %v3389
        %3395 = vmatpush1.bf16.msra.mxu0 %v3386
        %3396 = vmatprep.subr.bf16.mxu0 0
        %3397 = vmatpush1.bf16.msra.mxu0 0
        %3398 = vmatprep.subr.bf16.mxu0 0
        %3399 = vmatpush1.bf16.msra.mxu0 0
        %3400 = vmatprep.subr.bf16.mxu0 0
        %3401 = vmatpush1.bf16.msra.mxu0 0
        %3402 = vmatprep.subr.bf16.mxu0 0
        %3403 = vmatpush1.bf16.msra.mxu0 0
        %3404 = vmatprep.subr.bf16.mxu0 0
        %3405 = vmatpush1.bf16.msra.mxu0 0
        %3406 = vmatprep.subr.bf16.mxu0 0
        %3407 = vmatpush1.bf16.msra.mxu0 0
        %3408 = vmatprep.subr.bf16.mxu0 0
        %3409 = vmatpush1.bf16.msra.mxu0 0
        %3410 = vmatprep.subr.bf16.mxu0 0
        %3411 = vmatpush1.bf16.msra.mxu0 0
        %3412 = vmatprep.subr.bf16.mxu0 0
        %3413 = vmatpush1.bf16.msra.mxu0 0
        %3414 = vmatprep.subr.bf16.mxu0 0
        %3415 = vmatpush1.bf16.msra.mxu0 0
        %3416 = vmatprep.subr.bf16.mxu0 0
        %3417 = vmatpush1.bf16.msra.mxu0 0
        %3418 = vmatprep.subr.bf16.mxu0 0
        %3419 = vmatpush1.bf16.msra.mxu0 0
        %3420 = vmatprep.subr.bf16.mxu0 0
        %3421 = vmatpush1.bf16.msra.mxu0 0
        %3422 = vmatprep.subr.bf16.mxu0 0
        %3423 = vmatpush1.bf16.msra.mxu0 0
        %3424 = vmatprep.subr.bf16.mxu0 0
        %3425 = vmatpush1.bf16.msra.mxu0 0
        %3426 = vmatprep.mubr.bf16.mxu0 0
        %3427 = vmatmul.mubr.bf16.gmra.mrb[0].mxu0 %v3383
        %v3428 = vpop.f32.mrb[0].mxu0
        %v3429 = vadd.f32 0.0, %v3428
        %v3430 = vpop.f32.mrb[0].mxu0
        %v3431 = vadd.f32 0.0, %v3430
        %v3432 = vpop.f32.mrb[0].mxu0
        %v3433 = vadd.f32 0.0, %v3432
        %v3434 = vpop.f32.mrb[0].mxu0
        %v3435 = vadd.f32 0.0, %v3434
        %3436 = vdwg.mxu0
        %3437 = vmatprep.subr.bf16.mxu0 0
        %3438 = vmatpush1.bf16.msra.mxu0 %v3392
        %3439 = vmatprep.subr.bf16.mxu0 0
        %3440 = vmatpush1.bf16.msra.mxu0 0
        %3441 = vmatprep.subr.bf16.mxu0 0
        %3442 = vmatpush1.bf16.msra.mxu0 0
        %3443 = vmatprep.subr.bf16.mxu0 0
        %3444 = vmatpush1.bf16.msra.mxu0 0
        %3445 = vmatprep.subr.bf16.mxu0 0
        %3446 = vmatpush1.bf16.msra.mxu0 0
        %3447 = vmatprep.subr.bf16.mxu0 0
        %3448 = vmatpush1.bf16.msra.mxu0 0
        %3449 = vmatprep.subr.bf16.mxu0 0
        %3450 = vmatpush1.bf16.msra.mxu0 0
        %3451 = vmatprep.subr.bf16.mxu0 0
        %3452 = vmatpush1.bf16.msra.mxu0 0
        %3453 = vmatprep.subr.bf16.mxu0 0
        %3454 = vmatpush1.bf16.msra.mxu0 0
        %3455 = vmatprep.subr.bf16.mxu0 0
        %3456 = vmatpush1.bf16.msra.mxu0 0
        %3457 = vmatprep.subr.bf16.mxu0 0
        %3458 = vmatpush1.bf16.msra.mxu0 0
        %3459 = vmatprep.subr.bf16.mxu0 0
        %3460 = vmatpush1.bf16.msra.mxu0 0
        %3461 = vmatprep.subr.bf16.mxu0 0
        %3462 = vmatpush1.bf16.msra.mxu0 0
        %3463 = vmatprep.subr.bf16.mxu0 0
        %3464 = vmatpush1.bf16.msra.mxu0 0
        %3465 = vmatprep.subr.bf16.mxu0 0
        %3466 = vmatpush1.bf16.msra.mxu0 0
        %3467 = vmatprep.subr.bf16.mxu0 0
        %3468 = vmatpush1.bf16.msra.mxu0 0
        %3469 = vmatprep.mubr.bf16.mxu0 0
        %3470 = vmatmul.mubr.bf16.gmra.mrb[0].mxu0 %v3383
        %v3471 = vpop.f32.mrb[0].mxu0
        %v3472 = vadd.f32 0.0, %v3471
        %v3473 = vpop.f32.mrb[0].mxu0
        %v3474 = vpop.f32.mrb[0].mxu0
        %v3475 = vadd.f32 0.0, %v3474
        %v3476 = vpop.f32.mrb[0].mxu0
        %3477 = vdwg.mxu0
        %v3478 = vadd.f32 %v3366, %v3429
        %v3479 = vadd.f32 %v3367, %v3431
        %v3480 = vadd.f32 %v3368, %v3472
        %v3481 = vadd.f32 %v3369, %v3433
        %v3482 = vadd.f32 %v3370, %v3435
        %v3483 = vadd.f32 %v3371, %v3475
        %3484 = vrot.lane.b32.xlu0 %v2601, 64
        %v3485 = vpop.permute.xlu0 %3484
        %3486 = vrot.lane.b32.xlu0 %v2609, 90
        %v3487 = vpop.permute.xlu0 %3486
        %3488 = vrot.lane.b32.xlu0 %v2610, 90
        %v3489 = vpop.permute.xlu0 %3488
        %3490 = vrot.lane.b32.xlu0 %v2611, 90
        %v3491 = vpop.permute.xlu0 %3490
        %v3492 = vsel %vm1461, %v3487, %v3489
        %v3493 = vsel %vm1461, %v3489, %v3491
        %v3495 = vsel %vm581, %v3485, 0
        %v3498 = vsel %vm585, %v3492, 0
        %v3501 = vsel %vm585, %v3493, 0
        %v3504 = vsel %vm585, %v3491, 0
        %3506 = vmatprep.subr.bf16.mxu0 %v3501
        %3507 = vmatpush1.bf16.msra.mxu0 %v3498
        %3508 = vmatprep.subr.bf16.mxu0 0
        %3509 = vmatpush1.bf16.msra.mxu0 0
        %3510 = vmatprep.subr.bf16.mxu0 0
        %3511 = vmatpush1.bf16.msra.mxu0 0
        %3512 = vmatprep.subr.bf16.mxu0 0
        %3513 = vmatpush1.bf16.msra.mxu0 0
        %3514 = vmatprep.subr.bf16.mxu0 0
        %3515 = vmatpush1.bf16.msra.mxu0 0
        %3516 = vmatprep.subr.bf16.mxu0 0
        %3517 = vmatpush1.bf16.msra.mxu0 0
        %3518 = vmatprep.subr.bf16.mxu0 0
        %3519 = vmatpush1.bf16.msra.mxu0 0
        %3520 = vmatprep.subr.bf16.mxu0 0
        %3521 = vmatpush1.bf16.msra.mxu0 0
        %3522 = vmatprep.subr.bf16.mxu0 0
        %3523 = vmatpush1.bf16.msra.mxu0 0
        %3524 = vmatprep.subr.bf16.mxu0 0
        %3525 = vmatpush1.bf16.msra.mxu0 0
        %3526 = vmatprep.subr.bf16.mxu0 0
        %3527 = vmatpush1.bf16.msra.mxu0 0
        %3528 = vmatprep.subr.bf16.mxu0 0
        %3529 = vmatpush1.bf16.msra.mxu0 0
        %3530 = vmatprep.subr.bf16.mxu0 0
        %3531 = vmatpush1.bf16.msra.mxu0 0
        %3532 = vmatprep.subr.bf16.mxu0 0
        %3533 = vmatpush1.bf16.msra.mxu0 0
        %3534 = vmatprep.subr.bf16.mxu0 0
        %3535 = vmatpush1.bf16.msra.mxu0 0
        %3536 = vmatprep.subr.bf16.mxu0 0
        %3537 = vmatpush1.bf16.msra.mxu0 0
        %3538 = vmatprep.mubr.bf16.mxu0 0
        %3539 = vmatmul.mubr.bf16.gmra.mrb[0].mxu0 %v3495
        %v3540 = vpop.f32.mrb[0].mxu0
        %v3541 = vadd.f32 0.0, %v3540
        %v3542 = vpop.f32.mrb[0].mxu0
        %v3543 = vadd.f32 0.0, %v3542
        %v3544 = vpop.f32.mrb[0].mxu0
        %v3545 = vadd.f32 0.0, %v3544
        %v3546 = vpop.f32.mrb[0].mxu0
        %v3547 = vadd.f32 0.0, %v3546
        %3548 = vdwg.mxu0
        %3549 = vmatprep.subr.bf16.mxu0 0
        %3550 = vmatpush1.bf16.msra.mxu0 %v3504
        %3551 = vmatprep.subr.bf16.mxu0 0
        %3552 = vmatpush1.bf16.msra.mxu0 0
        %3553 = vmatprep.subr.bf16.mxu0 0
        %3554 = vmatpush1.bf16.msra.mxu0 0
        %3555 = vmatprep.subr.bf16.mxu0 0
        %3556 = vmatpush1.bf16.msra.mxu0 0
        %3557 = vmatprep.subr.bf16.mxu0 0
        %3558 = vmatpush1.bf16.msra.mxu0 0
        %3559 = vmatprep.subr.bf16.mxu0 0
        %3560 = vmatpush1.bf16.msra.mxu0 0
        %3561 = vmatprep.subr.bf16.mxu0 0
        %3562 = vmatpush1.bf16.msra.mxu0 0
        %3563 = vmatprep.subr.bf16.mxu0 0
        %3564 = vmatpush1.bf16.msra.mxu0 0
        %3565 = vmatprep.subr.bf16.mxu0 0
        %3566 = vmatpush1.bf16.msra.mxu0 0
        %3567 = vmatprep.subr.bf16.mxu0 0
        %3568 = vmatpush1.bf16.msra.mxu0 0
        %3569 = vmatprep.subr.bf16.mxu0 0
        %3570 = vmatpush1.bf16.msra.mxu0 0
        %3571 = vmatprep.subr.bf16.mxu0 0
        %3572 = vmatpush1.bf16.msra.mxu0 0
        %3573 = vmatprep.subr.bf16.mxu0 0
        %3574 = vmatpush1.bf16.msra.mxu0 0
        %3575 = vmatprep.subr.bf16.mxu0 0
        %3576 = vmatpush1.bf16.msra.mxu0 0
        %3577 = vmatprep.subr.bf16.mxu0 0
        %3578 = vmatpush1.bf16.msra.mxu0 0
        %3579 = vmatprep.subr.bf16.mxu0 0
        %3580 = vmatpush1.bf16.msra.mxu0 0
        %3581 = vmatprep.mubr.bf16.mxu0 0
        %3582 = vmatmul.mubr.bf16.gmra.mrb[0].mxu0 %v3495
        %v3583 = vpop.f32.mrb[0].mxu0
        %v3584 = vadd.f32 0.0, %v3583
        %v3585 = vpop.f32.mrb[0].mxu0
        %v3586 = vpop.f32.mrb[0].mxu0
        %v3587 = vadd.f32 0.0, %v3586
        %v3588 = vpop.f32.mrb[0].mxu0
        %3589 = vdwg.mxu0
        %v3590 = vadd.f32 %v3478, %v3541
        %v3591 = vadd.f32 %v3479, %v3543
        %v3592 = vadd.f32 %v3480, %v3584
        %v3593 = vadd.f32 %v3481, %v3545
        %v3594 = vadd.f32 %v3482, %v3547
        %v3595 = vadd.f32 %v3483, %v3587
        %s3596 = scalar_lea.vmem %s333, 16
        %v3597 = vld [vmem:[%s3596] sm:$0xff]
        %v3598 = vld [vmem:[%s3596 + $0x8] sm:$0xff]
        %3600 = vset.pattern.permute.xlu0 0
        %3601 = vperm.xlu0 %3600, %v3597
        %v3602 = vpop.permute.xlu0 %3601
        %3605 = vset.pattern.permute.xlu0 0
        %3606 = vperm.xlu0 %3605, %v3598
        %v3607 = vpop.permute.xlu0 %3606
        %v3609 = vadd.f32 %v3590, %v3602
        %v3610 = vadd.f32 %v3591, %v3602
        %v3611 = vadd.f32 %v3592, %v3602
        %v3612 = vadd.f32 %v3593, %v3607
        %v3613 = vadd.f32 %v3594, %v3607
        %v3614 = vadd.f32 %v3595, %v3607
        %v3615 = vmul.f32 %v3609, %v1591
        %v3616 = vmul.f32 %v3610, %v1592
        %v3617 = vmul.f32 %v3611, %v1589
        %v3618 = vmul.f32 %v3612, %v1591
        %v3619 = vmul.f32 %v3613, %v1592
        %v3620 = vmul.f32 %v3614, %v1589
        %v3621 = vadd.f32 %v3615, %v3616
        %v3622 = vsel %vm1603, %v3617, 0.0
        %v3623 = vadd.f32 %v3621, %v3622
        %3624 = vadd.xlane.f32.xlu0 %v3623
        %v3625 = vpop.xlane.xlu0 %3624
        %v3626 = vadd.f32 %v3618, %v3619
        %v3627 = vsel %vm1603, %v3620, 0.0
        %v3628 = vadd.f32 %v3626, %v3627
        %3629 = vadd.xlane.f32.xlu0 %v3628
        %v3630 = vpop.xlane.xlu0 %3629
        %v3631 = vmul.f32 %v3615, %v3615
        %v3632 = vmul.f32 %v3616, %v3616
        %v3633 = vmul.f32 %v3617, %v3617
        %v3634 = vmul.f32 %v3618, %v3618
        %v3635 = vmul.f32 %v3619, %v3619
        %v3636 = vmul.f32 %v3620, %v3620
        %v3637 = vadd.f32 %v3631, %v3632
        %v3638 = vsel %vm1603, %v3633, 0.0
        %v3639 = vadd.f32 %v3637, %v3638
        %3640 = vadd.xlane.f32.xlu0 %v3639
        %v3641 = vpop.xlane.xlu0 %3640
        %v3642 = vadd.f32 %v3634, %v3635
        %v3643 = vsel %vm1603, %v3636, 0.0
        %v3644 = vadd.f32 %v3642, %v3643
        %3645 = vadd.xlane.f32.xlu0 %v3644
        %v3646 = vpop.xlane.xlu0 %3645
        %v3647 = vsel %vm358, %v3625, %v3641
        %v3648 = vsel %vm358, %v3630, %v3646
        %v3649 = vsel %vm1638, %v3647, 0.0
        %v3650 = vsel %vm1639, %v3648, 0.0
        %v3651 = vsel %vm368, %v3649, 0.0
        %v3652 = vsel %vm368, %v3650, 0.0
        %v3653 = vadd.f32 %v3651, %v3652
        %v3654 = vrot.slane %v3653, 4
        %v3655 = vadd.f32 %v3653, %v3654
        %v3656 = vrot.slane %v3655, 2
        %v3657 = vadd.f32 %v3655, %v3656
        %v3658 = vrot.slane %v3657, 1
        %v3659 = vadd.f32 %v3657, %v3658
        %s3660 = vtos %v3659
        %s3661 = smul.f32 %s3660, 0.0009765625
        %3662 = vrot.lane.b32.xlu0 %v3659, 127
        %v3663 = vpop.permute.xlu0 %3662
        %s3664 = vtos %v3663
        %s3665 = smul.f32 %s3664, 0.0009765625
        %s3666 = smul.f32 %s3661, %s3661
        %s3667 = ssub.f32 %s3665, %s3666
        %s3668 = sadd.f32 %s3667, 1e-05
        %v3669 = vstv %s3668
        %v3670 = vrsqrt.pop %v3669
        %s3671 = vtos %v3670
        %v3672 = vstv %s3661
        %v3673 = vsel %vm1634, %v3672, 0.0
        %v3674 = vsel %vm1635, %v3672, 0.0
        %v3675 = vstv %s3671
        %v3676 = vsel %vm1634, %v3675, 0.0
        %v3677 = vsel %vm1635, %v3675, 0.0
        %v3678 = vsel %vm1675, %v3647, 0.0
        %v3679 = vsel %vm1676, %v3648, 0.0
        %v3680 = vsel %vm368, %v3678, 0.0
        %v3681 = vsel %vm368, %v3679, 0.0
        %v3682 = vadd.f32 %v3680, %v3681
        %v3683 = vrot.slane %v3682, 4
        %v3684 = vadd.f32 %v3682, %v3683
        %v3685 = vrot.slane %v3684, 2
        %v3686 = vadd.f32 %v3684, %v3685
        %v3687 = vrot.slane %v3686, 1
        %v3688 = vadd.f32 %v3686, %v3687
        %s3689 = vtos %v3688
        %s3690 = smul.f32 %s3689, 0.0009765625
        %3691 = vrot.lane.b32.xlu0 %v3688, 127
        %v3692 = vpop.permute.xlu0 %3691
        %s3693 = vtos %v3692
        %s3694 = smul.f32 %s3693, 0.0009765625
        %s3695 = smul.f32 %s3690, %s3690
        %s3696 = ssub.f32 %s3694, %s3695
        %s3697 = sadd.f32 %s3696, 1e-05
        %v3698 = vstv %s3697
        %v3699 = vrsqrt.pop %v3698
        %s3700 = vtos %v3699
        %v3701 = vstv %s3690
        %v3702 = vsel %vm1671, %v3701, %v3673
        %v3703 = vsel %vm1672, %v3701, %v3674
        %v3704 = vstv %s3700
        %v3705 = vsel %vm1671, %v3704, %v3676
        %v3706 = vsel %vm1672, %v3704, %v3677
        %v3707 = vsel %vm1714, %v3647, 0.0
        %v3708 = vsel %vm1715, %v3648, 0.0
        %v3709 = vsel %vm368, %v3707, 0.0
        %v3710 = vsel %vm368, %v3708, 0.0
        %v3711 = vadd.f32 %v3709, %v3710
        %v3712 = vrot.slane %v3711, 4
        %v3713 = vadd.f32 %v3711, %v3712
        %v3714 = vrot.slane %v3713, 2
        %v3715 = vadd.f32 %v3713, %v3714
        %v3716 = vrot.slane %v3715, 1
        %v3717 = vadd.f32 %v3715, %v3716
        %s3718 = vtos %v3717
        %s3719 = smul.f32 %s3718, 0.0009765625
        %3720 = vrot.lane.b32.xlu0 %v3717, 127
        %v3721 = vpop.permute.xlu0 %3720
        %s3722 = vtos %v3721
        %s3723 = smul.f32 %s3722, 0.0009765625
        %s3724 = smul.f32 %s3719, %s3719
        %s3725 = ssub.f32 %s3723, %s3724
        %s3726 = sadd.f32 %s3725, 1e-05
        %v3727 = vstv %s3726
        %v3728 = vrsqrt.pop %v3727
        %s3729 = vtos %v3728
        %v3730 = vstv %s3719
        %v3731 = vsel %vm1710, %v3730, %v3702
        %v3732 = vsel %vm1711, %v3730, %v3703
        %v3733 = vstv %s3729
        %v3734 = vsel %vm1710, %v3733, %v3705
        %v3735 = vsel %vm1711, %v3733, %v3706
        %v3736 = vsel %vm1753, %v3647, 0.0
        %v3737 = vsel %vm1754, %v3648, 0.0
        %v3738 = vsel %vm368, %v3736, 0.0
        %v3739 = vsel %vm368, %v3737, 0.0
        %v3740 = vadd.f32 %v3738, %v3739
        %v3741 = vrot.slane %v3740, 4
        %v3742 = vadd.f32 %v3740, %v3741
        %v3743 = vrot.slane %v3742, 2
        %v3744 = vadd.f32 %v3742, %v3743
        %v3745 = vrot.slane %v3744, 1
        %v3746 = vadd.f32 %v3744, %v3745
        %s3747 = vtos %v3746
        %s3748 = smul.f32 %s3747, 0.0009765625
        %3749 = vrot.lane.b32.xlu0 %v3746, 127
        %v3750 = vpop.permute.xlu0 %3749
        %s3751 = vtos %v3750
        %s3752 = smul.f32 %s3751, 0.0009765625
        %s3753 = smul.f32 %s3748, %s3748
        %s3754 = ssub.f32 %s3752, %s3753
        %s3755 = sadd.f32 %s3754, 1e-05
        %v3756 = vstv %s3755
        %v3757 = vrsqrt.pop %v3756
        %s3758 = vtos %v3757
        %v3759 = vstv %s3748
        %v3760 = vsel %vm1749, %v3759, %v3731
        %v3761 = vsel %vm1750, %v3759, %v3732
        %v3762 = vstv %s3758
        %v3763 = vsel %vm1749, %v3762, %v3734
        %v3764 = vsel %vm1750, %v3762, %v3735
        %v3765 = vsub.f32 %v3615, %v3760
        %v3766 = vsub.f32 %v3616, %v3760
        %v3767 = vsub.f32 %v3617, %v3760
        %v3768 = vsub.f32 %v3618, %v3761
        %v3769 = vsub.f32 %v3619, %v3761
        %v3770 = vsub.f32 %v3620, %v3761
        %v3771 = vmul.f32 %v3765, %v3763
        %v3772 = vmul.f32 %v3766, %v3763
        %v3773 = vmul.f32 %v3767, %v3763
        %v3774 = vmul.f32 %v3768, %v3764
        %v3775 = vmul.f32 %v3769, %v3764
        %v3776 = vmul.f32 %v3770, %v3764
        %v3777 = vmul.f32 %v3771, %v1799
        %v3778 = vmul.f32 %v3772, %v1799
        %v3779 = vmul.f32 %v3773, %v1799
        %v3780 = vmul.f32 %v3774, %v1804
        %v3781 = vmul.f32 %v3775, %v1804
        %v3782 = vmul.f32 %v3776, %v1804
        %v3783 = vadd.f32 %v3777, %v1814
        %v3784 = vadd.f32 %v3778, %v1814
        %v3785 = vadd.f32 %v3779, %v1814
        %v3786 = vadd.f32 %v3780, %v1818
        %v3787 = vadd.f32 %v3781, %v1818
        %v3788 = vadd.f32 %v3782, %v1818
        %v3789 = vsub.f32 0.0, %v3783
        %v3790 = vsub.f32 0.0, %v3784
        %v3791 = vsub.f32 0.0, %v3785
        %v3792 = vsub.f32 0.0, %v3786
        %v3793 = vsub.f32 0.0, %v3787
        %v3794 = vsub.f32 0.0, %v3788
        %v3795 = vmul.f32 %v3789, 1.442695
        %v3796 = vpow.pop %v3795
        %v3797 = vmul.f32 %v3790, 1.442695
        %v3798 = vpow.pop %v3797
        %v3799 = vmul.f32 %v3791, 1.442695
        %v3800 = vpow.pop %v3799
        %v3801 = vmul.f32 %v3792, 1.442695
        %v3802 = vpow.pop %v3801
        %v3803 = vmul.f32 %v3793, 1.442695
        %v3804 = vpow.pop %v3803
        %v3805 = vmul.f32 %v3794, 1.442695
        %v3806 = vpow.pop %v3805
        %v3807 = vadd.f32 %v3796, 1.0
        %v3808 = vadd.f32 %v3798, 1.0
        %v3809 = vadd.f32 %v3800, 1.0
        %v3810 = vadd.f32 %v3802, 1.0
        %v3811 = vadd.f32 %v3804, 1.0
        %v3812 = vadd.f32 %v3806, 1.0
        %v3813 = vrcp.pop %v3807
        %v3814 = vrcp.pop %v3808
        %v3815 = vrcp.pop %v3809
        %v3816 = vrcp.pop %v3810
        %v3817 = vrcp.pop %v3811
        %v3818 = vrcp.pop %v3812
        %v3819 = vmul.f32 %v3783, %v3813
        %v3820 = vmul.f32 %v3784, %v3814
        %v3821 = vmul.f32 %v3785, %v3815
        %v3822 = vmul.f32 %v3786, %v3816
        %v3823 = vmul.f32 %v3787, %v3817
        %v3824 = vmul.f32 %v3788, %v3818
        %v3825 = vmul.f32 %v3819, %v1591
        %v3826 = vmul.f32 %v3820, %v1592
        %v3827 = vmul.f32 %v3821, %v1589
        %v3828 = vmul.f32 %v3822, %v1591
        %v3829 = vmul.f32 %v3823, %v1592
        %v3830 = vmul.f32 %v3824, %v1589
        %s3831 = scalar_lea.vmem [#allocation3], 24
        %3832 = vst.msk [vmem:[%s3831] sm:$0xff] %vm1868, 0
        %3833 = vst.msk [vmem:[%s3831 + $0x10] sm:$0xff] %vm1870, 0
        %v3834 = vpack.c.bf16 %v3828, %v3825
        %v3835 = vpack.c.bf16 %v3829, %v3826
        %v3836 = vpack.c.bf16 %v3830, %v3827
        %3840 = vrot.lane.b32.xlu0 %v3834, 19
        %v3841 = vpop.permute.xlu0 %3840
        %3842 = vrot.lane.b32.xlu0 %v3835, 19
        %v3843 = vpop.permute.xlu0 %3842
        %3844 = vrot.lane.b32.xlu0 %v3836, 19
        %v3845 = vpop.permute.xlu0 %3844
        %v3846 = vsel %vm1884, %v3841, %v3843
        %v3847 = vsel %vm1884, %v3843, %v3845
        %3851 = vst.msk [vmem:[%s3831] sm:$0xff] %vm1890, %v3841
        %3852 = vst [vmem:[%s3831 + $0x8] sm:$0xff] %v3846
        %3853 = vst.msk [vmem:[%s3831 + $0x10] sm:$0xff] %vm1893, %v3847
        %v3854 = vld [vmem:[%s3831] sm:$0xff]
        %v3855 = vld [vmem:[%s3831 + $0x8] sm:$0xff]
        %v3856 = vld [vmem:[%s3831 + $0x10] sm:$0xff]
        %3860 = vrot.lane.b32.xlu0 %v3854, 127
        %v3861 = vpop.permute.xlu0 %3860
        %3862 = vrot.lane.b32.xlu0 %v3855, 127
        %v3863 = vpop.permute.xlu0 %3862
        %3864 = vrot.lane.b32.xlu0 %v3856, 127
        %v3865 = vpop.permute.xlu0 %3864
        %v3866 = vsel %vm578, %v3861, %v3863
        %v3867 = vsel %vm578, %v3863, %v3865
        %3871 = vrot.lane.b32.xlu0 %v3854, 126
        %v3872 = vpop.permute.xlu0 %3871
        %3873 = vrot.lane.b32.xlu0 %v3855, 126
        %v3874 = vpop.permute.xlu0 %3873
        %3875 = vrot.lane.b32.xlu0 %v3856, 126
        %v3876 = vpop.permute.xlu0 %3875
        %v3877 = vsel %vm783, %v3872, %v3874
        %v3878 = vsel %vm783, %v3874, %v3876
        %v3882 = vld [vmem:[%s6] sm:$0xf]
        %v3883 = vld [vmem:[%s6 + $0x8] sm:$0xf]
        %v3886 = vunpack.c.l.b16 %v3882
        %v3887 = vunpack.c.l.b16 %v3883
        %v3888 = vpack.c.b16 %v3887, %v3886
        %3889 = vrot.lane.b32.xlu0 %v3888, 80
        %v3890 = vpop.permute.xlu0 %3889
        %3891 = vrot.lane.b32.xlu0 %v3854, 110
        %v3892 = vpop.permute.xlu0 %3891
        %3893 = vrot.lane.b32.xlu0 %v3855, 110
        %v3894 = vpop.permute.xlu0 %3893
        %3895 = vrot.lane.b32.xlu0 %v3856, 110
        %v3896 = vpop.permute.xlu0 %3895
        %3897 = vrot.lane.b32.xlu0 %v3866, 110
        %v3898 = vpop.permute.xlu0 %3897
        %3899 = vrot.lane.b32.xlu0 %v3867, 110
        %v3900 = vpop.permute.xlu0 %3899
        %3901 = vrot.lane.b32.xlu0 %v3865, 110
        %v3902 = vpop.permute.xlu0 %3901
        %3903 = vrot.lane.b32.xlu0 %v3877, 110
        %v3904 = vpop.permute.xlu0 %3903
        %3905 = vrot.lane.b32.xlu0 %v3878, 110
        %v3906 = vpop.permute.xlu0 %3905
        %3907 = vrot.lane.b32.xlu0 %v3876, 110
        %v3908 = vpop.permute.xlu0 %3907
        %v3909 = vsel %vm896, %v3892, %v3894
        %v3910 = vsel %vm896, %v3894, %v3896
        %v3911 = vsel %vm896, %v3898, %v3900
        %v3912 = vsel %vm896, %v3900, %v3902
        %v3913 = vsel %vm896, %v3904, %v3906
        %v3914 = vsel %vm896, %v3906, %v3908
        %v3925 = vsel %vm1965, %v3890, 0
        %3927 = vmatprep.subr.bf16.mxu0 %v3910
        %3928 = vmatpush1.bf16.msra.mxu0 %v3909
        %3929 = vmatprep.subr.bf16.mxu0 %v3912
        %3930 = vmatpush1.bf16.msra.mxu0 %v3911
        %3931 = vmatprep.subr.bf16.mxu0 %v3914
        %3932 = vmatpush1.bf16.msra.mxu0 %v3913
        %3933 = vmatprep.subr.bf16.mxu0 0
        %3934 = vmatpush1.bf16.msra.mxu0 0
        %3935 = vmatprep.subr.bf16.mxu0 0
        %3936 = vmatpush1.bf16.msra.mxu0 0
        %3937 = vmatprep.subr.bf16.mxu0 0
        %3938 = vmatpush1.bf16.msra.mxu0 0
        %3939 = vmatprep.subr.bf16.mxu0 0
        %3940 = vmatpush1.bf16.msra.mxu0 0
        %3941 = vmatprep.subr.bf16.mxu0 0
        %3942 = vmatpush1.bf16.msra.mxu0 0
        %3943 = vmatprep.subr.bf16.mxu0 0
        %3944 = vmatpush1.bf16.msra.mxu0 0
        %3945 = vmatprep.subr.bf16.mxu0 0
        %3946 = vmatpush1.bf16.msra.mxu0 0
        %3947 = vmatprep.subr.bf16.mxu0 0
        %3948 = vmatpush1.bf16.msra.mxu0 0
        %3949 = vmatprep.subr.bf16.mxu0 0
        %3950 = vmatpush1.bf16.msra.mxu0 0
        %3951 = vmatprep.subr.bf16.mxu0 0
        %3952 = vmatpush1.bf16.msra.mxu0 0
        %3953 = vmatprep.subr.bf16.mxu0 0
        %3954 = vmatpush1.bf16.msra.mxu0 0
        %3955 = vmatprep.subr.bf16.mxu0 0
        %3956 = vmatpush1.bf16.msra.mxu0 0
        %3957 = vmatprep.subr.bf16.mxu0 0
        %3958 = vmatpush1.bf16.msra.mxu0 0
        %3959 = vmatprep.mubr.bf16.mxu0 0
        %3960 = vmatmul.mubr.bf16.gmra.mrb[0].mxu0 %v3925
        %v3961 = vpop.f32.mrb[0].mxu0
        %v3962 = vadd.f32 0.0, %v3961
        %v3963 = vpop.f32.mrb[0].mxu0
        %v3964 = vadd.f32 0.0, %v3963
        %v3965 = vpop.f32.mrb[0].mxu0
        %v3966 = vadd.f32 0.0, %v3965
        %v3967 = vpop.f32.mrb[0].mxu0
        %v3968 = vadd.f32 0.0, %v3967
        %3969 = vdwg.mxu0
        %3970 = vmatprep.subr.bf16.mxu0 0
        %3971 = vmatpush1.bf16.msra.mxu0 %v3896
        %3972 = vmatprep.subr.bf16.mxu0 0
        %3973 = vmatpush1.bf16.msra.mxu0 %v3902
        %3974 = vmatprep.subr.bf16.mxu0 0
        %3975 = vmatpush1.bf16.msra.mxu0 %v3908
        %3976 = vmatprep.subr.bf16.mxu0 0
        %3977 = vmatpush1.bf16.msra.mxu0 0
        %3978 = vmatprep.subr.bf16.mxu0 0
        %3979 = vmatpush1.bf16.msra.mxu0 0
        %3980 = vmatprep.subr.bf16.mxu0 0
        %3981 = vmatpush1.bf16.msra.mxu0 0
        %3982 = vmatprep.subr.bf16.mxu0 0
        %3983 = vmatpush1.bf16.msra.mxu0 0
        %3984 = vmatprep.subr.bf16.mxu0 0
        %3985 = vmatpush1.bf16.msra.mxu0 0
        %3986 = vmatprep.subr.bf16.mxu0 0
        %3987 = vmatpush1.bf16.msra.mxu0 0
        %3988 = vmatprep.subr.bf16.mxu0 0
        %3989 = vmatpush1.bf16.msra.mxu0 0
        %3990 = vmatprep.subr.bf16.mxu0 0
        %3991 = vmatpush1.bf16.msra.mxu0 0
        %3992 = vmatprep.subr.bf16.mxu0 0
        %3993 = vmatpush1.bf16.msra.mxu0 0
        %3994 = vmatprep.subr.bf16.mxu0 0
        %3995 = vmatpush1.bf16.msra.mxu0 0
        %3996 = vmatprep.subr.bf16.mxu0 0
        %3997 = vmatpush1.bf16.msra.mxu0 0
        %3998 = vmatprep.subr.bf16.mxu0 0
        %3999 = vmatpush1.bf16.msra.mxu0 0
        %4000 = vmatprep.subr.bf16.mxu0 0
        %4001 = vmatpush1.bf16.msra.mxu0 0
        %4002 = vmatprep.mubr.bf16.mxu0 0
        %4003 = vmatmul.mubr.bf16.gmra.mrb[0].mxu0 %v3925
        %v4004 = vpop.f32.mrb[0].mxu0
        %v4005 = vadd.f32 0.0, %v4004
        %v4006 = vpop.f32.mrb[0].mxu0
        %v4007 = vpop.f32.mrb[0].mxu0
        %v4008 = vadd.f32 0.0, %v4007
        %v4009 = vpop.f32.mrb[0].mxu0
        %4010 = vdwg.mxu0
        %v4012 = vsel %vm1965, %v3888, 0
        %4014 = vmatprep.subr.bf16.mxu0 %v3855
        %4015 = vmatpush1.bf16.msra.mxu0 %v3854
        %4016 = vmatprep.subr.bf16.mxu0 %v3867
        %4017 = vmatpush1.bf16.msra.mxu0 %v3866
        %4018 = vmatprep.subr.bf16.mxu0 %v3878
        %4019 = vmatpush1.bf16.msra.mxu0 %v3877
        %4020 = vmatprep.subr.bf16.mxu0 0
        %4021 = vmatpush1.bf16.msra.mxu0 0
        %4022 = vmatprep.subr.bf16.mxu0 0
        %4023 = vmatpush1.bf16.msra.mxu0 0
        %4024 = vmatprep.subr.bf16.mxu0 0
        %4025 = vmatpush1.bf16.msra.mxu0 0
        %4026 = vmatprep.subr.bf16.mxu0 0
        %4027 = vmatpush1.bf16.msra.mxu0 0
        %4028 = vmatprep.subr.bf16.mxu0 0
        %4029 = vmatpush1.bf16.msra.mxu0 0
        %4030 = vmatprep.subr.bf16.mxu0 0
        %4031 = vmatpush1.bf16.msra.mxu0 0
        %4032 = vmatprep.subr.bf16.mxu0 0
        %4033 = vmatpush1.bf16.msra.mxu0 0
        %4034 = vmatprep.subr.bf16.mxu0 0
        %4035 = vmatpush1.bf16.msra.mxu0 0
        %4036 = vmatprep.subr.bf16.mxu0 0
        %4037 = vmatpush1.bf16.msra.mxu0 0
        %4038 = vmatprep.subr.bf16.mxu0 0
        %4039 = vmatpush1.bf16.msra.mxu0 0
        %4040 = vmatprep.subr.bf16.mxu0 0
        %4041 = vmatpush1.bf16.msra.mxu0 0
        %4042 = vmatprep.subr.bf16.mxu0 0
        %4043 = vmatpush1.bf16.msra.mxu0 0
        %4044 = vmatprep.subr.bf16.mxu0 0
        %4045 = vmatpush1.bf16.msra.mxu0 0
        %4046 = vmatprep.mubr.bf16.mxu0 0
        %4047 = vmatmul.mubr.bf16.gmra.mrb[0].mxu0 %v4012
        %v4048 = vpop.f32.mrb[0].mxu0
        %v4049 = vadd.f32 %v3962, %v4048
        %v4050 = vpop.f32.mrb[0].mxu0
        %v4051 = vadd.f32 %v3964, %v4050
        %v4052 = vpop.f32.mrb[0].mxu0
        %v4053 = vadd.f32 %v3966, %v4052
        %v4054 = vpop.f32.mrb[0].mxu0
        %v4055 = vadd.f32 %v3968, %v4054
        %4056 = vdwg.mxu0
        %4057 = vmatprep.subr.bf16.mxu0 0
        %4058 = vmatpush1.bf16.msra.mxu0 %v3856
        %4059 = vmatprep.subr.bf16.mxu0 0
        %4060 = vmatpush1.bf16.msra.mxu0 %v3865
        %4061 = vmatprep.subr.bf16.mxu0 0
        %4062 = vmatpush1.bf16.msra.mxu0 %v3876
        %4063 = vmatprep.subr.bf16.mxu0 0
        %4064 = vmatpush1.bf16.msra.mxu0 0
        %4065 = vmatprep.subr.bf16.mxu0 0
        %4066 = vmatpush1.bf16.msra.mxu0 0
        %4067 = vmatprep.subr.bf16.mxu0 0
        %4068 = vmatpush1.bf16.msra.mxu0 0
        %4069 = vmatprep.subr.bf16.mxu0 0
        %4070 = vmatpush1.bf16.msra.mxu0 0
        %4071 = vmatprep.subr.bf16.mxu0 0
        %4072 = vmatpush1.bf16.msra.mxu0 0
        %4073 = vmatprep.subr.bf16.mxu0 0
        %4074 = vmatpush1.bf16.msra.mxu0 0
        %4075 = vmatprep.subr.bf16.mxu0 0
        %4076 = vmatpush1.bf16.msra.mxu0 0
        %4077 = vmatprep.subr.bf16.mxu0 0
        %4078 = vmatpush1.bf16.msra.mxu0 0
        %4079 = vmatprep.subr.bf16.mxu0 0
        %4080 = vmatpush1.bf16.msra.mxu0 0
        %4081 = vmatprep.subr.bf16.mxu0 0
        %4082 = vmatpush1.bf16.msra.mxu0 0
        %4083 = vmatprep.subr.bf16.mxu0 0
        %4084 = vmatpush1.bf16.msra.mxu0 0
        %4085 = vmatprep.subr.bf16.mxu0 0
        %4086 = vmatpush1.bf16.msra.mxu0 0
        %4087 = vmatprep.subr.bf16.mxu0 0
        %4088 = vmatpush1.bf16.msra.mxu0 0
        %4089 = vmatprep.mubr.bf16.mxu0 0
        %4090 = vmatmul.mubr.bf16.gmra.mrb[0].mxu0 %v4012
        %v4091 = vpop.f32.mrb[0].mxu0
        %v4092 = vadd.f32 %v4005, %v4091
        %v4093 = vpop.f32.mrb[0].mxu0
        %v4094 = vpop.f32.mrb[0].mxu0
        %v4095 = vadd.f32 %v4008, %v4094
        %v4096 = vpop.f32.mrb[0].mxu0
        %4097 = vdwg.mxu0
        %v4098 = vld [vmem:[%s6] sm:$0xff]
        %v4099 = vld [vmem:[%s6 + $0x8] sm:$0xff]
        %v4102 = vunpack.c.l.b16 %v4098
        %v4103 = vunpack.c.h.b16 %v4098
        %v4104 = vunpack.c.l.b16 %v4099
        %v4105 = vunpack.c.h.b16 %v4099
        %v4106 = vpack.c.b16 %v4104, %v4102
        %v4107 = vpack.c.b16 %v4105, %v4103
        %4108 = vrot.lane.b32.xlu0 %v4106, 32
        %v4109 = vpop.permute.xlu0 %4108
        %4110 = vrot.lane.b32.xlu0 %v4107, 32
        %v4111 = vpop.permute.xlu0 %4110
        %v4112 = vsel %vm2154, %v4109, %v4111
        %4113 = vrot.lane.b32.xlu0 %v3854, 92
        %v4114 = vpop.permute.xlu0 %4113
        %4115 = vrot.lane.b32.xlu0 %v3855, 92
        %v4116 = vpop.permute.xlu0 %4115
        %4117 = vrot.lane.b32.xlu0 %v3856, 92
        %v4118 = vpop.permute.xlu0 %4117
        %4119 = vrot.lane.b32.xlu0 %v3866, 92
        %v4120 = vpop.permute.xlu0 %4119
        %4121 = vrot.lane.b32.xlu0 %v3867, 92
        %v4122 = vpop.permute.xlu0 %4121
        %4123 = vrot.lane.b32.xlu0 %v3865, 92
        %v4124 = vpop.permute.xlu0 %4123
        %4125 = vrot.lane.b32.xlu0 %v3877, 92
        %v4126 = vpop.permute.xlu0 %4125
        %4127 = vrot.lane.b32.xlu0 %v3878, 92
        %v4128 = vpop.permute.xlu0 %4127
        %4129 = vrot.lane.b32.xlu0 %v3876, 92
        %v4130 = vpop.permute.xlu0 %4129
        %v4131 = vsel %vm1235, %v4114, %v4116
        %v4132 = vsel %vm1235, %v4116, %v4118
        %v4133 = vsel %vm1235, %v4120, %v4122
        %v4134 = vsel %vm1235, %v4122, %v4124
        %v4135 = vsel %vm1235, %v4126, %v4128
        %v4136 = vsel %vm1235, %v4128, %v4130
        %v4147 = vsel %vm1965, %v4112, 0
        %4149 = vmatprep.subr.bf16.mxu0 %v4132
        %4150 = vmatpush1.bf16.msra.mxu0 %v4131
        %4151 = vmatprep.subr.bf16.mxu0 %v4134
        %4152 = vmatpush1.bf16.msra.mxu0 %v4133
        %4153 = vmatprep.subr.bf16.mxu0 %v4136
        %4154 = vmatpush1.bf16.msra.mxu0 %v4135
        %4155 = vmatprep.subr.bf16.mxu0 0
        %4156 = vmatpush1.bf16.msra.mxu0 0
        %4157 = vmatprep.subr.bf16.mxu0 0
        %4158 = vmatpush1.bf16.msra.mxu0 0
        %4159 = vmatprep.subr.bf16.mxu0 0
        %4160 = vmatpush1.bf16.msra.mxu0 0
        %4161 = vmatprep.subr.bf16.mxu0 0
        %4162 = vmatpush1.bf16.msra.mxu0 0
        %4163 = vmatprep.subr.bf16.mxu0 0
        %4164 = vmatpush1.bf16.msra.mxu0 0
        %4165 = vmatprep.subr.bf16.mxu0 0
        %4166 = vmatpush1.bf16.msra.mxu0 0
        %4167 = vmatprep.subr.bf16.mxu0 0
        %4168 = vmatpush1.bf16.msra.mxu0 0
        %4169 = vmatprep.subr.bf16.mxu0 0
        %4170 = vmatpush1.bf16.msra.mxu0 0
        %4171 = vmatprep.subr.bf16.mxu0 0
        %4172 = vmatpush1.bf16.msra.mxu0 0
        %4173 = vmatprep.subr.bf16.mxu0 0
        %4174 = vmatpush1.bf16.msra.mxu0 0
        %4175 = vmatprep.subr.bf16.mxu0 0
        %4176 = vmatpush1.bf16.msra.mxu0 0
        %4177 = vmatprep.subr.bf16.mxu0 0
        %4178 = vmatpush1.bf16.msra.mxu0 0
        %4179 = vmatprep.subr.bf16.mxu0 0
        %4180 = vmatpush1.bf16.msra.mxu0 0
        %4181 = vmatprep.mubr.bf16.mxu0 0
        %4182 = vmatmul.mubr.bf16.gmra.mrb[0].mxu0 %v4147
        %v4183 = vpop.f32.mrb[0].mxu0
        %v4184 = vadd.f32 0.0, %v4183
        %v4185 = vpop.f32.mrb[0].mxu0
        %v4186 = vadd.f32 0.0, %v4185
        %v4187 = vpop.f32.mrb[0].mxu0
        %v4188 = vadd.f32 0.0, %v4187
        %v4189 = vpop.f32.mrb[0].mxu0
        %v4190 = vadd.f32 0.0, %v4189
        %4191 = vdwg.mxu0
        %4192 = vmatprep.subr.bf16.mxu0 0
        %4193 = vmatpush1.bf16.msra.mxu0 %v4118
        %4194 = vmatprep.subr.bf16.mxu0 0
        %4195 = vmatpush1.bf16.msra.mxu0 %v4124
        %4196 = vmatprep.subr.bf16.mxu0 0
        %4197 = vmatpush1.bf16.msra.mxu0 %v4130
        %4198 = vmatprep.subr.bf16.mxu0 0
        %4199 = vmatpush1.bf16.msra.mxu0 0
        %4200 = vmatprep.subr.bf16.mxu0 0
        %4201 = vmatpush1.bf16.msra.mxu0 0
        %4202 = vmatprep.subr.bf16.mxu0 0
        %4203 = vmatpush1.bf16.msra.mxu0 0
        %4204 = vmatprep.subr.bf16.mxu0 0
        %4205 = vmatpush1.bf16.msra.mxu0 0
        %4206 = vmatprep.subr.bf16.mxu0 0
        %4207 = vmatpush1.bf16.msra.mxu0 0
        %4208 = vmatprep.subr.bf16.mxu0 0
        %4209 = vmatpush1.bf16.msra.mxu0 0
        %4210 = vmatprep.subr.bf16.mxu0 0
        %4211 = vmatpush1.bf16.msra.mxu0 0
        %4212 = vmatprep.subr.bf16.mxu0 0
        %4213 = vmatpush1.bf16.msra.mxu0 0
        %4214 = vmatprep.subr.bf16.mxu0 0
        %4215 = vmatpush1.bf16.msra.mxu0 0
        %4216 = vmatprep.subr.bf16.mxu0 0
        %4217 = vmatpush1.bf16.msra.mxu0 0
        %4218 = vmatprep.subr.bf16.mxu0 0
        %4219 = vmatpush1.bf16.msra.mxu0 0
        %4220 = vmatprep.subr.bf16.mxu0 0
        %4221 = vmatpush1.bf16.msra.mxu0 0
        %4222 = vmatprep.subr.bf16.mxu0 0
        %4223 = vmatpush1.bf16.msra.mxu0 0
        %4224 = vmatprep.mubr.bf16.mxu0 0
        %4225 = vmatmul.mubr.bf16.gmra.mrb[0].mxu0 %v4147
        %v4226 = vpop.f32.mrb[0].mxu0
        %v4227 = vadd.f32 0.0, %v4226
        %v4228 = vpop.f32.mrb[0].mxu0
        %v4229 = vpop.f32.mrb[0].mxu0
        %v4230 = vadd.f32 0.0, %v4229
        %v4231 = vpop.f32.mrb[0].mxu0
        %4232 = vdwg.mxu0
        %v4233 = vadd.f32 %v4049, %v4184
        %v4234 = vadd.f32 %v4051, %v4186
        %v4235 = vadd.f32 %v4092, %v4227
        %v4236 = vadd.f32 %v4053, %v4188
        %v4237 = vadd.f32 %v4055, %v4190
        %v4238 = vadd.f32 %v4095, %v4230
        %v4239 = vld [vmem:[%s2430] sm:$0xff]
        %v4240 = vld [vmem:[%s2430 + $0x8] sm:$0xff]
        %v4241 = vld [vmem:[%s2430 + $0x10] sm:$0xff]
        %v4242 = vpack.c.bf16 %v4239, %v4239
        %v4243 = vpack.c.bf16 %v4240, %v4240
        %v4244 = vpack.c.bf16 %v4241, %v4241
        %v4245 = vld [vmem:[%s6 + $0x4] sm:$0xf]
        %v4246 = vld [vmem:[%s6 + $0xc] sm:$0xf]
        %v4249 = vunpack.c.l.b16 %v4245
        %v4250 = vunpack.c.l.b16 %v4246
        %v4251 = vpack.c.b16 %v4250, %v4249
        %4252 = vrot.lane.b32.xlu0 %v4251, 112
        %v4253 = vpop.permute.xlu0 %4252
        %4257 = vrot.lane.b32.xlu0 %v4242, 109
        %v4258 = vpop.permute.xlu0 %4257
        %4259 = vrot.lane.b32.xlu0 %v4243, 109
        %v4260 = vpop.permute.xlu0 %4259
        %4261 = vrot.lane.b32.xlu0 %v4244, 109
        %v4262 = vpop.permute.xlu0 %4261
        %v4263 = vsel %vm1009, %v4258, %v4260
        %v4264 = vsel %vm1009, %v4260, %v4262
        %v4266 = vsel %vm581, %v4253, 0
        %v4269 = vsel %vm585, %v4263, 0
        %v4272 = vsel %vm585, %v4264, 0
        %v4275 = vsel %vm585, %v4262, 0
        %4277 = vmatprep.subr.bf16.mxu0 %v4272
        %4278 = vmatpush1.bf16.msra.mxu0 %v4269
        %4279 = vmatprep.subr.bf16.mxu0 0
        %4280 = vmatpush1.bf16.msra.mxu0 0
        %4281 = vmatprep.subr.bf16.mxu0 0
        %4282 = vmatpush1.bf16.msra.mxu0 0
        %4283 = vmatprep.subr.bf16.mxu0 0
        %4284 = vmatpush1.bf16.msra.mxu0 0
        %4285 = vmatprep.subr.bf16.mxu0 0
        %4286 = vmatpush1.bf16.msra.mxu0 0
        %4287 = vmatprep.subr.bf16.mxu0 0
        %4288 = vmatpush1.bf16.msra.mxu0 0
        %4289 = vmatprep.subr.bf16.mxu0 0
        %4290 = vmatpush1.bf16.msra.mxu0 0
        %4291 = vmatprep.subr.bf16.mxu0 0
        %4292 = vmatpush1.bf16.msra.mxu0 0
        %4293 = vmatprep.subr.bf16.mxu0 0
        %4294 = vmatpush1.bf16.msra.mxu0 0
        %4295 = vmatprep.subr.bf16.mxu0 0
        %4296 = vmatpush1.bf16.msra.mxu0 0
        %4297 = vmatprep.subr.bf16.mxu0 0
        %4298 = vmatpush1.bf16.msra.mxu0 0
        %4299 = vmatprep.subr.bf16.mxu0 0
        %4300 = vmatpush1.bf16.msra.mxu0 0
        %4301 = vmatprep.subr.bf16.mxu0 0
        %4302 = vmatpush1.bf16.msra.mxu0 0
        %4303 = vmatprep.subr.bf16.mxu0 0
        %4304 = vmatpush1.bf16.msra.mxu0 0
        %4305 = vmatprep.subr.bf16.mxu0 0
        %4306 = vmatpush1.bf16.msra.mxu0 0
        %4307 = vmatprep.subr.bf16.mxu0 0
        %4308 = vmatpush1.bf16.msra.mxu0 0
        %4309 = vmatprep.mubr.bf16.mxu0 0
        %4310 = vmatmul.mubr.bf16.gmra.mrb[0].mxu0 %v4266
        %v4311 = vpop.f32.mrb[0].mxu0
        %v4312 = vadd.f32 0.0, %v4311
        %v4313 = vpop.f32.mrb[0].mxu0
        %v4314 = vadd.f32 0.0, %v4313
        %v4315 = vpop.f32.mrb[0].mxu0
        %v4316 = vadd.f32 0.0, %v4315
        %v4317 = vpop.f32.mrb[0].mxu0
        %v4318 = vadd.f32 0.0, %v4317
        %4319 = vdwg.mxu0
        %4320 = vmatprep.subr.bf16.mxu0 0
        %4321 = vmatpush1.bf16.msra.mxu0 %v4275
        %4322 = vmatprep.subr.bf16.mxu0 0
        %4323 = vmatpush1.bf16.msra.mxu0 0
        %4324 = vmatprep.subr.bf16.mxu0 0
        %4325 = vmatpush1.bf16.msra.mxu0 0
        %4326 = vmatprep.subr.bf16.mxu0 0
        %4327 = vmatpush1.bf16.msra.mxu0 0
        %4328 = vmatprep.subr.bf16.mxu0 0
        %4329 = vmatpush1.bf16.msra.mxu0 0
        %4330 = vmatprep.subr.bf16.mxu0 0
        %4331 = vmatpush1.bf16.msra.mxu0 0
        %4332 = vmatprep.subr.bf16.mxu0 0
        %4333 = vmatpush1.bf16.msra.mxu0 0
        %4334 = vmatprep.subr.bf16.mxu0 0
        %4335 = vmatpush1.bf16.msra.mxu0 0
        %4336 = vmatprep.subr.bf16.mxu0 0
        %4337 = vmatpush1.bf16.msra.mxu0 0
        %4338 = vmatprep.subr.bf16.mxu0 0
        %4339 = vmatpush1.bf16.msra.mxu0 0
        %4340 = vmatprep.subr.bf16.mxu0 0
        %4341 = vmatpush1.bf16.msra.mxu0 0
        %4342 = vmatprep.subr.bf16.mxu0 0
        %4343 = vmatpush1.bf16.msra.mxu0 0
        %4344 = vmatprep.subr.bf16.mxu0 0
        %4345 = vmatpush1.bf16.msra.mxu0 0
        %4346 = vmatprep.subr.bf16.mxu0 0
        %4347 = vmatpush1.bf16.msra.mxu0 0
        %4348 = vmatprep.subr.bf16.mxu0 0
        %4349 = vmatpush1.bf16.msra.mxu0 0
        %4350 = vmatprep.subr.bf16.mxu0 0
        %4351 = vmatpush1.bf16.msra.mxu0 0
        %4352 = vmatprep.mubr.bf16.mxu0 0
        %4353 = vmatmul.mubr.bf16.gmra.mrb[0].mxu0 %v4266
        %v4354 = vpop.f32.mrb[0].mxu0
        %v4355 = vadd.f32 0.0, %v4354
        %v4356 = vpop.f32.mrb[0].mxu0
        %v4357 = vpop.f32.mrb[0].mxu0
        %v4358 = vadd.f32 0.0, %v4357
        %v4359 = vpop.f32.mrb[0].mxu0
        %4360 = vdwg.mxu0
        %v4361 = vadd.f32 %v4233, %v4312
        %v4362 = vadd.f32 %v4234, %v4314
        %v4363 = vadd.f32 %v4235, %v4355
        %v4364 = vadd.f32 %v4236, %v4316
        %v4365 = vadd.f32 %v4237, %v4318
        %v4366 = vadd.f32 %v4238, %v4358
        %v4367 = vadd.f32 %v4361, %v2412
        %v4368 = vadd.f32 %v4362, %v2412
        %v4369 = vadd.f32 %v4363, %v2412
        %v4370 = vadd.f32 %v4364, %v2416
        %v4371 = vadd.f32 %v4365, %v2416
        %v4372 = vadd.f32 %v4366, %v2416
        %s4373 = scalar_lea.vmem %s320, 48 [#allocation9]
        %4374 = vst [vmem:[%s4373] sm:$0xff] %v4367
        %4375 = vst [vmem:[%s4373 + $0x8] sm:$0xff] %v4368
        %4376 = vst.msk [vmem:[%s4373 + $0x10] sm:$0xff] %vm1603, %v4369
        %4377 = vst [vmem:[%s4373 + $0x18] sm:$0xff] %v4370
        %4378 = vst [vmem:[%s4373 + $0x20] sm:$0xff] %v4371
        %4379 = vst.msk [vmem:[%s4373 + $0x28] sm:$0xff] %vm1603, %v4372
        %s4380 = sand.u32 %s188, 1
        %s4381 = scalar_lea.sflag [#allocation6], %s4380
        %s4382 = sand.u32 %s188, 1
        %s4383 = smul.addr %s4382, 96
        %s4384 = scalar_lea.vmem [#allocation9], %s4383
        // Predicated region
        $region57: #{tpu_custom_call.1} parent=47 // pred_check
          %p4385 = pneg %p198
        $region58: #{tpu_custom_call.1} parent=47 // pred_check_branch
          %4387 = sbr.rel (%p4385) target = $region60
        $region59: #{tpu_custom_call.1} parent=47 // pred_region
          %s4388 = smul.u32 2, %s23
          %s4390 = ssub.s32 1536, 1536
          %4391 = vsyncadd %s4381, %s4390
          %s4392 = smul.addr %s4388, 6
          %s4393 = smul.addr %s4392, 128
          %s4394 = scalar_lea.hbm %s7, %s4393
          %s4395 = sshll.u32 %s4384, 4
          %s4396 = int_to_ptr.vmem [resolvable:$true] %s4395
          %4401 = dma.vmem_to_hbm [thread:$0]  %s4396, 1536, %s4394, %s4381, 384, 384, 24
        $region60: #{tpu_custom_call.1} parent=47 // pred_fallthru
          _
      $region48: #{tpu_custom_call.1} parent=5 // pred_fallthru
        _
      %p4402 = scmp.le.s32.totalorder 2, %s18
      // Predicated region
      $region61: #{tpu_custom_call.1} parent=5 // pred_check
        %p4403 = pneg %p4402
      $region62: #{tpu_custom_call.1} parent=5 // pred_check_branch
        %4405 = sbr.rel (%p4403) target = $region64
      $region63: #{tpu_custom_call.1} parent=5 // pred_region
        %s4406 = ssub.s32 %s18, 2
        // Predicated region
        $region65: #{tpu_custom_call.1} parent=63 // pred_check
          %p4407 = pneg %p204
        $region66: #{tpu_custom_call.1} parent=63 // pred_check_branch
          %4409 = sbr.rel (%p4407) target = $region68
        $region67: #{tpu_custom_call.1} parent=63 // pred_region
          %s4410 = sand.u32 %s189, 1
          %s4411 = scalar_lea.sflag [#allocation6], %s4410
          %s4412 = sand.u32 %s189, 1
          %s4413 = smul.addr %s4412, 96
          %s4414 = scalar_lea.vmem [#allocation9], %s4413
          %4415 = dma.done %s4411, 1536
        $region68: #{tpu_custom_call.1} parent=63 // pred_fallthru
          _
      $region64: #{tpu_custom_call.1} parent=5 // pred_fallthru
        _
    $region6: #{tpu_custom_call.1} parent=1 // loop_footer
      %s22 = sadd.s32 1, %s18
    $region7: #{tpu_custom_call.1} parent=1 // loop_footer_branch
      %17 = sbr.rel target = $region3
    $region8: #{tpu_custom_call.1} parent=1 // loop_exit
      _
    %4416 = vsyncpa [#allocation5], 1
    %s4417 = scalar_lea.sflag [#allocation5], 1
    %4418 = vsyncpa %s4417, 1
    %4419 = vsyncpa [#allocation8], 1
    %4420 = vsyncpa [#allocation6], 1
    %s4421 = scalar_lea.sflag [#allocation6], 1
    %4422 = vsyncpa %s4421, 1

</llo_original>
